<compile_context>
chip_gen: v7x
topology: tpu7x:2x2x1
jax: 0.10.0
libtpu: 0.0.40
codegen_flags: <defaults>
</compile_context>

<pallas_src>
import functools

import jax
import jax.numpy as jnp
from jax.experimental import pallas as pl
from jax.experimental.pallas import tpu as pltpu

_MAX_TILE = 512   # max rows per grid step (multiple of 8; tiny VMEM footprint)
_LN_EPS = 1e-5


# ---------------------------------------------------------------------------
# small helpers
# ---------------------------------------------------------------------------
def _round_up(n, m):
    return ((n + m - 1) // m) * m


def _row_tile(n):
    """Row tile: as large as possible up to _MAX_TILE, multiple of 8."""
    return min(_MAX_TILE, _round_up(n, 8))


def _pad_rows(a, n_pad):
    pad = n_pad - a.shape[0]
    return a if pad == 0 else jnp.pad(a, ((0, pad), (0, 0)))


def _pad_index(idx, e_pad, fill):
    pad = e_pad - idx.shape[0]
    if pad == 0:
        return idx
    return jnp.concatenate([idx, jnp.full((pad,), fill, idx.dtype)])


def _wspec(shape):
    """Full-array (grid-resident) BlockSpec for weights / biases."""
    return pl.BlockSpec(shape, lambda i: (0,) * len(shape))


# ---------------------------------------------------------------------------
# Pallas kernels
# ---------------------------------------------------------------------------
def _ln_tail(h_pre, w2, b2, g, beta):
    """ReLU -> Linear(w2) -> ReLU -> LayerNorm(g, beta). f32 math, bf16 dot."""
    h = jnp.maximum(h_pre, 0.0)
    h = jnp.dot(h.astype(jnp.bfloat16), w2,
                preferred_element_type=jnp.float32) + b2
    h = jnp.maximum(h, 0.0)
    mean = jnp.mean(h, axis=-1, keepdims=True)
    var = jnp.mean(jnp.square(h - mean), axis=-1, keepdims=True)
    h = (h - mean) * jax.lax.rsqrt(var + _LN_EPS)
    return h * g + beta


def _encode_kernel(x_ref, w1_ref, b1_ref, w2_ref, b2_ref, g_ref, beta_ref,
                   o_ref):
    """Encoder: Linear -> ReLU -> Linear -> ReLU -> LayerNorm."""
    x = x_ref[...].astype(jnp.bfloat16)
    h = jnp.dot(x, w1_ref[...], preferred_element_type=jnp.float32) + b1_ref[...]
    o_ref[...] = _ln_tail(h, w2_ref[...], b2_ref[...], g_ref[...], beta_ref[...])


def _edge_block_kernel(xi_ref, xj_ref, e_ref,
                       w1a_ref, w1b_ref, w1c_ref, b1_ref,
                       w2_ref, b2_ref, g_ref, beta_ref,
                       msg_ref, eo_ref):
    """Both edge_net evaluations of one GraphNet step, residual fused.

    msg      = edge_net([x_i, x_j, e])        (message, later scatter-added)
    new_edge = edge_net([x_j, x_i, e]) + e    (new edge features, residual)
    The concat is replaced by a sum of dots against row blocks of w1.
    """
    xi = xi_ref[...].astype(jnp.bfloat16)
    xj = xj_ref[...].astype(jnp.bfloat16)
    e_f32 = e_ref[...]
    e = e_f32.astype(jnp.bfloat16)
    w1a, w1b, w1c = w1a_ref[...], w1b_ref[...], w1c_ref[...]
    b1 = b1_ref[...]
    w2, b2 = w2_ref[...], b2_ref[...]
    g, beta = g_ref[...], beta_ref[...]

    # edge-feature contribution is shared by both evaluations
    e_part = jnp.dot(e, w1c, preferred_element_type=jnp.float32) + b1

    h_msg = (jnp.dot(xi, w1a, preferred_element_type=jnp.float32)
             + jnp.dot(xj, w1b, preferred_element_type=jnp.float32) + e_part)
    msg_ref[...] = _ln_tail(h_msg, w2, b2, g, beta)

    h_edge = (jnp.dot(xj, w1a, preferred_element_type=jnp.float32)
              + jnp.dot(xi, w1b, preferred_element_type=jnp.float32) + e_part)
    eo_ref[...] = _ln_tail(h_edge, w2, b2, g, beta) + e_f32


def _node_block_kernel(a_ref, x_ref, w1a_ref, w1b_ref, b1_ref,
                       w2_ref, b2_ref, g_ref, beta_ref, o_ref):
    """node_net([aggr, x]) + x, concat replaced by split-w1 dots."""
    a = a_ref[...].astype(jnp.bfloat16)
    x_f32 = x_ref[...]
    x = x_f32.astype(jnp.bfloat16)
    h = (jnp.dot(a, w1a_ref[...], preferred_element_type=jnp.float32)
         + jnp.dot(x, w1b_ref[...], preferred_element_type=jnp.float32)
         + b1_ref[...])
    o_ref[...] = _ln_tail(h, w2_ref[...], b2_ref[...], g_ref[...],
                          beta_ref[...]) + x_f32


def _decode_kernel(x_ref, w1_ref, b1_ref, w2_ref, b2_ref, o_ref):
    """Decoder: Linear -> ReLU -> Linear (output pre-padded to 128 lanes)."""
    x = x_ref[...].astype(jnp.bfloat16)
    h = jnp.dot(x, w1_ref[...], preferred_element_type=jnp.float32) + b1_ref[...]
    h = jnp.maximum(h, 0.0)
    o_ref[...] = jnp.dot(h.astype(jnp.bfloat16), w2_ref[...],
                         preferred_element_type=jnp.float32) + b2_ref[...]


# ---------------------------------------------------------------------------
# pallas_call wrappers
# ---------------------------------------------------------------------------
def mlp_encode(x, p, tile):
    """Encoder MLP (Linear-ReLU-Linear-ReLU-LayerNorm) over row tiles."""
    n, din = x.shape
    lat = p["w2"].shape[1]
    assert n % tile == 0
    return pl.pallas_call(
        _encode_kernel,
        out_shape=jax.ShapeDtypeStruct((n, lat), jnp.float32),
        grid_spec=pltpu.PrefetchScalarGridSpec(
            num_scalar_prefetch=0,
            grid=(n // tile,),
            in_specs=[
                pl.BlockSpec((tile, din), lambda i: (i, 0)),
                _wspec((din, lat)),
                _wspec((1, lat)),
                _wspec((lat, lat)),
                _wspec((1, lat)),
                _wspec((1, lat)),
                _wspec((1, lat)),
            ],
            out_specs=pl.BlockSpec((tile, lat), lambda i: (i, 0)),
        ),
        compiler_params=pltpu.CompilerParams(
            dimension_semantics=("parallel",)),
    )(x, p["w1"], p["b1"], p["w2"], p["b2"], p["gamma"], p["beta"])


def edge_block(x_i, x_j, e, p, tile):
    """One GraphNet edge step: returns (messages, new edge features + res)."""
    n, lat = e.shape
    assert n % tile == 0
    w1a, w1b, w1c = p["w1_blocks"]
    row_spec = pl.BlockSpec((tile, lat), lambda i: (i, 0))
    msg, new_e = pl.pallas_call(
        _edge_block_kernel,
        out_shape=(jax.ShapeDtypeStruct((n, lat), jnp.float32),
                   jax.ShapeDtypeStruct((n, lat), jnp.float32)),
        grid_spec=pltpu.PrefetchScalarGridSpec(
            num_scalar_prefetch=0,
            grid=(n // tile,),
            in_specs=[
                row_spec, row_spec, row_spec,
                _wspec((lat, lat)), _wspec((lat, lat)), _wspec((lat, lat)),
                _wspec((1, lat)),
                _wspec((lat, lat)), _wspec((1, lat)),
                _wspec((1, lat)), _wspec((1, lat)),
            ],
            out_specs=(row_spec, row_spec),
        ),
        compiler_params=pltpu.CompilerParams(
            dimension_semantics=("parallel",)),
    )(x_i, x_j, e, w1a, w1b, w1c, p["b1"], p["w2"], p["b2"],
      p["gamma"], p["beta"])
    return msg, new_e


def node_block(aggr, x, p, tile):
    """node_net([aggr, x]) + x over row tiles (residual fused)."""
    n, lat = x.shape
    assert n % tile == 0
    w1a, w1b = p["w1_blocks"]
    row_spec = pl.BlockSpec((tile, lat), lambda i: (i, 0))
    return pl.pallas_call(
        _node_block_kernel,
        out_shape=jax.ShapeDtypeStruct((n, lat), jnp.float32),
        grid_spec=pltpu.PrefetchScalarGridSpec(
            num_scalar_prefetch=0,
            grid=(n // tile,),
            in_specs=[
                row_spec, row_spec,
                _wspec((lat, lat)), _wspec((lat, lat)),
                _wspec((1, lat)),
                _wspec((lat, lat)), _wspec((1, lat)),
                _wspec((1, lat)), _wspec((1, lat)),
            ],
            out_specs=row_spec,
        ),
        compiler_params=pltpu.CompilerParams(
            dimension_semantics=("parallel",)),
    )(aggr, x, w1a, w1b, p["b1"], p["w2"], p["b2"], p["gamma"], p["beta"])


def mlp_decode(x, p, tile):
    """Decoder MLP (Linear-ReLU-Linear); output padded to 128 lanes."""
    n, din = x.shape
    hid = p["w1"].shape[1]
    dpad = p["w2"].shape[1]
    assert n % tile == 0
    return pl.pallas_call(
        _decode_kernel,
        out_shape=jax.ShapeDtypeStruct((n, dpad), jnp.float32),
        grid_spec=pltpu.PrefetchScalarGridSpec(
            num_scalar_prefetch=0,
            grid=(n // tile,),
            in_specs=[
                pl.BlockSpec((tile, din), lambda i: (i, 0)),
                _wspec((din, hid)),
                _wspec((1, hid)),
                _wspec((hid, dpad)),
                _wspec((1, dpad)),
            ],
            out_specs=pl.BlockSpec((tile, dpad), lambda i: (i, 0)),
        ),
        compiler_params=pltpu.CompilerParams(
            dimension_semantics=("parallel",)),
    )(x, p["w1"], p["b1"], p["w2"], p["b2"])


# ---------------------------------------------------------------------------
# Parameter initialization (deterministic, PyTorch-Linear-like uniform)
# ---------------------------------------------------------------------------
def _init_linear(key, din, dout):
    kw, kb = jax.random.split(key)
    scale = 1.0 / jnp.sqrt(jnp.float32(din))
    w = jax.random.uniform(kw, (din, dout), jnp.float32, -scale, scale)
    b = jax.random.uniform(kb, (1, dout), jnp.float32, -scale, scale)
    return w, b


def _init_mlp_ln(key, din, latent, split=None):
    """Linear-ReLU-Linear-ReLU-LayerNorm params; matmul weights stored bf16."""
    k1, k2 = jax.random.split(key)
    w1, b1 = _init_linear(k1, din, latent)
    w2, b2 = _init_linear(k2, latent, latent)
    p = dict(b1=b1, w2=w2.astype(jnp.bfloat16), b2=b2,
             gamma=jnp.ones((1, latent), jnp.float32),
             beta=jnp.zeros((1, latent), jnp.float32))
    if split is None:
        p["w1"] = w1.astype(jnp.bfloat16)
    else:
        # split w1 along its input rows so the concat never materialises
        blocks, off = [], 0
        for s in split:
            blocks.append(w1[off:off + s].astype(jnp.bfloat16))
            off += s
        p["w1_blocks"] = tuple(blocks)
    return p


def _init_decoder(key, din, hidden, dout):
    """Linear-ReLU-Linear decoder; output columns zero-padded to 128 lanes."""
    k1, k2 = jax.random.split(key)
    w1, b1 = _init_linear(k1, din, hidden)
    w2, b2 = _init_linear(k2, hidden, dout)
    dpad = _round_up(dout, 128)
    w2p = jnp.zeros((hidden, dpad), jnp.float32).at[:, :dout].set(w2)
    b2p = jnp.zeros((1, dpad), jnp.float32).at[:, :dout].set(b2)
    return dict(w1=w1.astype(jnp.bfloat16), b1=b1,
                w2=w2p.astype(jnp.bfloat16), b2=b2p)


def init_params(key, node_feat, edge_feat, latent, output_size):
    ks = jax.random.split(key, 5)
    return dict(
        node_encode=_init_mlp_ln(ks[0], node_feat, latent),
        edge_encode=_init_mlp_ln(ks[1], edge_feat, latent),
        edge_net=_init_mlp_ln(ks[2], 3 * latent, latent,
                              split=(latent, latent, latent)),
        node_net=_init_mlp_ln(ks[3], 2 * latent, latent,
                              split=(latent, latent)),
        node_decode=_init_decoder(ks[4], latent, latent, output_size),
    )


# ---------------------------------------------------------------------------
# EncodeProcessDecode forward
# ---------------------------------------------------------------------------
@functools.partial(jax.jit,
                   static_argnames=("message_passing_steps", "output_size"))
def encode_process_decode(params, x, edge_attr, edge_index, *,
                          message_passing_steps, output_size):
    n = x.shape[0]
    e = edge_attr.shape[0]
    lat = params["node_encode"]["w2"].shape[1]

    # --- row padding hoisted out of the message-passing loop (done once) ---
    tn = _row_tile(n)
    te = _row_tile(e)
    n_pad = _round_up(n, tn)
    e_pad = _round_up(e, te)

    xp = _pad_rows(x, n_pad)
    ep = _pad_rows(edge_attr, e_pad)

    row = edge_index[0].astype(jnp.int32)   # source node index (x_j)
    col = edge_index[1].astype(jnp.int32)   # target node index (x_i), aggr target
    # Padded edges point at node `n`: their gathers hit padded/clamped rows and
    # their messages either land in a padded node row or are dropped by the
    # scatter, so real outputs are unaffected.
    row_p = _pad_index(row, e_pad, n)
    col_p = _pad_index(col, e_pad, n)

    node_lat = mlp_encode(xp, params["node_encode"], tn)   # [n_pad, lat]
    edge_lat = mlp_encode(ep, params["edge_encode"], te)   # [e_pad, lat]

    for _ in range(message_passing_steps):
        # TODO(synk): per-edge gather and the scatter-add aggregation are
        # data-dependent and stay in plain JAX; for production graphs move the
        # gather into the edge kernel via scalar-prefetched indices and use a
        # sorted segment-sum (or a fused Pallas kernel) for the aggregation.
        x_i = node_lat[col_p]
        x_j = node_lat[row_p]

        msg, edge_lat = edge_block(x_i, x_j, edge_lat, params["edge_net"], te)
        aggr = jnp.zeros((n_pad, lat), jnp.float32).at[col_p].add(msg)
        node_lat = node_block(aggr, node_lat, params["node_net"], tn)

    dec = mlp_decode(node_lat, params["node_decode"], tn)   # [n_pad, 128-pad]
    return dec[:n, :output_size]


# ---------------------------------------------------------------------------
if __name__ == "__main__":
    node_feat_size = 12
    edge_feat_size = 7
    latent_size = 32
    output_size = 3
    message_passing_steps = 2
    num_nodes = 24
    num_edges = 56

    key = jax.random.PRNGKey(0)
    kx, ke, ki, kp = jax.random.split(key, 4)
    x = jax.random.normal(kx, (num_nodes, node_feat_size), jnp.float32)
    edge_attr = jax.random.normal(ke, (num_edges, edge_feat_size), jnp.float32)
    edge_index = jax.random.randint(ki, (2, num_edges), 0, num_nodes, jnp.int32)

    params = init_params(kp, node_feat_size, edge_feat_size, latent_size,
                         output_size)

    out = encode_process_decode(params, x, edge_attr, edge_index,
                                message_passing_steps=message_passing_steps,
                                output_size=output_size)
    out = jax.block_until_ready(out)
    assert out.shape == (num_nodes, output_size), out.shape
    assert out.dtype == jnp.float32
    assert bool(jnp.all(jnp.isfinite(out)))
    print("KERNEL_OK")
</pallas_src>

<mosaic_0001>
module attributes {stable_mosaic.version = 11 : i64} {
  func.func @_encode_kernel(%arg0: i32, %arg1: memref<24x12xf32, #tpu.memory_space<vmem>>, %arg2: memref<12x32xbf16, #tpu.memory_space<vmem>>, %arg3: memref<1x32xf32, #tpu.memory_space<vmem>>, %arg4: memref<32x32xbf16, #tpu.memory_space<vmem>>, %arg5: memref<1x32xf32, #tpu.memory_space<vmem>>, %arg6: memref<1x32xf32, #tpu.memory_space<vmem>>, %arg7: memref<1x32xf32, #tpu.memory_space<vmem>>, %arg8: memref<24x32xf32, #tpu.memory_space<vmem>>) attributes {dimension_semantics = [#tpu.dimension_semantics<parallel>], iteration_bounds = array<i64: 1>, scalar_prefetch = 0 : i64, scratch_operands = 0 : i64, tpu.core_type = #tpu.core_type<tc>, window_params = [{transform_indices = @transform_0, window_bounds = array<i64: 24, 12>}, {pipeline_mode = #tpu.pipeline_mode<synchronous>, transform_indices = @transform_1, window_bounds = array<i64: 12, 32>}, {pipeline_mode = #tpu.pipeline_mode<synchronous>, transform_indices = @transform_2, window_bounds = array<i64: 1, 32>}, {pipeline_mode = #tpu.pipeline_mode<synchronous>, transform_indices = @transform_3, window_bounds = array<i64: 32, 32>}, {pipeline_mode = #tpu.pipeline_mode<synchronous>, transform_indices = @transform_4, window_bounds = array<i64: 1, 32>}, {pipeline_mode = #tpu.pipeline_mode<synchronous>, transform_indices = @transform_5, window_bounds = array<i64: 1, 32>}, {pipeline_mode = #tpu.pipeline_mode<synchronous>, transform_indices = @transform_6, window_bounds = array<i64: 1, 32>}, {transform_indices = @transform_7, window_bounds = array<i64: 24, 32>}]} {
    %c0 = arith.constant 0 : index
    %c0_0 = arith.constant 0 : index
    %0 = vector.load %arg1[%c0, %c0_0] : memref<24x12xf32, #tpu.memory_space<vmem>>, vector<24x12xf32>
    %1 = arith.truncf %0 : vector<24x12xf32> to vector<24x12xbf16>
    %c0_1 = arith.constant 0 : index
    %c0_2 = arith.constant 0 : index
    %2 = vector.load %arg2[%c0_1, %c0_2] : memref<12x32xbf16, #tpu.memory_space<vmem>>, vector<12x32xbf16>
    %cst = arith.constant dense<0.000000e+00> : vector<24x32xf32>
    %3 = tpu.matmul %1, %2, %cst {dimension_numbers = #tpu.dot_dimension_numbers<[1], [0], [0], [1], [0, 0, 1, 1], [], []>} : vector<24x12xbf16>, vector<12x32xbf16>, vector<24x32xf32> -> vector<24x32xf32>
    %c0_3 = arith.constant 0 : index
    %c0_4 = arith.constant 0 : index
    %4 = vector.load %arg3[%c0_3, %c0_4] : memref<1x32xf32, #tpu.memory_space<vmem>>, vector<1x32xf32>
    %5 = vector.broadcast %4 : vector<1x32xf32> to vector<24x32xf32>
    %6 = arith.addf %3, %5 : vector<24x32xf32>
    %c0_5 = arith.constant 0 : index
    %c0_6 = arith.constant 0 : index
    %7 = vector.load %arg4[%c0_5, %c0_6] : memref<32x32xbf16, #tpu.memory_space<vmem>>, vector<32x32xbf16>
    %c0_7 = arith.constant 0 : index
    %c0_8 = arith.constant 0 : index
    %8 = vector.load %arg5[%c0_7, %c0_8] : memref<1x32xf32, #tpu.memory_space<vmem>>, vector<1x32xf32>
    %c0_9 = arith.constant 0 : index
    %c0_10 = arith.constant 0 : index
    %9 = vector.load %arg6[%c0_9, %c0_10] : memref<1x32xf32, #tpu.memory_space<vmem>>, vector<1x32xf32>
    %c0_11 = arith.constant 0 : index
    %c0_12 = arith.constant 0 : index
    %10 = vector.load %arg7[%c0_11, %c0_12] : memref<1x32xf32, #tpu.memory_space<vmem>>, vector<1x32xf32>
    %cst_13 = arith.constant 0.000000e+00 : f32
    %11 = vector.broadcast %cst_13 : f32 to vector<24x32xf32>
    %12 = arith.maximumf %6, %11 : vector<24x32xf32>
    %13 = arith.truncf %12 : vector<24x32xf32> to vector<24x32xbf16>
    %cst_14 = arith.constant dense<0.000000e+00> : vector<24x32xf32>
    %14 = tpu.matmul %13, %7, %cst_14 {dimension_numbers = #tpu.dot_dimension_numbers<[1], [0], [0], [1], [0, 0, 1, 1], [], []>} : vector<24x32xbf16>, vector<32x32xbf16>, vector<24x32xf32> -> vector<24x32xf32>
    %15 = vector.broadcast %8 : vector<1x32xf32> to vector<24x32xf32>
    %16 = arith.addf %14, %15 : vector<24x32xf32>
    %cst_15 = arith.constant 0.000000e+00 : f32
    %17 = vector.broadcast %cst_15 : f32 to vector<24x32xf32>
    %18 = arith.maximumf %16, %17 : vector<24x32xf32>
    %cst_16 = arith.constant dense<0.000000e+00> : vector<24xf32>
    %19 = vector.multi_reduction <add>, %18, %cst_16 [1] : vector<24x32xf32> to vector<24xf32>
    %20 = vector.shape_cast %19 : vector<24xf32> to vector<24x1xf32>
    %cst_17 = arith.constant 3.200000e+01 : f32
    %21 = vector.broadcast %cst_17 : f32 to vector<24x1xf32>
    %22 = arith.divf %20, %21 : vector<24x1xf32>
    %23 = vector.broadcast %22 : vector<24x1xf32> to vector<24x32xf32>
    %24 = arith.subf %18, %23 : vector<24x32xf32>
    %25 = arith.mulf %24, %24 : vector<24x32xf32>
    %cst_18 = arith.constant dense<0.000000e+00> : vector<24xf32>
    %26 = vector.multi_reduction <add>, %25, %cst_18 [1] : vector<24x32xf32> to vector<24xf32>
    %27 = vector.shape_cast %26 : vector<24xf32> to vector<24x1xf32>
    %cst_19 = arith.constant 3.200000e+01 : f32
    %28 = vector.broadcast %cst_19 : f32 to vector<24x1xf32>
    %29 = arith.divf %27, %28 : vector<24x1xf32>
    %30 = vector.broadcast %22 : vector<24x1xf32> to vector<24x32xf32>
    %31 = arith.subf %18, %30 : vector<24x32xf32>
    %cst_20 = arith.constant 9.99999974E-6 : f32
    %32 = vector.broadcast %cst_20 : f32 to vector<24x1xf32>
    %33 = arith.addf %29, %32 : vector<24x1xf32>
    %34 = math.rsqrt %33 : vector<24x1xf32>
    %35 = vector.broadcast %34 : vector<24x1xf32> to vector<24x32xf32>
    %36 = arith.mulf %31, %35 : vector<24x32xf32>
    %37 = vector.broadcast %9 : vector<1x32xf32> to vector<24x32xf32>
    %38 = arith.mulf %36, %37 : vector<24x32xf32>
    %39 = vector.broadcast %10 : vector<1x32xf32> to vector<24x32xf32>
    %40 = arith.addf %38, %39 : vector<24x32xf32>
    %c0_21 = arith.constant 0 : index
    %c0_22 = arith.constant 0 : index
    %41 = vector.load %arg8[%c0_21, %c0_22] : memref<24x32xf32, #tpu.memory_space<vmem>>, vector<24x32xf32>
    tpu.vector_store %arg8[%c0_21, %c0_22], %40 {strides = array<i32>} : memref<24x32xf32, #tpu.memory_space<vmem>>, vector<24x32xf32>,
    return
  }
  func.func @transform_0(%arg0: i32) -> (i32, i32) {
    %c0_i32 = arith.constant 0 : i32
    %c0_i32_0 = arith.constant 0 : i32
    return %arg0, %c0_i32 : i32, i32
  }
  func.func @transform_1(%arg0: i32) -> (i32, i32) {
    %c0_i32 = arith.constant 0 : i32
    %c0_i32_0 = arith.constant 0 : i32
    %c0_i32_1 = arith.constant 0 : i32
    return %c0_i32, %c0_i32_0 : i32, i32
  }
  func.func @transform_2(%arg0: i32) -> (i32, i32) {
    %c0_i32 = arith.constant 0 : i32
    %c0_i32_0 = arith.constant 0 : i32
    %c0_i32_1 = arith.constant 0 : i32
    return %c0_i32, %c0_i32_0 : i32, i32
  }
  func.func @transform_3(%arg0: i32) -> (i32, i32) {
    %c0_i32 = arith.constant 0 : i32
    %c0_i32_0 = arith.constant 0 : i32
    %c0_i32_1 = arith.constant 0 : i32
    return %c0_i32, %c0_i32_0 : i32, i32
  }
  func.func @transform_4(%arg0: i32) -> (i32, i32) {
    %c0_i32 = arith.constant 0 : i32
    %c0_i32_0 = arith.constant 0 : i32
    %c0_i32_1 = arith.constant 0 : i32
    return %c0_i32, %c0_i32_0 : i32, i32
  }
  func.func @transform_5(%arg0: i32) -> (i32, i32) {
    %c0_i32 = arith.constant 0 : i32
    %c0_i32_0 = arith.constant 0 : i32
    %c0_i32_1 = arith.constant 0 : i32
    return %c0_i32, %c0_i32_0 : i32, i32
  }
  func.func @transform_6(%arg0: i32) -> (i32, i32) {
    %c0_i32 = arith.constant 0 : i32
    %c0_i32_0 = arith.constant 0 : i32
    %c0_i32_1 = arith.constant 0 : i32
    return %c0_i32, %c0_i32_0 : i32, i32
  }
  func.func @transform_7(%arg0: i32) -> (i32, i32) {
    %c0_i32 = arith.constant 0 : i32
    %c0_i32_0 = arith.constant 0 : i32
    return %arg0, %c0_i32 : i32, i32
  }
}

module attributes {stable_mosaic.version = 11 : i64} {
  func.func @_encode_kernel(%arg0: i32, %arg1: memref<56x7xf32, #tpu.memory_space<vmem>>, %arg2: memref<7x32xbf16, #tpu.memory_space<vmem>>, %arg3: memref<1x32xf32, #tpu.memory_space<vmem>>, %arg4: memref<32x32xbf16, #tpu.memory_space<vmem>>, %arg5: memref<1x32xf32, #tpu.memory_space<vmem>>, %arg6: memref<1x32xf32, #tpu.memory_space<vmem>>, %arg7: memref<1x32xf32, #tpu.memory_space<vmem>>, %arg8: memref<56x32xf32, #tpu.memory_space<vmem>>) attributes {dimension_semantics = [#tpu.dimension_semantics<parallel>], iteration_bounds = array<i64: 1>, scalar_prefetch = 0 : i64, scratch_operands = 0 : i64, tpu.core_type = #tpu.core_type<tc>, window_params = [{transform_indices = @transform_0, window_bounds = array<i64: 56, 7>}, {pipeline_mode = #tpu.pipeline_mode<synchronous>, transform_indices = @transform_1, window_bounds = array<i64: 7, 32>}, {pipeline_mode = #tpu.pipeline_mode<synchronous>, transform_indices = @transform_2, window_bounds = array<i64: 1, 32>}, {pipeline_mode = #tpu.pipeline_mode<synchronous>, transform_indices = @transform_3, window_bounds = array<i64: 32, 32>}, {pipeline_mode = #tpu.pipeline_mode<synchronous>, transform_indices = @transform_4, window_bounds = array<i64: 1, 32>}, {pipeline_mode = #tpu.pipeline_mode<synchronous>, transform_indices = @transform_5, window_bounds = array<i64: 1, 32>}, {pipeline_mode = #tpu.pipeline_mode<synchronous>, transform_indices = @transform_6, window_bounds = array<i64: 1, 32>}, {transform_indices = @transform_7, window_bounds = array<i64: 56, 32>}]} {
    %c0 = arith.constant 0 : index
    %c0_0 = arith.constant 0 : index
    %0 = vector.load %arg1[%c0, %c0_0] : memref<56x7xf32, #tpu.memory_space<vmem>>, vector<56x7xf32>
    %1 = arith.truncf %0 : vector<56x7xf32> to vector<56x7xbf16>
    %c0_1 = arith.constant 0 : index
    %c0_2 = arith.constant 0 : index
    %2 = vector.load %arg2[%c0_1, %c0_2] : memref<7x32xbf16, #tpu.memory_space<vmem>>, vector<7x32xbf16>
    %cst = arith.constant dense<0.000000e+00> : vector<56x32xf32>
    %3 = tpu.matmul %1, %2, %cst {dimension_numbers = #tpu.dot_dimension_numbers<[1], [0], [0], [1], [0, 0, 1, 1], [], []>} : vector<56x7xbf16>, vector<7x32xbf16>, vector<56x32xf32> -> vector<56x32xf32>
    %c0_3 = arith.constant 0 : index
    %c0_4 = arith.constant 0 : index
    %4 = vector.load %arg3[%c0_3, %c0_4] : memref<1x32xf32, #tpu.memory_space<vmem>>, vector<1x32xf32>
    %5 = vector.broadcast %4 : vector<1x32xf32> to vector<56x32xf32>
    %6 = arith.addf %3, %5 : vector<56x32xf32>
    %c0_5 = arith.constant 0 : index
    %c0_6 = arith.constant 0 : index
    %7 = vector.load %arg4[%c0_5, %c0_6] : memref<32x32xbf16, #tpu.memory_space<vmem>>, vector<32x32xbf16>
    %c0_7 = arith.constant 0 : index
    %c0_8 = arith.constant 0 : index
    %8 = vector.load %arg5[%c0_7, %c0_8] : memref<1x32xf32, #tpu.memory_space<vmem>>, vector<1x32xf32>
    %c0_9 = arith.constant 0 : index
    %c0_10 = arith.constant 0 : index
    %9 = vector.load %arg6[%c0_9, %c0_10] : memref<1x32xf32, #tpu.memory_space<vmem>>, vector<1x32xf32>
    %c0_11 = arith.constant 0 : index
    %c0_12 = arith.constant 0 : index
    %10 = vector.load %arg7[%c0_11, %c0_12] : memref<1x32xf32, #tpu.memory_space<vmem>>, vector<1x32xf32>
    %cst_13 = arith.constant 0.000000e+00 : f32
    %11 = vector.broadcast %cst_13 : f32 to vector<56x32xf32>
    %12 = arith.maximumf %6, %11 : vector<56x32xf32>
    %13 = arith.truncf %12 : vector<56x32xf32> to vector<56x32xbf16>
    %cst_14 = arith.constant dense<0.000000e+00> : vector<56x32xf32>
    %14 = tpu.matmul %13, %7, %cst_14 {dimension_numbers = #tpu.dot_dimension_numbers<[1], [0], [0], [1], [0, 0, 1, 1], [], []>} : vector<56x32xbf16>, vector<32x32xbf16>, vector<56x32xf32> -> vector<56x32xf32>
    %15 = vector.broadcast %8 : vector<1x32xf32> to vector<56x32xf32>
    %16 = arith.addf %14, %15 : vector<56x32xf32>
    %cst_15 = arith.constant 0.000000e+00 : f32
    %17 = vector.broadcast %cst_15 : f32 to vector<56x32xf32>
    %18 = arith.maximumf %16, %17 : vector<56x32xf32>
    %cst_16 = arith.constant dense<0.000000e+00> : vector<56xf32>
    %19 = vector.multi_reduction <add>, %18, %cst_16 [1] : vector<56x32xf32> to vector<56xf32>
    %20 = vector.shape_cast %19 : vector<56xf32> to vector<56x1xf32>
    %cst_17 = arith.constant 3.200000e+01 : f32
    %21 = vector.broadcast %cst_17 : f32 to vector<56x1xf32>
    %22 = arith.divf %20, %21 : vector<56x1xf32>
    %23 = vector.broadcast %22 : vector<56x1xf32> to vector<56x32xf32>
    %24 = arith.subf %18, %23 : vector<56x32xf32>
    %25 = arith.mulf %24, %24 : vector<56x32xf32>
    %cst_18 = arith.constant dense<0.000000e+00> : vector<56xf32>
    %26 = vector.multi_reduction <add>, %25, %cst_18 [1] : vector<56x32xf32> to vector<56xf32>
    %27 = vector.shape_cast %26 : vector<56xf32> to vector<56x1xf32>
    %cst_19 = arith.constant 3.200000e+01 : f32
    %28 = vector.broadcast %cst_19 : f32 to vector<56x1xf32>
    %29 = arith.divf %27, %28 : vector<56x1xf32>
    %30 = vector.broadcast %22 : vector<56x1xf32> to vector<56x32xf32>
    %31 = arith.subf %18, %30 : vector<56x32xf32>
    %cst_20 = arith.constant 9.99999974E-6 : f32
    %32 = vector.broadcast %cst_20 : f32 to vector<56x1xf32>
    %33 = arith.addf %29, %32 : vector<56x1xf32>
    %34 = math.rsqrt %33 : vector<56x1xf32>
    %35 = vector.broadcast %34 : vector<56x1xf32> to vector<56x32xf32>
    %36 = arith.mulf %31, %35 : vector<56x32xf32>
    %37 = vector.broadcast %9 : vector<1x32xf32> to vector<56x32xf32>
    %38 = arith.mulf %36, %37 : vector<56x32xf32>
    %39 = vector.broadcast %10 : vector<1x32xf32> to vector<56x32xf32>
    %40 = arith.addf %38, %39 : vector<56x32xf32>
    %c0_21 = arith.constant 0 : index
    %c0_22 = arith.constant 0 : index
    %41 = vector.load %arg8[%c0_21, %c0_22] : memref<56x32xf32, #tpu.memory_space<vmem>>, vector<56x32xf32>
    tpu.vector_store %arg8[%c0_21, %c0_22], %40 {strides = array<i32>} : memref<56x32xf32, #tpu.memory_space<vmem>>, vector<56x32xf32>,
    return
  }
  func.func @transform_0(%arg0: i32) -> (i32, i32) {
    %c0_i32 = arith.constant 0 : i32
    %c0_i32_0 = arith.constant 0 : i32
    return %arg0, %c0_i32 : i32, i32
  }
  func.func @transform_1(%arg0: i32) -> (i32, i32) {
    %c0_i32 = arith.constant 0 : i32
    %c0_i32_0 = arith.constant 0 : i32
    %c0_i32_1 = arith.constant 0 : i32
    return %c0_i32, %c0_i32_0 : i32, i32
  }
  func.func @transform_2(%arg0: i32) -> (i32, i32) {
    %c0_i32 = arith.constant 0 : i32
    %c0_i32_0 = arith.constant 0 : i32
    %c0_i32_1 = arith.constant 0 : i32
    return %c0_i32, %c0_i32_0 : i32, i32
  }
  func.func @transform_3(%arg0: i32) -> (i32, i32) {
    %c0_i32 = arith.constant 0 : i32
    %c0_i32_0 = arith.constant 0 : i32
    %c0_i32_1 = arith.constant 0 : i32
    return %c0_i32, %c0_i32_0 : i32, i32
  }
  func.func @transform_4(%arg0: i32) -> (i32, i32) {
    %c0_i32 = arith.constant 0 : i32
    %c0_i32_0 = arith.constant 0 : i32
    %c0_i32_1 = arith.constant 0 : i32
    return %c0_i32, %c0_i32_0 : i32, i32
  }
  func.func @transform_5(%arg0: i32) -> (i32, i32) {
    %c0_i32 = arith.constant 0 : i32
    %c0_i32_0 = arith.constant 0 : i32
    %c0_i32_1 = arith.constant 0 : i32
    return %c0_i32, %c0_i32_0 : i32, i32
  }
  func.func @transform_6(%arg0: i32) -> (i32, i32) {
    %c0_i32 = arith.constant 0 : i32
    %c0_i32_0 = arith.constant 0 : i32
    %c0_i32_1 = arith.constant 0 : i32
    return %c0_i32, %c0_i32_0 : i32, i32
  }
  func.func @transform_7(%arg0: i32) -> (i32, i32) {
    %c0_i32 = arith.constant 0 : i32
    %c0_i32_0 = arith.constant 0 : i32
    return %arg0, %c0_i32 : i32, i32
  }
}

module attributes {stable_mosaic.version = 11 : i64} {
  func.func @_edge_block_kernel(%arg0: i32, %arg1: memref<56x32xf32, #tpu.memory_space<vmem>>, %arg2: memref<56x32xf32, #tpu.memory_space<vmem>>, %arg3: memref<56x32xf32, #tpu.memory_space<vmem>>, %arg4: memref<32x32xbf16, #tpu.memory_space<vmem>>, %arg5: memref<32x32xbf16, #tpu.memory_space<vmem>>, %arg6: memref<32x32xbf16, #tpu.memory_space<vmem>>, %arg7: memref<1x32xf32, #tpu.memory_space<vmem>>, %arg8: memref<32x32xbf16, #tpu.memory_space<vmem>>, %arg9: memref<1x32xf32, #tpu.memory_space<vmem>>, %arg10: memref<1x32xf32, #tpu.memory_space<vmem>>, %arg11: memref<1x32xf32, #tpu.memory_space<vmem>>, %arg12: memref<56x32xf32, #tpu.memory_space<vmem>>, %arg13: memref<56x32xf32, #tpu.memory_space<vmem>>) attributes {dimension_semantics = [#tpu.dimension_semantics<parallel>], iteration_bounds = array<i64: 1>, scalar_prefetch = 0 : i64, scratch_operands = 0 : i64, tpu.core_type = #tpu.core_type<tc>, window_params = [{transform_indices = @transform_0, window_bounds = array<i64: 56, 32>}, {transform_indices = @transform_1, window_bounds = array<i64: 56, 32>}, {transform_indices = @transform_2, window_bounds = array<i64: 56, 32>}, {pipeline_mode = #tpu.pipeline_mode<synchronous>, transform_indices = @transform_3, window_bounds = array<i64: 32, 32>}, {pipeline_mode = #tpu.pipeline_mode<synchronous>, transform_indices = @transform_4, window_bounds = array<i64: 32, 32>}, {pipeline_mode = #tpu.pipeline_mode<synchronous>, transform_indices = @transform_5, window_bounds = array<i64: 32, 32>}, {pipeline_mode = #tpu.pipeline_mode<synchronous>, transform_indices = @transform_6, window_bounds = array<i64: 1, 32>}, {pipeline_mode = #tpu.pipeline_mode<synchronous>, transform_indices = @transform_7, window_bounds = array<i64: 32, 32>}, {pipeline_mode = #tpu.pipeline_mode<synchronous>, transform_indices = @transform_8, window_bounds = array<i64: 1, 32>}, {pipeline_mode = #tpu.pipeline_mode<synchronous>, transform_indices = @transform_9, window_bounds = array<i64: 1, 32>}, {pipeline_mode = #tpu.pipeline_mode<synchronous>, transform_indices = @transform_10, window_bounds = array<i64: 1, 32>}, {transform_indices = @transform_11, window_bounds = array<i64: 56, 32>}, {transform_indices = @transform_12, window_bounds = array<i64: 56, 32>}]} {
    %c0 = arith.constant 0 : index
    %c0_0 = arith.constant 0 : index
    %0 = vector.load %arg1[%c0, %c0_0] : memref<56x32xf32, #tpu.memory_space<vmem>>, vector<56x32xf32>
    %1 = arith.truncf %0 : vector<56x32xf32> to vector<56x32xbf16>
    %c0_1 = arith.constant 0 : index
    %c0_2 = arith.constant 0 : index
    %2 = vector.load %arg2[%c0_1, %c0_2] : memref<56x32xf32, #tpu.memory_space<vmem>>, vector<56x32xf32>
    %3 = arith.truncf %2 : vector<56x32xf32> to vector<56x32xbf16>
    %c0_3 = arith.constant 0 : index
    %c0_4 = arith.constant 0 : index
    %4 = vector.load %arg3[%c0_3, %c0_4] : memref<56x32xf32, #tpu.memory_space<vmem>>, vector<56x32xf32>
    %5 = arith.truncf %4 : vector<56x32xf32> to vector<56x32xbf16>
    %c0_5 = arith.constant 0 : index
    %c0_6 = arith.constant 0 : index
    %6 = vector.load %arg4[%c0_5, %c0_6] : memref<32x32xbf16, #tpu.memory_space<vmem>>, vector<32x32xbf16>
    %c0_7 = arith.constant 0 : index
    %c0_8 = arith.constant 0 : index
    %7 = vector.load %arg5[%c0_7, %c0_8] : memref<32x32xbf16, #tpu.memory_space<vmem>>, vector<32x32xbf16>
    %c0_9 = arith.constant 0 : index
    %c0_10 = arith.constant 0 : index
    %8 = vector.load %arg6[%c0_9, %c0_10] : memref<32x32xbf16, #tpu.memory_space<vmem>>, vector<32x32xbf16>
    %c0_11 = arith.constant 0 : index
    %c0_12 = arith.constant 0 : index
    %9 = vector.load %arg7[%c0_11, %c0_12] : memref<1x32xf32, #tpu.memory_space<vmem>>, vector<1x32xf32>
    %c0_13 = arith.constant 0 : index
    %c0_14 = arith.constant 0 : index
    %10 = vector.load %arg8[%c0_13, %c0_14] : memref<32x32xbf16, #tpu.memory_space<vmem>>, vector<32x32xbf16>
    %c0_15 = arith.constant 0 : index
    %c0_16 = arith.constant 0 : index
    %11 = vector.load %arg9[%c0_15, %c0_16] : memref<1x32xf32, #tpu.memory_space<vmem>>, vector<1x32xf32>
    %c0_17 = arith.constant 0 : index
    %c0_18 = arith.constant 0 : index
    %12 = vector.load %arg10[%c0_17, %c0_18] : memref<1x32xf32, #tpu.memory_space<vmem>>, vector<1x32xf32>
    %c0_19 = arith.constant 0 : index
    %c0_20 = arith.constant 0 : index
    %13 = vector.load %arg11[%c0_19, %c0_20] : memref<1x32xf32, #tpu.memory_space<vmem>>, vector<1x32xf32>
    %cst = arith.constant dense<0.000000e+00> : vector<56x32xf32>
    %14 = tpu.matmul %5, %8, %cst {dimension_numbers = #tpu.dot_dimension_numbers<[1], [0], [0], [1], [0, 0, 1, 1], [], []>} : vector<56x32xbf16>, vector<32x32xbf16>, vector<56x32xf32> -> vector<56x32xf32>
    %15 = vector.broadcast %9 : vector<1x32xf32> to vector<56x32xf32>
    %16 = arith.addf %14, %15 : vector<56x32xf32>
    %cst_21 = arith.constant dense<0.000000e+00> : vector<56x32xf32>
    %17 = tpu.matmul %1, %6, %cst_21 {dimension_numbers = #tpu.dot_dimension_numbers<[1], [0], [0], [1], [0, 0, 1, 1], [], []>} : vector<56x32xbf16>, vector<32x32xbf16>, vector<56x32xf32> -> vector<56x32xf32>
    %cst_22 = arith.constant dense<0.000000e+00> : vector<56x32xf32>
    %18 = tpu.matmul %3, %7, %cst_22 {dimension_numbers = #tpu.dot_dimension_numbers<[1], [0], [0], [1], [0, 0, 1, 1], [], []>} : vector<56x32xbf16>, vector<32x32xbf16>, vector<56x32xf32> -> vector<56x32xf32>
    %19 = arith.addf %17, %18 : vector<56x32xf32>
    %20 = arith.addf %19, %16 : vector<56x32xf32>
    %cst_23 = arith.constant 0.000000e+00 : f32
    %21 = vector.broadcast %cst_23 : f32 to vector<56x32xf32>
    %22 = arith.maximumf %20, %21 : vector<56x32xf32>
    %23 = arith.truncf %22 : vector<56x32xf32> to vector<56x32xbf16>
    %cst_24 = arith.constant dense<0.000000e+00> : vector<56x32xf32>
    %24 = tpu.matmul %23, %10, %cst_24 {dimension_numbers = #tpu.dot_dimension_numbers<[1], [0], [0], [1], [0, 0, 1, 1], [], []>} : vector<56x32xbf16>, vector<32x32xbf16>, vector<56x32xf32> -> vector<56x32xf32>
    %25 = vector.broadcast %11 : vector<1x32xf32> to vector<56x32xf32>
    %26 = arith.addf %24, %25 : vector<56x32xf32>
    %cst_25 = arith.constant 0.000000e+00 : f32
    %27 = vector.broadcast %cst_25 : f32 to vector<56x32xf32>
    %28 = arith.maximumf %26, %27 : vector<56x32xf32>
    %cst_26 = arith.constant dense<0.000000e+00> : vector<56xf32>
    %29 = vector.multi_reduction <add>, %28, %cst_26 [1] : vector<56x32xf32> to vector<56xf32>
    %30 = vector.shape_cast %29 : vector<56xf32> to vector<56x1xf32>
    %cst_27 = arith.constant 3.200000e+01 : f32
    %31 = vector.broadcast %cst_27 : f32 to vector<56x1xf32>
    %32 = arith.divf %30, %31 : vector<56x1xf32>
    %33 = vector.broadcast %32 : vector<56x1xf32> to vector<56x32xf32>
    %34 = arith.subf %28, %33 : vector<56x32xf32>
    %35 = arith.mulf %34, %34 : vector<56x32xf32>
    %cst_28 = arith.constant dense<0.000000e+00> : vector<56xf32>
    %36 = vector.multi_reduction <add>, %35, %cst_28 [1] : vector<56x32xf32> to vector<56xf32>
    %37 = vector.shape_cast %36 : vector<56xf32> to vector<56x1xf32>
    %cst_29 = arith.constant 3.200000e+01 : f32
    %38 = vector.broadcast %cst_29 : f32 to vector<56x1xf32>
    %39 = arith.divf %37, %38 : vector<56x1xf32>
    %40 = vector.broadcast %32 : vector<56x1xf32> to vector<56x32xf32>
    %41 = arith.subf %28, %40 : vector<56x32xf32>
    %cst_30 = arith.constant 9.99999974E-6 : f32
    %42 = vector.broadcast %cst_30 : f32 to vector<56x1xf32>
    %43 = arith.addf %39, %42 : vector<56x1xf32>
    %44 = math.rsqrt %43 : vector<56x1xf32>
    %45 = vector.broadcast %44 : vector<56x1xf32> to vector<56x32xf32>
    %46 = arith.mulf %41, %45 : vector<56x32xf32>
    %47 = vector.broadcast %12 : vector<1x32xf32> to vector<56x32xf32>
    %48 = arith.mulf %46, %47 : vector<56x32xf32>
    %49 = vector.broadcast %13 : vector<1x32xf32> to vector<56x32xf32>
    %50 = arith.addf %48, %49 : vector<56x32xf32>
    %c0_31 = arith.constant 0 : index
    %c0_32 = arith.constant 0 : index
    %51 = vector.load %arg12[%c0_31, %c0_32] : memref<56x32xf32, #tpu.memory_space<vmem>>, vector<56x32xf32>
    tpu.vector_store %arg12[%c0_31, %c0_32], %50 {strides = array<i32>} : memref<56x32xf32, #tpu.memory_space<vmem>>, vector<56x32xf32>,
    %cst_33 = arith.constant dense<0.000000e+00> : vector<56x32xf32>
    %52 = tpu.matmul %3, %6, %cst_33 {dimension_numbers = #tpu.dot_dimension_numbers<[1], [0], [0], [1], [0, 0, 1, 1], [], []>} : vector<56x32xbf16>, vector<32x32xbf16>, vector<56x32xf32> -> vector<56x32xf32>
    %cst_34 = arith.constant dense<0.000000e+00> : vector<56x32xf32>
    %53 = tpu.matmul %1, %7, %cst_34 {dimension_numbers = #tpu.dot_dimension_numbers<[1], [0], [0], [1], [0, 0, 1, 1], [], []>} : vector<56x32xbf16>, vector<32x32xbf16>, vector<56x32xf32> -> vector<56x32xf32>
    %54 = arith.addf %52, %53 : vector<56x32xf32>
    %55 = arith.addf %54, %16 : vector<56x32xf32>
    %cst_35 = arith.constant 0.000000e+00 : f32
    %56 = vector.broadcast %cst_35 : f32 to vector<56x32xf32>
    %57 = arith.maximumf %55, %56 : vector<56x32xf32>
    %58 = arith.truncf %57 : vector<56x32xf32> to vector<56x32xbf16>
    %cst_36 = arith.constant dense<0.000000e+00> : vector<56x32xf32>
    %59 = tpu.matmul %58, %10, %cst_36 {dimension_numbers = #tpu.dot_dimension_numbers<[1], [0], [0], [1], [0, 0, 1, 1], [], []>} : vector<56x32xbf16>, vector<32x32xbf16>, vector<56x32xf32> -> vector<56x32xf32>
    %60 = vector.broadcast %11 : vector<1x32xf32> to vector<56x32xf32>
    %61 = arith.addf %59, %60 : vector<56x32xf32>
    %cst_37 = arith.constant 0.000000e+00 : f32
    %62 = vector.broadcast %cst_37 : f32 to vector<56x32xf32>
    %63 = arith.maximumf %61, %62 : vector<56x32xf32>
    %cst_38 = arith.constant dense<0.000000e+00> : vector<56xf32>
    %64 = vector.multi_reduction <add>, %63, %cst_38 [1] : vector<56x32xf32> to vector<56xf32>
    %65 = vector.shape_cast %64 : vector<56xf32> to vector<56x1xf32>
    %cst_39 = arith.constant 3.200000e+01 : f32
    %66 = vector.broadcast %cst_39 : f32 to vector<56x1xf32>
    %67 = arith.divf %65, %66 : vector<56x1xf32>
    %68 = vector.broadcast %67 : vector<56x1xf32> to vector<56x32xf32>
    %69 = arith.subf %63, %68 : vector<56x32xf32>
    %70 = arith.mulf %69, %69 : vector<56x32xf32>
    %cst_40 = arith.constant dense<0.000000e+00> : vector<56xf32>
    %71 = vector.multi_reduction <add>, %70, %cst_40 [1] : vector<56x32xf32> to vector<56xf32>
    %72 = vector.shape_cast %71 : vector<56xf32> to vector<56x1xf32>
    %cst_41 = arith.constant 3.200000e+01 : f32
    %73 = vector.broadcast %cst_41 : f32 to vector<56x1xf32>
    %74 = arith.divf %72, %73 : vector<56x1xf32>
    %75 = vector.broadcast %67 : vector<56x1xf32> to vector<56x32xf32>
    %76 = arith.subf %63, %75 : vector<56x32xf32>
    %cst_42 = arith.constant 9.99999974E-6 : f32
    %77 = vector.broadcast %cst_42 : f32 to vector<56x1xf32>
    %78 = arith.addf %74, %77 : vector<56x1xf32>
    %79 = math.rsqrt %78 : vector<56x1xf32>
    %80 = vector.broadcast %79 : vector<56x1xf32> to vector<56x32xf32>
    %81 = arith.mulf %76, %80 : vector<56x32xf32>
    %82 = vector.broadcast %12 : vector<1x32xf32> to vector<56x32xf32>
    %83 = arith.mulf %81, %82 : vector<56x32xf32>
    %84 = vector.broadcast %13 : vector<1x32xf32> to vector<56x32xf32>
    %85 = arith.addf %83, %84 : vector<56x32xf32>
    %86 = arith.addf %85, %4 : vector<56x32xf32>
    %c0_43 = arith.constant 0 : index
    %c0_44 = arith.constant 0 : index
    %87 = vector.load %arg13[%c0_43, %c0_44] : memref<56x32xf32, #tpu.memory_space<vmem>>, vector<56x32xf32>
    tpu.vector_store %arg13[%c0_43, %c0_44], %86 {strides = array<i32>} : memref<56x32xf32, #tpu.memory_space<vmem>>, vector<56x32xf32>,
    return
  }
  func.func @transform_0(%arg0: i32) -> (i32, i32) {
    %c0_i32 = arith.constant 0 : i32
    %c0_i32_0 = arith.constant 0 : i32
    return %arg0, %c0_i32 : i32, i32
  }
  func.func @transform_1(%arg0: i32) -> (i32, i32) {
    %c0_i32 = arith.constant 0 : i32
    %c0_i32_0 = arith.constant 0 : i32
    return %arg0, %c0_i32 : i32, i32
  }
  func.func @transform_2(%arg0: i32) -> (i32, i32) {
    %c0_i32 = arith.constant 0 : i32
    %c0_i32_0 = arith.constant 0 : i32
    return %arg0, %c0_i32 : i32, i32
  }
  func.func @transform_3(%arg0: i32) -> (i32, i32) {
    %c0_i32 = arith.constant 0 : i32
    %c0_i32_0 = arith.constant 0 : i32
    %c0_i32_1 = arith.constant 0 : i32
    return %c0_i32, %c0_i32_0 : i32, i32
  }
  func.func @transform_4(%arg0: i32) -> (i32, i32) {
    %c0_i32 = arith.constant 0 : i32
    %c0_i32_0 = arith.constant 0 : i32
    %c0_i32_1 = arith.constant 0 : i32
    return %c0_i32, %c0_i32_0 : i32, i32
  }
  func.func @transform_5(%arg0: i32) -> (i32, i32) {
    %c0_i32 = arith.constant 0 : i32
    %c0_i32_0 = arith.constant 0 : i32
    %c0_i32_1 = arith.constant 0 : i32
    return %c0_i32, %c0_i32_0 : i32, i32
  }
  func.func @transform_6(%arg0: i32) -> (i32, i32) {
    %c0_i32 = arith.constant 0 : i32
    %c0_i32_0 = arith.constant 0 : i32
    %c0_i32_1 = arith.constant 0 : i32
    return %c0_i32, %c0_i32_0 : i32, i32
  }
  func.func @transform_7(%arg0: i32) -> (i32, i32) {
    %c0_i32 = arith.constant 0 : i32
    %c0_i32_0 = arith.constant 0 : i32
    %c0_i32_1 = arith.constant 0 : i32
    return %c0_i32, %c0_i32_0 : i32, i32
  }
  func.func @transform_8(%arg0: i32) -> (i32, i32) {
    %c0_i32 = arith.constant 0 : i32
    %c0_i32_0 = arith.constant 0 : i32
    %c0_i32_1 = arith.constant 0 : i32
    return %c0_i32, %c0_i32_0 : i32, i32
  }
  func.func @transform_9(%arg0: i32) -> (i32, i32) {
    %c0_i32 = arith.constant 0 : i32
    %c0_i32_0 = arith.constant 0 : i32
    %c0_i32_1 = arith.constant 0 : i32
    return %c0_i32, %c0_i32_0 : i32, i32
  }
  func.func @transform_10(%arg0: i32) -> (i32, i32) {
    %c0_i32 = arith.constant 0 : i32
    %c0_i32_0 = arith.constant 0 : i32
    %c0_i32_1 = arith.constant 0 : i32
    return %c0_i32, %c0_i32_0 : i32, i32
  }
  func.func @transform_11(%arg0: i32) -> (i32, i32) {
    %c0_i32 = arith.constant 0 : i32
    %c0_i32_0 = arith.constant 0 : i32
    return %arg0, %c0_i32 : i32, i32
  }
  func.func @transform_12(%arg0: i32) -> (i32, i32) {
    %c0_i32 = arith.constant 0 : i32
    %c0_i32_0 = arith.constant 0 : i32
    return %arg0, %c0_i32 : i32, i32
  }
}

module attributes {stable_mosaic.version = 11 : i64} {
  func.func @_node_block_kernel(%arg0: i32, %arg1: memref<24x32xf32, #tpu.memory_space<vmem>>, %arg2: memref<24x32xf32, #tpu.memory_space<vmem>>, %arg3: memref<32x32xbf16, #tpu.memory_space<vmem>>, %arg4: memref<32x32xbf16, #tpu.memory_space<vmem>>, %arg5: memref<1x32xf32, #tpu.memory_space<vmem>>, %arg6: memref<32x32xbf16, #tpu.memory_space<vmem>>, %arg7: memref<1x32xf32, #tpu.memory_space<vmem>>, %arg8: memref<1x32xf32, #tpu.memory_space<vmem>>, %arg9: memref<1x32xf32, #tpu.memory_space<vmem>>, %arg10: memref<24x32xf32, #tpu.memory_space<vmem>>) attributes {dimension_semantics = [#tpu.dimension_semantics<parallel>], iteration_bounds = array<i64: 1>, scalar_prefetch = 0 : i64, scratch_operands = 0 : i64, tpu.core_type = #tpu.core_type<tc>, window_params = [{transform_indices = @transform_0, window_bounds = array<i64: 24, 32>}, {transform_indices = @transform_1, window_bounds = array<i64: 24, 32>}, {pipeline_mode = #tpu.pipeline_mode<synchronous>, transform_indices = @transform_2, window_bounds = array<i64: 32, 32>}, {pipeline_mode = #tpu.pipeline_mode<synchronous>, transform_indices = @transform_3, window_bounds = array<i64: 32, 32>}, {pipeline_mode = #tpu.pipeline_mode<synchronous>, transform_indices = @transform_4, window_bounds = array<i64: 1, 32>}, {pipeline_mode = #tpu.pipeline_mode<synchronous>, transform_indices = @transform_5, window_bounds = array<i64: 32, 32>}, {pipeline_mode = #tpu.pipeline_mode<synchronous>, transform_indices = @transform_6, window_bounds = array<i64: 1, 32>}, {pipeline_mode = #tpu.pipeline_mode<synchronous>, transform_indices = @transform_7, window_bounds = array<i64: 1, 32>}, {pipeline_mode = #tpu.pipeline_mode<synchronous>, transform_indices = @transform_8, window_bounds = array<i64: 1, 32>}, {transform_indices = @transform_9, window_bounds = array<i64: 24, 32>}]} {
    %c0 = arith.constant 0 : index
    %c0_0 = arith.constant 0 : index
    %0 = vector.load %arg1[%c0, %c0_0] : memref<24x32xf32, #tpu.memory_space<vmem>>, vector<24x32xf32>
    %1 = arith.truncf %0 : vector<24x32xf32> to vector<24x32xbf16>
    %c0_1 = arith.constant 0 : index
    %c0_2 = arith.constant 0 : index
    %2 = vector.load %arg2[%c0_1, %c0_2] : memref<24x32xf32, #tpu.memory_space<vmem>>, vector<24x32xf32>
    %3 = arith.truncf %2 : vector<24x32xf32> to vector<24x32xbf16>
    %c0_3 = arith.constant 0 : index
    %c0_4 = arith.constant 0 : index
    %4 = vector.load %arg3[%c0_3, %c0_4] : memref<32x32xbf16, #tpu.memory_space<vmem>>, vector<32x32xbf16>
    %cst = arith.constant dense<0.000000e+00> : vector<24x32xf32>
    %5 = tpu.matmul %1, %4, %cst {dimension_numbers = #tpu.dot_dimension_numbers<[1], [0], [0], [1], [0, 0, 1, 1], [], []>} : vector<24x32xbf16>, vector<32x32xbf16>, vector<24x32xf32> -> vector<24x32xf32>
    %c0_5 = arith.constant 0 : index
    %c0_6 = arith.constant 0 : index
    %6 = vector.load %arg4[%c0_5, %c0_6] : memref<32x32xbf16, #tpu.memory_space<vmem>>, vector<32x32xbf16>
    %cst_7 = arith.constant dense<0.000000e+00> : vector<24x32xf32>
    %7 = tpu.matmul %3, %6, %cst_7 {dimension_numbers = #tpu.dot_dimension_numbers<[1], [0], [0], [1], [0, 0, 1, 1], [], []>} : vector<24x32xbf16>, vector<32x32xbf16>, vector<24x32xf32> -> vector<24x32xf32>
    %8 = arith.addf %5, %7 : vector<24x32xf32>
    %c0_8 = arith.constant 0 : index
    %c0_9 = arith.constant 0 : index
    %9 = vector.load %arg5[%c0_8, %c0_9] : memref<1x32xf32, #tpu.memory_space<vmem>>, vector<1x32xf32>
    %10 = vector.broadcast %9 : vector<1x32xf32> to vector<24x32xf32>
    %11 = arith.addf %8, %10 : vector<24x32xf32>
    %c0_10 = arith.constant 0 : index
    %c0_11 = arith.constant 0 : index
    %12 = vector.load %arg6[%c0_10, %c0_11] : memref<32x32xbf16, #tpu.memory_space<vmem>>, vector<32x32xbf16>
    %c0_12 = arith.constant 0 : index
    %c0_13 = arith.constant 0 : index
    %13 = vector.load %arg7[%c0_12, %c0_13] : memref<1x32xf32, #tpu.memory_space<vmem>>, vector<1x32xf32>
    %c0_14 = arith.constant 0 : index
    %c0_15 = arith.constant 0 : index
    %14 = vector.load %arg8[%c0_14, %c0_15] : memref<1x32xf32, #tpu.memory_space<vmem>>, vector<1x32xf32>
    %c0_16 = arith.constant 0 : index
    %c0_17 = arith.constant 0 : index
    %15 = vector.load %arg9[%c0_16, %c0_17] : memref<1x32xf32, #tpu.memory_space<vmem>>, vector<1x32xf32>
    %cst_18 = arith.constant 0.000000e+00 : f32
    %16 = vector.broadcast %cst_18 : f32 to vector<24x32xf32>
    %17 = arith.maximumf %11, %16 : vector<24x32xf32>
    %18 = arith.truncf %17 : vector<24x32xf32> to vector<24x32xbf16>
    %cst_19 = arith.constant dense<0.000000e+00> : vector<24x32xf32>
    %19 = tpu.matmul %18, %12, %cst_19 {dimension_numbers = #tpu.dot_dimension_numbers<[1], [0], [0], [1], [0, 0, 1, 1], [], []>} : vector<24x32xbf16>, vector<32x32xbf16>, vector<24x32xf32> -> vector<24x32xf32>
    %20 = vector.broadcast %13 : vector<1x32xf32> to vector<24x32xf32>
    %21 = arith.addf %19, %20 : vector<24x32xf32>
    %cst_20 = arith.constant 0.000000e+00 : f32
    %22 = vector.broadcast %cst_20 : f32 to vector<24x32xf32>
    %23 = arith.maximumf %21, %22 : vector<24x32xf32>
    %cst_21 = arith.constant dense<0.000000e+00> : vector<24xf32>
    %24 = vector.multi_reduction <add>, %23, %cst_21 [1] : vector<24x32xf32> to vector<24xf32>
    %25 = vector.shape_cast %24 : vector<24xf32> to vector<24x1xf32>
    %cst_22 = arith.constant 3.200000e+01 : f32
    %26 = vector.broadcast %cst_22 : f32 to vector<24x1xf32>
    %27 = arith.divf %25, %26 : vector<24x1xf32>
    %28 = vector.broadcast %27 : vector<24x1xf32> to vector<24x32xf32>
    %29 = arith.subf %23, %28 : vector<24x32xf32>
    %30 = arith.mulf %29, %29 : vector<24x32xf32>
    %cst_23 = arith.constant dense<0.000000e+00> : vector<24xf32>
    %31 = vector.multi_reduction <add>, %30, %cst_23 [1] : vector<24x32xf32> to vector<24xf32>
    %32 = vector.shape_cast %31 : vector<24xf32> to vector<24x1xf32>
    %cst_24 = arith.constant 3.200000e+01 : f32
    %33 = vector.broadcast %cst_24 : f32 to vector<24x1xf32>
    %34 = arith.divf %32, %33 : vector<24x1xf32>
    %35 = vector.broadcast %27 : vector<24x1xf32> to vector<24x32xf32>
    %36 = arith.subf %23, %35 : vector<24x32xf32>
    %cst_25 = arith.constant 9.99999974E-6 : f32
    %37 = vector.broadcast %cst_25 : f32 to vector<24x1xf32>
    %38 = arith.addf %34, %37 : vector<24x1xf32>
    %39 = math.rsqrt %38 : vector<24x1xf32>
    %40 = vector.broadcast %39 : vector<24x1xf32> to vector<24x32xf32>
    %41 = arith.mulf %36, %40 : vector<24x32xf32>
    %42 = vector.broadcast %14 : vector<1x32xf32> to vector<24x32xf32>
    %43 = arith.mulf %41, %42 : vector<24x32xf32>
    %44 = vector.broadcast %15 : vector<1x32xf32> to vector<24x32xf32>
    %45 = arith.addf %43, %44 : vector<24x32xf32>
    %46 = arith.addf %45, %2 : vector<24x32xf32>
    %c0_26 = arith.constant 0 : index
    %c0_27 = arith.constant 0 : index
    %47 = vector.load %arg10[%c0_26, %c0_27] : memref<24x32xf32, #tpu.memory_space<vmem>>, vector<24x32xf32>
    tpu.vector_store %arg10[%c0_26, %c0_27], %46 {strides = array<i32>} : memref<24x32xf32, #tpu.memory_space<vmem>>, vector<24x32xf32>,
    return
  }
  func.func @transform_0(%arg0: i32) -> (i32, i32) {
    %c0_i32 = arith.constant 0 : i32
    %c0_i32_0 = arith.constant 0 : i32
    return %arg0, %c0_i32 : i32, i32
  }
  func.func @transform_1(%arg0: i32) -> (i32, i32) {
    %c0_i32 = arith.constant 0 : i32
    %c0_i32_0 = arith.constant 0 : i32
    return %arg0, %c0_i32 : i32, i32
  }
  func.func @transform_2(%arg0: i32) -> (i32, i32) {
    %c0_i32 = arith.constant 0 : i32
    %c0_i32_0 = arith.constant 0 : i32
    %c0_i32_1 = arith.constant 0 : i32
    return %c0_i32, %c0_i32_0 : i32, i32
  }
  func.func @transform_3(%arg0: i32) -> (i32, i32) {
    %c0_i32 = arith.constant 0 : i32
    %c0_i32_0 = arith.constant 0 : i32
    %c0_i32_1 = arith.constant 0 : i32
    return %c0_i32, %c0_i32_0 : i32, i32
  }
  func.func @transform_4(%arg0: i32) -> (i32, i32) {
    %c0_i32 = arith.constant 0 : i32
    %c0_i32_0 = arith.constant 0 : i32
    %c0_i32_1 = arith.constant 0 : i32
    return %c0_i32, %c0_i32_0 : i32, i32
  }
  func.func @transform_5(%arg0: i32) -> (i32, i32) {
    %c0_i32 = arith.constant 0 : i32
    %c0_i32_0 = arith.constant 0 : i32
    %c0_i32_1 = arith.constant 0 : i32
    return %c0_i32, %c0_i32_0 : i32, i32
  }
  func.func @transform_6(%arg0: i32) -> (i32, i32) {
    %c0_i32 = arith.constant 0 : i32
    %c0_i32_0 = arith.constant 0 : i32
    %c0_i32_1 = arith.constant 0 : i32
    return %c0_i32, %c0_i32_0 : i32, i32
  }
  func.func @transform_7(%arg0: i32) -> (i32, i32) {
    %c0_i32 = arith.constant 0 : i32
    %c0_i32_0 = arith.constant 0 : i32
    %c0_i32_1 = arith.constant 0 : i32
    return %c0_i32, %c0_i32_0 : i32, i32
  }
  func.func @transform_8(%arg0: i32) -> (i32, i32) {
    %c0_i32 = arith.constant 0 : i32
    %c0_i32_0 = arith.constant 0 : i32
    %c0_i32_1 = arith.constant 0 : i32
    return %c0_i32, %c0_i32_0 : i32, i32
  }
  func.func @transform_9(%arg0: i32) -> (i32, i32) {
    %c0_i32 = arith.constant 0 : i32
    %c0_i32_0 = arith.constant 0 : i32
    return %arg0, %c0_i32 : i32, i32
  }
}

module attributes {stable_mosaic.version = 11 : i64} {
  func.func @_decode_kernel(%arg0: i32, %arg1: memref<24x32xf32, #tpu.memory_space<vmem>>, %arg2: memref<32x32xbf16, #tpu.memory_space<vmem>>, %arg3: memref<1x32xf32, #tpu.memory_space<vmem>>, %arg4: memref<32x128xbf16, #tpu.memory_space<vmem>>, %arg5: memref<1x128xf32, #tpu.memory_space<vmem>>, %arg6: memref<24x128xf32, #tpu.memory_space<vmem>>) attributes {dimension_semantics = [#tpu.dimension_semantics<parallel>], iteration_bounds = array<i64: 1>, scalar_prefetch = 0 : i64, scratch_operands = 0 : i64, tpu.core_type = #tpu.core_type<tc>, window_params = [{transform_indices = @transform_0, window_bounds = array<i64: 24, 32>}, {pipeline_mode = #tpu.pipeline_mode<synchronous>, transform_indices = @transform_1, window_bounds = array<i64: 32, 32>}, {pipeline_mode = #tpu.pipeline_mode<synchronous>, transform_indices = @transform_2, window_bounds = array<i64: 1, 32>}, {pipeline_mode = #tpu.pipeline_mode<synchronous>, transform_indices = @transform_3, window_bounds = array<i64: 32, 128>}, {pipeline_mode = #tpu.pipeline_mode<synchronous>, transform_indices = @transform_4, window_bounds = array<i64: 1, 128>}, {transform_indices = @transform_5, window_bounds = array<i64: 24, 128>}]} {
    %c0 = arith.constant 0 : index
    %c0_0 = arith.constant 0 : index
    %0 = vector.load %arg1[%c0, %c0_0] : memref<24x32xf32, #tpu.memory_space<vmem>>, vector<24x32xf32>
    %1 = arith.truncf %0 : vector<24x32xf32> to vector<24x32xbf16>
    %c0_1 = arith.constant 0 : index
    %c0_2 = arith.constant 0 : index
    %2 = vector.load %arg2[%c0_1, %c0_2] : memref<32x32xbf16, #tpu.memory_space<vmem>>, vector<32x32xbf16>
    %cst = arith.constant dense<0.000000e+00> : vector<24x32xf32>
    %3 = tpu.matmul %1, %2, %cst {dimension_numbers = #tpu.dot_dimension_numbers<[1], [0], [0], [1], [0, 0, 1, 1], [], []>} : vector<24x32xbf16>, vector<32x32xbf16>, vector<24x32xf32> -> vector<24x32xf32>
    %c0_3 = arith.constant 0 : index
    %c0_4 = arith.constant 0 : index
    %4 = vector.load %arg3[%c0_3, %c0_4] : memref<1x32xf32, #tpu.memory_space<vmem>>, vector<1x32xf32>
    %5 = vector.broadcast %4 : vector<1x32xf32> to vector<24x32xf32>
    %6 = arith.addf %3, %5 : vector<24x32xf32>
    %cst_5 = arith.constant 0.000000e+00 : f32
    %7 = vector.broadcast %cst_5 : f32 to vector<24x32xf32>
    %8 = arith.maximumf %6, %7 : vector<24x32xf32>
    %9 = arith.truncf %8 : vector<24x32xf32> to vector<24x32xbf16>
    %c0_6 = arith.constant 0 : index
    %c0_7 = arith.constant 0 : index
    %10 = vector.load %arg4[%c0_6, %c0_7] : memref<32x128xbf16, #tpu.memory_space<vmem>>, vector<32x128xbf16>
    %cst_8 = arith.constant dense<0.000000e+00> : vector<24x128xf32>
    %11 = tpu.matmul %9, %10, %cst_8 {dimension_numbers = #tpu.dot_dimension_numbers<[1], [0], [0], [1], [0, 0, 1, 1], [], []>} : vector<24x32xbf16>, vector<32x128xbf16>, vector<24x128xf32> -> vector<24x128xf32>
    %c0_9 = arith.constant 0 : index
    %c0_10 = arith.constant 0 : index
    %12 = vector.load %arg5[%c0_9, %c0_10] : memref<1x128xf32, #tpu.memory_space<vmem>>, vector<1x128xf32>
    %13 = vector.broadcast %12 : vector<1x128xf32> to vector<24x128xf32>
    %14 = arith.addf %11, %13 : vector<24x128xf32>
    %c0_11 = arith.constant 0 : index
    %c0_12 = arith.constant 0 : index
    %15 = vector.load %arg6[%c0_11, %c0_12] : memref<24x128xf32, #tpu.memory_space<vmem>>, vector<24x128xf32>
    tpu.vector_store %arg6[%c0_11, %c0_12], %14 {strides = array<i32>} : memref<24x128xf32, #tpu.memory_space<vmem>>, vector<24x128xf32>,
    return
  }
  func.func @transform_0(%arg0: i32) -> (i32, i32) {
    %c0_i32 = arith.constant 0 : i32
    %c0_i32_0 = arith.constant 0 : i32
    return %arg0, %c0_i32 : i32, i32
  }
  func.func @transform_1(%arg0: i32) -> (i32, i32) {
    %c0_i32 = arith.constant 0 : i32
    %c0_i32_0 = arith.constant 0 : i32
    %c0_i32_1 = arith.constant 0 : i32
    return %c0_i32, %c0_i32_0 : i32, i32
  }
  func.func @transform_2(%arg0: i32) -> (i32, i32) {
    %c0_i32 = arith.constant 0 : i32
    %c0_i32_0 = arith.constant 0 : i32
    %c0_i32_1 = arith.constant 0 : i32
    return %c0_i32, %c0_i32_0 : i32, i32
  }
  func.func @transform_3(%arg0: i32) -> (i32, i32) {
    %c0_i32 = arith.constant 0 : i32
    %c0_i32_0 = arith.constant 0 : i32
    %c0_i32_1 = arith.constant 0 : i32
    return %c0_i32, %c0_i32_0 : i32, i32
  }
  func.func @transform_4(%arg0: i32) -> (i32, i32) {
    %c0_i32 = arith.constant 0 : i32
    %c0_i32_0 = arith.constant 0 : i32
    %c0_i32_1 = arith.constant 0 : i32
    return %c0_i32, %c0_i32_0 : i32, i32
  }
  func.func @transform_5(%arg0: i32) -> (i32, i32) {
    %c0_i32 = arith.constant 0 : i32
    %c0_i32_0 = arith.constant 0 : i32
    return %arg0, %c0_i32 : i32, i32
  }
}

module attributes {stable_mosaic.version = 11 : i64} {
  func.func @_edge_block_kernel(%arg0: i32, %arg1: memref<56x32xf32, #tpu.memory_space<vmem>>, %arg2: memref<56x32xf32, #tpu.memory_space<vmem>>, %arg3: memref<56x32xf32, #tpu.memory_space<vmem>>, %arg4: memref<32x32xbf16, #tpu.memory_space<vmem>>, %arg5: memref<32x32xbf16, #tpu.memory_space<vmem>>, %arg6: memref<32x32xbf16, #tpu.memory_space<vmem>>, %arg7: memref<1x32xf32, #tpu.memory_space<vmem>>, %arg8: memref<32x32xbf16, #tpu.memory_space<vmem>>, %arg9: memref<1x32xf32, #tpu.memory_space<vmem>>, %arg10: memref<1x32xf32, #tpu.memory_space<vmem>>, %arg11: memref<1x32xf32, #tpu.memory_space<vmem>>, %arg12: memref<56x32xf32, #tpu.memory_space<vmem>>, %arg13: memref<56x32xf32, #tpu.memory_space<vmem>>) attributes {dimension_semantics = [#tpu.dimension_semantics<parallel>], iteration_bounds = array<i64: 1>, scalar_prefetch = 0 : i64, scratch_operands = 0 : i64, tpu.core_type = #tpu.core_type<tc>, window_params = [{transform_indices = @transform_0, window_bounds = array<i64: 56, 32>}, {transform_indices = @transform_1, window_bounds = array<i64: 56, 32>}, {transform_indices = @transform_2, window_bounds = array<i64: 56, 32>}, {pipeline_mode = #tpu.pipeline_mode<synchronous>, transform_indices = @transform_3, window_bounds = array<i64: 32, 32>}, {pipeline_mode = #tpu.pipeline_mode<synchronous>, transform_indices = @transform_4, window_bounds = array<i64: 32, 32>}, {pipeline_mode = #tpu.pipeline_mode<synchronous>, transform_indices = @transform_5, window_bounds = array<i64: 32, 32>}, {pipeline_mode = #tpu.pipeline_mode<synchronous>, transform_indices = @transform_6, window_bounds = array<i64: 1, 32>}, {pipeline_mode = #tpu.pipeline_mode<synchronous>, transform_indices = @transform_7, window_bounds = array<i64: 32, 32>}, {pipeline_mode = #tpu.pipeline_mode<synchronous>, transform_indices = @transform_8, window_bounds = array<i64: 1, 32>}, {pipeline_mode = #tpu.pipeline_mode<synchronous>, transform_indices = @transform_9, window_bounds = array<i64: 1, 32>}, {pipeline_mode = #tpu.pipeline_mode<synchronous>, transform_indices = @transform_10, window_bounds = array<i64: 1, 32>}, {transform_indices = @transform_11, window_bounds = array<i64: 56, 32>}, {transform_indices = @transform_12, window_bounds = array<i64: 56, 32>}]} {
    %c0 = arith.constant 0 : index
    %c0_0 = arith.constant 0 : index
    %0 = vector.load %arg1[%c0, %c0_0] : memref<56x32xf32, #tpu.memory_space<vmem>>, vector<56x32xf32>
    %1 = arith.truncf %0 : vector<56x32xf32> to vector<56x32xbf16>
    %c0_1 = arith.constant 0 : index
    %c0_2 = arith.constant 0 : index
    %2 = vector.load %arg2[%c0_1, %c0_2] : memref<56x32xf32, #tpu.memory_space<vmem>>, vector<56x32xf32>
    %3 = arith.truncf %2 : vector<56x32xf32> to vector<56x32xbf16>
    %c0_3 = arith.constant 0 : index
    %c0_4 = arith.constant 0 : index
    %4 = vector.load %arg3[%c0_3, %c0_4] : memref<56x32xf32, #tpu.memory_space<vmem>>, vector<56x32xf32>
    %5 = arith.truncf %4 : vector<56x32xf32> to vector<56x32xbf16>
    %c0_5 = arith.constant 0 : index
    %c0_6 = arith.constant 0 : index
    %6 = vector.load %arg4[%c0_5, %c0_6] : memref<32x32xbf16, #tpu.memory_space<vmem>>, vector<32x32xbf16>
    %c0_7 = arith.constant 0 : index
    %c0_8 = arith.constant 0 : index
    %7 = vector.load %arg5[%c0_7, %c0_8] : memref<32x32xbf16, #tpu.memory_space<vmem>>, vector<32x32xbf16>
    %c0_9 = arith.constant 0 : index
    %c0_10 = arith.constant 0 : index
    %8 = vector.load %arg6[%c0_9, %c0_10] : memref<32x32xbf16, #tpu.memory_space<vmem>>, vector<32x32xbf16>
    %c0_11 = arith.constant 0 : index
    %c0_12 = arith.constant 0 : index
    %9 = vector.load %arg7[%c0_11, %c0_12] : memref<1x32xf32, #tpu.memory_space<vmem>>, vector<1x32xf32>
    %c0_13 = arith.constant 0 : index
    %c0_14 = arith.constant 0 : index
    %10 = vector.load %arg8[%c0_13, %c0_14] : memref<32x32xbf16, #tpu.memory_space<vmem>>, vector<32x32xbf16>
    %c0_15 = arith.constant 0 : index
    %c0_16 = arith.constant 0 : index
    %11 = vector.load %arg9[%c0_15, %c0_16] : memref<1x32xf32, #tpu.memory_space<vmem>>, vector<1x32xf32>
    %c0_17 = arith.constant 0 : index
    %c0_18 = arith.constant 0 : index
    %12 = vector.load %arg10[%c0_17, %c0_18] : memref<1x32xf32, #tpu.memory_space<vmem>>, vector<1x32xf32>
    %c0_19 = arith.constant 0 : index
    %c0_20 = arith.constant 0 : index
    %13 = vector.load %arg11[%c0_19, %c0_20] : memref<1x32xf32, #tpu.memory_space<vmem>>, vector<1x32xf32>
    %cst = arith.constant dense<0.000000e+00> : vector<56x32xf32>
    %14 = tpu.matmul %5, %8, %cst {dimension_numbers = #tpu.dot_dimension_numbers<[1], [0], [0], [1], [0, 0, 1, 1], [], []>} : vector<56x32xbf16>, vector<32x32xbf16>, vector<56x32xf32> -> vector<56x32xf32>
    %15 = vector.broadcast %9 : vector<1x32xf32> to vector<56x32xf32>
    %16 = arith.addf %14, %15 : vector<56x32xf32>
    %cst_21 = arith.constant dense<0.000000e+00> : vector<56x32xf32>
    %17 = tpu.matmul %1, %6, %cst_21 {dimension_numbers = #tpu.dot_dimension_numbers<[1], [0], [0], [1], [0, 0, 1, 1], [], []>} : vector<56x32xbf16>, vector<32x32xbf16>, vector<56x32xf32> -> vector<56x32xf32>
    %cst_22 = arith.constant dense<0.000000e+00> : vector<56x32xf32>
    %18 = tpu.matmul %3, %7, %cst_22 {dimension_numbers = #tpu.dot_dimension_numbers<[1], [0], [0], [1], [0, 0, 1, 1], [], []>} : vector<56x32xbf16>, vector<32x32xbf16>, vector<56x32xf32> -> vector<56x32xf32>
    %19 = arith.addf %17, %18 : vector<56x32xf32>
    %20 = arith.addf %19, %16 : vector<56x32xf32>
    %cst_23 = arith.constant 0.000000e+00 : f32
    %21 = vector.broadcast %cst_23 : f32 to vector<56x32xf32>
    %22 = arith.maximumf %20, %21 : vector<56x32xf32>
    %23 = arith.truncf %22 : vector<56x32xf32> to vector<56x32xbf16>
    %cst_24 = arith.constant dense<0.000000e+00> : vector<56x32xf32>
    %24 = tpu.matmul %23, %10, %cst_24 {dimension_numbers = #tpu.dot_dimension_numbers<[1], [0], [0], [1], [0, 0, 1, 1], [], []>} : vector<56x32xbf16>, vector<32x32xbf16>, vector<56x32xf32> -> vector<56x32xf32>
    %25 = vector.broadcast %11 : vector<1x32xf32> to vector<56x32xf32>
    %26 = arith.addf %24, %25 : vector<56x32xf32>
    %cst_25 = arith.constant 0.000000e+00 : f32
    %27 = vector.broadcast %cst_25 : f32 to vector<56x32xf32>
    %28 = arith.maximumf %26, %27 : vector<56x32xf32>
    %cst_26 = arith.constant dense<0.000000e+00> : vector<56xf32>
    %29 = vector.multi_reduction <add>, %28, %cst_26 [1] : vector<56x32xf32> to vector<56xf32>
    %30 = vector.shape_cast %29 : vector<56xf32> to vector<56x1xf32>
    %cst_27 = arith.constant 3.200000e+01 : f32
    %31 = vector.broadcast %cst_27 : f32 to vector<56x1xf32>
    %32 = arith.divf %30, %31 : vector<56x1xf32>
    %33 = vector.broadcast %32 : vector<56x1xf32> to vector<56x32xf32>
    %34 = arith.subf %28, %33 : vector<56x32xf32>
    %35 = arith.mulf %34, %34 : vector<56x32xf32>
    %cst_28 = arith.constant dense<0.000000e+00> : vector<56xf32>
    %36 = vector.multi_reduction <add>, %35, %cst_28 [1] : vector<56x32xf32> to vector<56xf32>
    %37 = vector.shape_cast %36 : vector<56xf32> to vector<56x1xf32>
    %cst_29 = arith.constant 3.200000e+01 : f32
    %38 = vector.broadcast %cst_29 : f32 to vector<56x1xf32>
    %39 = arith.divf %37, %38 : vector<56x1xf32>
    %40 = vector.broadcast %32 : vector<56x1xf32> to vector<56x32xf32>
    %41 = arith.subf %28, %40 : vector<56x32xf32>
    %cst_30 = arith.constant 9.99999974E-6 : f32
    %42 = vector.broadcast %cst_30 : f32 to vector<56x1xf32>
    %43 = arith.addf %39, %42 : vector<56x1xf32>
    %44 = math.rsqrt %43 : vector<56x1xf32>
    %45 = vector.broadcast %44 : vector<56x1xf32> to vector<56x32xf32>
    %46 = arith.mulf %41, %45 : vector<56x32xf32>
    %47 = vector.broadcast %12 : vector<1x32xf32> to vector<56x32xf32>
    %48 = arith.mulf %46, %47 : vector<56x32xf32>
    %49 = vector.broadcast %13 : vector<1x32xf32> to vector<56x32xf32>
    %50 = arith.addf %48, %49 : vector<56x32xf32>
    %c0_31 = arith.constant 0 : index
    %c0_32 = arith.constant 0 : index
    %51 = vector.load %arg12[%c0_31, %c0_32] : memref<56x32xf32, #tpu.memory_space<vmem>>, vector<56x32xf32>
    tpu.vector_store %arg12[%c0_31, %c0_32], %50 {strides = array<i32>} : memref<56x32xf32, #tpu.memory_space<vmem>>, vector<56x32xf32>,
    %cst_33 = arith.constant dense<0.000000e+00> : vector<56x32xf32>
    %52 = tpu.matmul %3, %6, %cst_33 {dimension_numbers = #tpu.dot_dimension_numbers<[1], [0], [0], [1], [0, 0, 1, 1], [], []>} : vector<56x32xbf16>, vector<32x32xbf16>, vector<56x32xf32> -> vector<56x32xf32>
    %cst_34 = arith.constant dense<0.000000e+00> : vector<56x32xf32>
    %53 = tpu.matmul %1, %7, %cst_34 {dimension_numbers = #tpu.dot_dimension_numbers<[1], [0], [0], [1], [0, 0, 1, 1], [], []>} : vector<56x32xbf16>, vector<32x32xbf16>, vector<56x32xf32> -> vector<56x32xf32>
    %54 = arith.addf %52, %53 : vector<56x32xf32>
    %55 = arith.addf %54, %16 : vector<56x32xf32>
    %cst_35 = arith.constant 0.000000e+00 : f32
    %56 = vector.broadcast %cst_35 : f32 to vector<56x32xf32>
    %57 = arith.maximumf %55, %56 : vector<56x32xf32>
    %58 = arith.truncf %57 : vector<56x32xf32> to vector<56x32xbf16>
    %cst_36 = arith.constant dense<0.000000e+00> : vector<56x32xf32>
    %59 = tpu.matmul %58, %10, %cst_36 {dimension_numbers = #tpu.dot_dimension_numbers<[1], [0], [0], [1], [0, 0, 1, 1], [], []>} : vector<56x32xbf16>, vector<32x32xbf16>, vector<56x32xf32> -> vector<56x32xf32>
    %60 = vector.broadcast %11 : vector<1x32xf32> to vector<56x32xf32>
    %61 = arith.addf %59, %60 : vector<56x32xf32>
    %cst_37 = arith.constant 0.000000e+00 : f32
    %62 = vector.broadcast %cst_37 : f32 to vector<56x32xf32>
    %63 = arith.maximumf %61, %62 : vector<56x32xf32>
    %cst_38 = arith.constant dense<0.000000e+00> : vector<56xf32>
    %64 = vector.multi_reduction <add>, %63, %cst_38 [1] : vector<56x32xf32> to vector<56xf32>
    %65 = vector.shape_cast %64 : vector<56xf32> to vector<56x1xf32>
    %cst_39 = arith.constant 3.200000e+01 : f32
    %66 = vector.broadcast %cst_39 : f32 to vector<56x1xf32>
    %67 = arith.divf %65, %66 : vector<56x1xf32>
    %68 = vector.broadcast %67 : vector<56x1xf32> to vector<56x32xf32>
    %69 = arith.subf %63, %68 : vector<56x32xf32>
    %70 = arith.mulf %69, %69 : vector<56x32xf32>
    %cst_40 = arith.constant dense<0.000000e+00> : vector<56xf32>
    %71 = vector.multi_reduction <add>, %70, %cst_40 [1] : vector<56x32xf32> to vector<56xf32>
    %72 = vector.shape_cast %71 : vector<56xf32> to vector<56x1xf32>
    %cst_41 = arith.constant 3.200000e+01 : f32
    %73 = vector.broadcast %cst_41 : f32 to vector<56x1xf32>
    %74 = arith.divf %72, %73 : vector<56x1xf32>
    %75 = vector.broadcast %67 : vector<56x1xf32> to vector<56x32xf32>
    %76 = arith.subf %63, %75 : vector<56x32xf32>
    %cst_42 = arith.constant 9.99999974E-6 : f32
    %77 = vector.broadcast %cst_42 : f32 to vector<56x1xf32>
    %78 = arith.addf %74, %77 : vector<56x1xf32>
    %79 = math.rsqrt %78 : vector<56x1xf32>
    %80 = vector.broadcast %79 : vector<56x1xf32> to vector<56x32xf32>
    %81 = arith.mulf %76, %80 : vector<56x32xf32>
    %82 = vector.broadcast %12 : vector<1x32xf32> to vector<56x32xf32>
    %83 = arith.mulf %81, %82 : vector<56x32xf32>
    %84 = vector.broadcast %13 : vector<1x32xf32> to vector<56x32xf32>
    %85 = arith.addf %83, %84 : vector<56x32xf32>
    %86 = arith.addf %85, %4 : vector<56x32xf32>
    %c0_43 = arith.constant 0 : index
    %c0_44 = arith.constant 0 : index
    %87 = vector.load %arg13[%c0_43, %c0_44] : memref<56x32xf32, #tpu.memory_space<vmem>>, vector<56x32xf32>
    tpu.vector_store %arg13[%c0_43, %c0_44], %86 {strides = array<i32>} : memref<56x32xf32, #tpu.memory_space<vmem>>, vector<56x32xf32>,
    return
  }
  func.func @transform_0(%arg0: i32) -> (i32, i32) {
    %c0_i32 = arith.constant 0 : i32
    %c0_i32_0 = arith.constant 0 : i32
    return %arg0, %c0_i32 : i32, i32
  }
  func.func @transform_1(%arg0: i32) -> (i32, i32) {
    %c0_i32 = arith.constant 0 : i32
    %c0_i32_0 = arith.constant 0 : i32
    return %arg0, %c0_i32 : i32, i32
  }
  func.func @transform_2(%arg0: i32) -> (i32, i32) {
    %c0_i32 = arith.constant 0 : i32
    %c0_i32_0 = arith.constant 0 : i32
    return %arg0, %c0_i32 : i32, i32
  }
  func.func @transform_3(%arg0: i32) -> (i32, i32) {
    %c0_i32 = arith.constant 0 : i32
    %c0_i32_0 = arith.constant 0 : i32
    %c0_i32_1 = arith.constant 0 : i32
    return %c0_i32, %c0_i32_0 : i32, i32
  }
  func.func @transform_4(%arg0: i32) -> (i32, i32) {
    %c0_i32 = arith.constant 0 : i32
    %c0_i32_0 = arith.constant 0 : i32
    %c0_i32_1 = arith.constant 0 : i32
    return %c0_i32, %c0_i32_0 : i32, i32
  }
  func.func @transform_5(%arg0: i32) -> (i32, i32) {
    %c0_i32 = arith.constant 0 : i32
    %c0_i32_0 = arith.constant 0 : i32
    %c0_i32_1 = arith.constant 0 : i32
    return %c0_i32, %c0_i32_0 : i32, i32
  }
  func.func @transform_6(%arg0: i32) -> (i32, i32) {
    %c0_i32 = arith.constant 0 : i32
    %c0_i32_0 = arith.constant 0 : i32
    %c0_i32_1 = arith.constant 0 : i32
    return %c0_i32, %c0_i32_0 : i32, i32
  }
  func.func @transform_7(%arg0: i32) -> (i32, i32) {
    %c0_i32 = arith.constant 0 : i32
    %c0_i32_0 = arith.constant 0 : i32
    %c0_i32_1 = arith.constant 0 : i32
    return %c0_i32, %c0_i32_0 : i32, i32
  }
  func.func @transform_8(%arg0: i32) -> (i32, i32) {
    %c0_i32 = arith.constant 0 : i32
    %c0_i32_0 = arith.constant 0 : i32
    %c0_i32_1 = arith.constant 0 : i32
    return %c0_i32, %c0_i32_0 : i32, i32
  }
  func.func @transform_9(%arg0: i32) -> (i32, i32) {
    %c0_i32 = arith.constant 0 : i32
    %c0_i32_0 = arith.constant 0 : i32
    %c0_i32_1 = arith.constant 0 : i32
    return %c0_i32, %c0_i32_0 : i32, i32
  }
  func.func @transform_10(%arg0: i32) -> (i32, i32) {
    %c0_i32 = arith.constant 0 : i32
    %c0_i32_0 = arith.constant 0 : i32
    %c0_i32_1 = arith.constant 0 : i32
    return %c0_i32, %c0_i32_0 : i32, i32
  }
  func.func @transform_11(%arg0: i32) -> (i32, i32) {
    %c0_i32 = arith.constant 0 : i32
    %c0_i32_0 = arith.constant 0 : i32
    return %arg0, %c0_i32 : i32, i32
  }
  func.func @transform_12(%arg0: i32) -> (i32, i32) {
    %c0_i32 = arith.constant 0 : i32
    %c0_i32_0 = arith.constant 0 : i32
    return %arg0, %c0_i32 : i32, i32
  }
}

</mosaic_0001>

<llo_original>
// kernel: encode_process_decode.7
$region0: #{encode_process_decode.7}
  #allocation0 [shape = 'u32[]', space=smem, size = 0x4, offset = 0x4, fixed_abs, tag = 'smem constant byte address 0x4 - core index']
  #allocation1 [shape = 'u32[144,128]{1,0:T(1,128)}', space=vmem, size = 0x12000, scoped, tag = 'internal scratch']
  %s0 = inlined_call_operand.vmem [shape: f32[24,12], index: 0, kind: input, shape index: {}]
  %s1 = inlined_call_operand.vmem [shape: bf16[12,32], index: 1, kind: input, shape index: {}]
  %s2 = inlined_call_operand.vmem [shape: f32[1,32], index: 2, kind: input, shape index: {}]
  %s3 = inlined_call_operand.vmem [shape: bf16[32,32], index: 3, kind: input, shape index: {}]
  %s4 = inlined_call_operand.vmem [shape: f32[1,32], index: 4, kind: input, shape index: {}]
  %s5 = inlined_call_operand.vmem [shape: f32[1,32], index: 5, kind: input, shape index: {}]
  %s6 = inlined_call_operand.vmem [shape: f32[1,32], index: 6, kind: input, shape index: {}]
  %s7 = inlined_call_operand.vmem [shape: f32[24,32], index: 7, kind: output, shape index: {}]
  %s8 = sld [smem:[#allocation0]]
  $region38: #{encode_process_decode.7} parent=0
    _
  %s10 = ssub.s32 1, %s8
  %s11 = scalar_select 0, %s10, %s8
  // Predicated region
  $region2: #{encode_process_decode.7} parent=0 // pred_check
    _
  $region3: #{encode_process_decode.7} parent=0 // pred_check_branch
    %13 = sbr.rel (0) target = $region5
  $region4: #{encode_process_decode.7} parent=0 // pred_region
    _
  $region5: #{encode_process_decode.7} parent=0 // pred_fallthru
    _
  // Predicated region
  $region6: #{encode_process_decode.7} parent=0 // pred_check
    _
  $region7: #{encode_process_decode.7} parent=0 // pred_check_branch
    %15 = sbr.rel (0) target = $region9
  $region8: #{encode_process_decode.7} parent=0 // pred_region
    _
  $region9: #{encode_process_decode.7} parent=0 // pred_fallthru
    _
  // Predicated region
  $region10: #{encode_process_decode.7} parent=0 // pred_check
    _
  $region11: #{encode_process_decode.7} parent=0 // pred_check_branch
    %17 = sbr.rel (0) target = $region13
  $region12: #{encode_process_decode.7} parent=0 // pred_region
    _
  $region13: #{encode_process_decode.7} parent=0 // pred_fallthru
    _
  // Predicated region
  $region14: #{encode_process_decode.7} parent=0 // pred_check
    _
  $region15: #{encode_process_decode.7} parent=0 // pred_check_branch
    %19 = sbr.rel (0) target = $region17
  $region16: #{encode_process_decode.7} parent=0 // pred_region
    _
  $region17: #{encode_process_decode.7} parent=0 // pred_fallthru
    _
  // Predicated region
  $region18: #{encode_process_decode.7} parent=0 // pred_check
    _
  $region19: #{encode_process_decode.7} parent=0 // pred_check_branch
    %21 = sbr.rel (0) target = $region21
  $region20: #{encode_process_decode.7} parent=0 // pred_region
    _
  $region21: #{encode_process_decode.7} parent=0 // pred_fallthru
    _
  // Predicated region
  $region22: #{encode_process_decode.7} parent=0 // pred_check
    _
  $region23: #{encode_process_decode.7} parent=0 // pred_check_branch
    %23 = sbr.rel (0) target = $region25
  $region24: #{encode_process_decode.7} parent=0 // pred_region
    _
  $region25: #{encode_process_decode.7} parent=0 // pred_fallthru
    _
  // Predicated region
  $region26: #{encode_process_decode.7} parent=0 // pred_check
    _
  $region27: #{encode_process_decode.7} parent=0 // pred_check_branch
    %25 = sbr.rel (0) target = $region29
  $region28: #{encode_process_decode.7} parent=0 // pred_region
    _
  $region29: #{encode_process_decode.7} parent=0 // pred_fallthru
    _
  %v27 = vld [vmem:[%s0] sm:$0xff]
  %v28 = vld [vmem:[%s0 + $0x8] sm:$0xff]
  %v29 = vld [vmem:[%s0 + $0x10] sm:$0xff]
  %v30 = vpack.c.bf16 %v28, %v27
  %v31 = vpack.c.bf16 %v29, %v29
  %v32 = vld [vmem:[%s1] sm:$0xf]
  %v33 = vld [vmem:[%s1 + $0x4] sm:$0x3]
  %v34 = vld [vmem:[%s2] sm:$0x1]
  %v36 = vlaneseq
  %v37 = vshrl.u32 %v36, 7
  %v38 = vsub.s32 0, %v37
  %v39 = vrot.slane %v34, %v38
  %v43 = vunpack.c.l.b16 %v32
  %v44 = vunpack.c.l.b16 %v33
  %v45 = vpack.c.b16 %v44, %v43
  %vm46 = vcmask 97280
  %v48 = vsel %vm46, %v30, 0
  %v51 = vsel %vm46, %v31, 0
  %vm53 = vcmask 1045504
  %v55 = vsel %vm53, %v45, 0
  %57 = vmatprep.subr.bf16.mxu0 0
  %58 = vmatpush1.bf16.msra.mxu0 %v55
  %59 = vmatprep.subr.bf16.mxu0 0
  %60 = vmatpush1.bf16.msra.mxu0 0
  %61 = vmatprep.subr.bf16.mxu0 0
  %62 = vmatpush1.bf16.msra.mxu0 0
  %63 = vmatprep.subr.bf16.mxu0 0
  %64 = vmatpush1.bf16.msra.mxu0 0
  %65 = vmatprep.subr.bf16.mxu0 0
  %66 = vmatpush1.bf16.msra.mxu0 0
  %67 = vmatprep.subr.bf16.mxu0 0
  %68 = vmatpush1.bf16.msra.mxu0 0
  %69 = vmatprep.subr.bf16.mxu0 0
  %70 = vmatpush1.bf16.msra.mxu0 0
  %71 = vmatprep.subr.bf16.mxu0 0
  %72 = vmatpush1.bf16.msra.mxu0 0
  %73 = vmatprep.subr.bf16.mxu0 0
  %74 = vmatpush1.bf16.msra.mxu0 0
  %75 = vmatprep.subr.bf16.mxu0 0
  %76 = vmatpush1.bf16.msra.mxu0 0
  %77 = vmatprep.subr.bf16.mxu0 0
  %78 = vmatpush1.bf16.msra.mxu0 0
  %79 = vmatprep.subr.bf16.mxu0 0
  %80 = vmatpush1.bf16.msra.mxu0 0
  %81 = vmatprep.subr.bf16.mxu0 0
  %82 = vmatpush1.bf16.msra.mxu0 0
  %83 = vmatprep.subr.bf16.mxu0 0
  %84 = vmatpush1.bf16.msra.mxu0 0
  %85 = vmatprep.subr.bf16.mxu0 0
  %86 = vmatpush1.bf16.msra.mxu0 0
  %87 = vmatprep.subr.bf16.mxu0 0
  %88 = vmatpush1.bf16.msra.mxu0 0
  %89 = vmatprep.mubr.bf16.mxu0 0
  %90 = vmatmul.mubr.bf16.gmra.mrb[0].mxu0 %v48
  %v91 = vpop.f32.mrb[0].mxu0
  %v92 = vadd.f32 %v39, %v91
  %v93 = vpop.f32.mrb[0].mxu0
  %v94 = vpop.f32.mrb[0].mxu0
  %v95 = vadd.f32 %v39, %v94
  %v96 = vpop.f32.mrb[0].mxu0
  %97 = vmatprep.mubr.bf16.mxu0 0
  %98 = vmatmul.mubr.bf16.gmra.mrb[0].mxu0 %v51
  %v99 = vpop.f32.mrb[0].mxu0
  %v100 = vadd.f32 %v39, %v99
  %v101 = vpop.f32.mrb[0].mxu0
  %v102 = vpop.f32.mrb[0].mxu0
  %v103 = vpop.f32.mrb[0].mxu0
  %104 = vdwg.mxu0
  %v105 = vld [vmem:[%s3] sm:$0xf]
  %v106 = vld [vmem:[%s3 + $0x4] sm:$0xf]
  %v107 = vld [vmem:[%s3 + $0x8] sm:$0xf]
  %v108 = vld [vmem:[%s3 + $0xc] sm:$0xf]
  %v109 = vld [vmem:[%s4] sm:$0x1]
  %v110 = vld [vmem:[%s5] sm:$0x1]
  %v111 = vld [vmem:[%s6] sm:$0x1]
  %v112 = vmax.f32 %v92, 0.0
  %v113 = vmax.f32 %v95, 0.0
  %v114 = vmax.f32 %v100, 0.0
  %v115 = vpack.c.bf16 %v113, %v112
  %v116 = vpack.c.bf16 %v114, %v114
  %v118 = vlaneseq
  %v119 = vshrl.u32 %v118, 7
  %v120 = vsub.s32 0, %v119
  %v121 = vrot.slane %v109, %v120
  %v127 = vunpack.c.l.b16 %v105
  %v128 = vunpack.c.l.b16 %v106
  %v129 = vunpack.c.l.b16 %v107
  %v130 = vunpack.c.l.b16 %v108
  %v131 = vpack.c.b16 %v128, %v127
  %v132 = vpack.c.b16 %v130, %v129
  %vm135 = vcmask 261120
  %v137 = vsel %vm135, %v115, 0
  %v140 = vsel %vm135, %v116, 0
  %142 = vmatprep.subr.bf16.mxu0 0
  %143 = vmatpush1.bf16.msra.mxu0 %v131
  %144 = vmatprep.subr.bf16.mxu0 0
  %145 = vmatpush1.bf16.msra.mxu0 %v132
  %146 = vmatprep.subr.bf16.mxu0 0
  %147 = vmatpush1.bf16.msra.mxu0 0
  %148 = vmatprep.subr.bf16.mxu0 0
  %149 = vmatpush1.bf16.msra.mxu0 0
  %150 = vmatprep.subr.bf16.mxu0 0
  %151 = vmatpush1.bf16.msra.mxu0 0
  %152 = vmatprep.subr.bf16.mxu0 0
  %153 = vmatpush1.bf16.msra.mxu0 0
  %154 = vmatprep.subr.bf16.mxu0 0
  %155 = vmatpush1.bf16.msra.mxu0 0
  %156 = vmatprep.subr.bf16.mxu0 0
  %157 = vmatpush1.bf16.msra.mxu0 0
  %158 = vmatprep.subr.bf16.mxu0 0
  %159 = vmatpush1.bf16.msra.mxu0 0
  %160 = vmatprep.subr.bf16.mxu0 0
  %161 = vmatpush1.bf16.msra.mxu0 0
  %162 = vmatprep.subr.bf16.mxu0 0
  %163 = vmatpush1.bf16.msra.mxu0 0
  %164 = vmatprep.subr.bf16.mxu0 0
  %165 = vmatpush1.bf16.msra.mxu0 0
  %166 = vmatprep.subr.bf16.mxu0 0
  %167 = vmatpush1.bf16.msra.mxu0 0
  %168 = vmatprep.subr.bf16.mxu0 0
  %169 = vmatpush1.bf16.msra.mxu0 0
  %170 = vmatprep.subr.bf16.mxu0 0
  %171 = vmatpush1.bf16.msra.mxu0 0
  %172 = vmatprep.subr.bf16.mxu0 0
  %173 = vmatpush1.bf16.msra.mxu0 0
  %174 = vmatprep.mubr.bf16.mxu0 0
  %175 = vmatmul.mubr.bf16.gmra.mrb[0].mxu0 %v137
  %v176 = vpop.f32.mrb[0].mxu0
  %v177 = vadd.f32 %v121, %v176
  %v178 = vpop.f32.mrb[0].mxu0
  %v179 = vpop.f32.mrb[0].mxu0
  %v180 = vadd.f32 %v121, %v179
  %v181 = vpop.f32.mrb[0].mxu0
  %182 = vmatprep.mubr.bf16.mxu0 0
  %183 = vmatmul.mubr.bf16.gmra.mrb[0].mxu0 %v140
  %v184 = vpop.f32.mrb[0].mxu0
  %v185 = vadd.f32 %v121, %v184
  %v186 = vpop.f32.mrb[0].mxu0
  %v187 = vpop.f32.mrb[0].mxu0
  %v188 = vpop.f32.mrb[0].mxu0
  %189 = vdwg.mxu0
  %v190 = vmax.f32 %v177, 0.0
  %v191 = vmax.f32 %v180, 0.0
  %v192 = vmax.f32 %v185, 0.0
  %v193 = vsel %vm135, %v190, 0.0
  %194 = vadd.xlane.f32.xlu0 %v193
  %v195 = vpop.xlane.xlu0 %194
  %v196 = vsel %vm135, %v191, 0.0
  %197 = vadd.xlane.f32.xlu0 %v196
  %v198 = vpop.xlane.xlu0 %197
  %v199 = vsel %vm135, %v192, 0.0
  %200 = vadd.xlane.f32.xlu0 %v199
  %v201 = vpop.xlane.xlu0 %200
  %v202 = vrcp.pop 32.0
  %v203 = vmul.f32 %v195, %v202
  %v204 = vmul.f32 %v198, %v202
  %v205 = vmul.f32 %v201, %v202
  %v206 = vsub.f32 %v190, %v203
  %v207 = vsub.f32 %v191, %v204
  %v208 = vsub.f32 %v192, %v205
  %v209 = vmul.f32 %v206, %v206
  %v210 = vmul.f32 %v207, %v207
  %v211 = vmul.f32 %v208, %v208
  %v212 = vsel %vm135, %v209, 0.0
  %213 = vadd.xlane.f32.xlu0 %v212
  %v214 = vpop.xlane.xlu0 %213
  %v215 = vsel %vm135, %v210, 0.0
  %216 = vadd.xlane.f32.xlu0 %v215
  %v217 = vpop.xlane.xlu0 %216
  %v218 = vsel %vm135, %v211, 0.0
  %219 = vadd.xlane.f32.xlu0 %v218
  %v220 = vpop.xlane.xlu0 %219
  %v221 = vmul.f32 %v214, %v202
  %v222 = vmul.f32 %v217, %v202
  %v223 = vmul.f32 %v220, %v202
  %v224 = vadd.f32 %v221, 1e-05
  %v225 = vadd.f32 %v222, 1e-05
  %v226 = vadd.f32 %v223, 1e-05
  %v227 = vrsqrt.pop %v224
  %v228 = vrsqrt.pop %v225
  %v229 = vrsqrt.pop %v226
  %v230 = vmul.f32 %v206, %v227
  %v231 = vmul.f32 %v207, %v228
  %v232 = vmul.f32 %v208, %v229
  %v234 = vlaneseq
  %v235 = vshrl.u32 %v234, 7
  %v236 = vsub.s32 0, %v235
  %v237 = vrot.slane %v110, %v236
  %v239 = vmul.f32 %v230, %v237
  %v240 = vmul.f32 %v231, %v237
  %v241 = vmul.f32 %v232, %v237
  %v243 = vlaneseq
  %v244 = vshrl.u32 %v243, 7
  %v245 = vsub.s32 0, %v244
  %v246 = vrot.slane %v111, %v245
  %v248 = vadd.f32 %v239, %v246
  %v249 = vadd.f32 %v240, %v246
  %v250 = vadd.f32 %v241, %v246
  %251 = vst.msk [vmem:[%s7] sm:$0xff] %vm135, %v248
  %252 = vst.msk [vmem:[%s7 + $0x8] sm:$0xff] %vm135, %v249
  %253 = vst.msk [vmem:[%s7 + $0x10] sm:$0xff] %vm135, %v250
  // Predicated region
  $region30: #{encode_process_decode.7} parent=0 // pred_check
    _
  $region31: #{encode_process_decode.7} parent=0 // pred_check_branch
    %255 = sbr.rel (0) target = $region33
  $region32: #{encode_process_decode.7} parent=0 // pred_region
    _
  $region33: #{encode_process_decode.7} parent=0 // pred_fallthru
    _
  // Predicated region
  $region34: #{encode_process_decode.7} parent=0 // pred_check
    _
  $region35: #{encode_process_decode.7} parent=0 // pred_check_branch
    %257 = sbr.rel (0) target = $region37
  $region36: #{encode_process_decode.7} parent=0 // pred_region
    _
  $region37: #{encode_process_decode.7} parent=0 // pred_fallthru
    _

// kernel: encode_process_decode.8
$region0: #{encode_process_decode.8}
  #allocation0 [shape = 'u32[]', space=smem, size = 0x4, offset = 0x4, fixed_abs, tag = 'smem constant byte address 0x4 - core index']
  #allocation1 [shape = 'u32[144,128]{1,0:T(1,128)}', space=vmem, size = 0x12000, scoped, tag = 'internal scratch']
  %s0 = inlined_call_operand.vmem [shape: f32[56,7], index: 0, kind: input, shape index: {}]
  %s1 = inlined_call_operand.vmem [shape: bf16[7,32], index: 1, kind: input, shape index: {}]
  %s2 = inlined_call_operand.vmem [shape: f32[1,32], index: 2, kind: input, shape index: {}]
  %s3 = inlined_call_operand.vmem [shape: bf16[32,32], index: 3, kind: input, shape index: {}]
  %s4 = inlined_call_operand.vmem [shape: f32[1,32], index: 4, kind: input, shape index: {}]
  %s5 = inlined_call_operand.vmem [shape: f32[1,32], index: 5, kind: input, shape index: {}]
  %s6 = inlined_call_operand.vmem [shape: f32[1,32], index: 6, kind: input, shape index: {}]
  %s7 = inlined_call_operand.vmem [shape: f32[56,32], index: 7, kind: output, shape index: {}]
  %s8 = sld [smem:[#allocation0]]
  $region38: #{encode_process_decode.8} parent=0
    _
  %s10 = ssub.s32 1, %s8
  %s11 = scalar_select 0, %s10, %s8
  // Predicated region
  $region2: #{encode_process_decode.8} parent=0 // pred_check
    _
  $region3: #{encode_process_decode.8} parent=0 // pred_check_branch
    %13 = sbr.rel (0) target = $region5
  $region4: #{encode_process_decode.8} parent=0 // pred_region
    _
  $region5: #{encode_process_decode.8} parent=0 // pred_fallthru
    _
  // Predicated region
  $region6: #{encode_process_decode.8} parent=0 // pred_check
    _
  $region7: #{encode_process_decode.8} parent=0 // pred_check_branch
    %15 = sbr.rel (0) target = $region9
  $region8: #{encode_process_decode.8} parent=0 // pred_region
    _
  $region9: #{encode_process_decode.8} parent=0 // pred_fallthru
    _
  // Predicated region
  $region10: #{encode_process_decode.8} parent=0 // pred_check
    _
  $region11: #{encode_process_decode.8} parent=0 // pred_check_branch
    %17 = sbr.rel (0) target = $region13
  $region12: #{encode_process_decode.8} parent=0 // pred_region
    _
  $region13: #{encode_process_decode.8} parent=0 // pred_fallthru
    _
  // Predicated region
  $region14: #{encode_process_decode.8} parent=0 // pred_check
    _
  $region15: #{encode_process_decode.8} parent=0 // pred_check_branch
    %19 = sbr.rel (0) target = $region17
  $region16: #{encode_process_decode.8} parent=0 // pred_region
    _
  $region17: #{encode_process_decode.8} parent=0 // pred_fallthru
    _
  // Predicated region
  $region18: #{encode_process_decode.8} parent=0 // pred_check
    _
  $region19: #{encode_process_decode.8} parent=0 // pred_check_branch
    %21 = sbr.rel (0) target = $region21
  $region20: #{encode_process_decode.8} parent=0 // pred_region
    _
  $region21: #{encode_process_decode.8} parent=0 // pred_fallthru
    _
  // Predicated region
  $region22: #{encode_process_decode.8} parent=0 // pred_check
    _
  $region23: #{encode_process_decode.8} parent=0 // pred_check_branch
    %23 = sbr.rel (0) target = $region25
  $region24: #{encode_process_decode.8} parent=0 // pred_region
    _
  $region25: #{encode_process_decode.8} parent=0 // pred_fallthru
    _
  // Predicated region
  $region26: #{encode_process_decode.8} parent=0 // pred_check
    _
  $region27: #{encode_process_decode.8} parent=0 // pred_check_branch
    %25 = sbr.rel (0) target = $region29
  $region28: #{encode_process_decode.8} parent=0 // pred_region
    _
  $region29: #{encode_process_decode.8} parent=0 // pred_fallthru
    _
  %v27 = vld [vmem:[%s0] sm:$0xff]
  %v28 = vld [vmem:[%s0 + $0x8] sm:$0xff]
  %v29 = vld [vmem:[%s0 + $0x10] sm:$0xff]
  %v30 = vld [vmem:[%s0 + $0x18] sm:$0xff]
  %v31 = vld [vmem:[%s0 + $0x20] sm:$0xff]
  %v32 = vld [vmem:[%s0 + $0x28] sm:$0xff]
  %v33 = vld [vmem:[%s0 + $0x30] sm:$0xff]
  %v34 = vpack.c.bf16 %v28, %v27
  %v35 = vpack.c.bf16 %v30, %v29
  %v36 = vpack.c.bf16 %v32, %v31
  %v37 = vpack.c.bf16 %v33, %v33
  %v38 = vld [vmem:[%s1] sm:$0xf]
  %v39 = vld [vmem:[%s2] sm:$0x1]
  %v41 = vlaneseq
  %v42 = vshrl.u32 %v41, 7
  %v43 = vsub.s32 0, %v42
  %v44 = vrot.slane %v39, %v43
  %vm46 = vcmask 56320
  %v48 = vsel %vm46, %v34, 0
  %v51 = vsel %vm46, %v35, 0
  %v54 = vsel %vm46, %v36, 0
  %v57 = vsel %vm46, %v37, 0
  %vm59 = vcmask 1042432
  %vm60 = vcmask 1043456
  %v61 = vsel %vm59, 4294967295, 65535
  %v62 = vsel %vm60, %v61, 0
  %v64 = vand.u32 %v38, %v62
  %66 = vmatprep.subr.bf16.mxu0 0
  %67 = vmatpush1.bf16.msra.mxu0 %v64
  %68 = vmatprep.subr.bf16.mxu0 0
  %69 = vmatpush1.bf16.msra.mxu0 0
  %70 = vmatprep.subr.bf16.mxu0 0
  %71 = vmatpush1.bf16.msra.mxu0 0
  %72 = vmatprep.subr.bf16.mxu0 0
  %73 = vmatpush1.bf16.msra.mxu0 0
  %74 = vmatprep.subr.bf16.mxu0 0
  %75 = vmatpush1.bf16.msra.mxu0 0
  %76 = vmatprep.subr.bf16.mxu0 0
  %77 = vmatpush1.bf16.msra.mxu0 0
  %78 = vmatprep.subr.bf16.mxu0 0
  %79 = vmatpush1.bf16.msra.mxu0 0
  %80 = vmatprep.subr.bf16.mxu0 0
  %81 = vmatpush1.bf16.msra.mxu0 0
  %82 = vmatprep.subr.bf16.mxu0 0
  %83 = vmatpush1.bf16.msra.mxu0 0
  %84 = vmatprep.subr.bf16.mxu0 0
  %85 = vmatpush1.bf16.msra.mxu0 0
  %86 = vmatprep.subr.bf16.mxu0 0
  %87 = vmatpush1.bf16.msra.mxu0 0
  %88 = vmatprep.subr.bf16.mxu0 0
  %89 = vmatpush1.bf16.msra.mxu0 0
  %90 = vmatprep.subr.bf16.mxu0 0
  %91 = vmatpush1.bf16.msra.mxu0 0
  %92 = vmatprep.subr.bf16.mxu0 0
  %93 = vmatpush1.bf16.msra.mxu0 0
  %94 = vmatprep.subr.bf16.mxu0 0
  %95 = vmatpush1.bf16.msra.mxu0 0
  %96 = vmatprep.subr.bf16.mxu0 0
  %97 = vmatpush1.bf16.msra.mxu0 0
  %98 = vmatprep.mubr.bf16.mxu0 0
  %99 = vmatmul.mubr.bf16.gmra.mrb[0].mxu0 %v48
  %v100 = vpop.f32.mrb[0].mxu0
  %v101 = vadd.f32 %v44, %v100
  %v102 = vpop.f32.mrb[0].mxu0
  %v103 = vpop.f32.mrb[0].mxu0
  %v104 = vadd.f32 %v44, %v103
  %v105 = vpop.f32.mrb[0].mxu0
  %106 = vmatprep.mubr.bf16.mxu0 0
  %107 = vmatmul.mubr.bf16.gmra.mrb[0].mxu0 %v51
  %v108 = vpop.f32.mrb[0].mxu0
  %v109 = vadd.f32 %v44, %v108
  %v110 = vpop.f32.mrb[0].mxu0
  %v111 = vpop.f32.mrb[0].mxu0
  %v112 = vadd.f32 %v44, %v111
  %v113 = vpop.f32.mrb[0].mxu0
  %114 = vmatprep.mubr.bf16.mxu0 0
  %115 = vmatmul.mubr.bf16.gmra.mrb[0].mxu0 %v54
  %v116 = vpop.f32.mrb[0].mxu0
  %v117 = vadd.f32 %v44, %v116
  %v118 = vpop.f32.mrb[0].mxu0
  %v119 = vpop.f32.mrb[0].mxu0
  %v120 = vadd.f32 %v44, %v119
  %v121 = vpop.f32.mrb[0].mxu0
  %122 = vmatprep.mubr.bf16.mxu0 0
  %123 = vmatmul.mubr.bf16.gmra.mrb[0].mxu0 %v57
  %v124 = vpop.f32.mrb[0].mxu0
  %v125 = vadd.f32 %v44, %v124
  %v126 = vpop.f32.mrb[0].mxu0
  %v127 = vpop.f32.mrb[0].mxu0
  %v128 = vpop.f32.mrb[0].mxu0
  %129 = vdwg.mxu0
  %v130 = vld [vmem:[%s3] sm:$0xf]
  %v131 = vld [vmem:[%s3 + $0x4] sm:$0xf]
  %v132 = vld [vmem:[%s3 + $0x8] sm:$0xf]
  %v133 = vld [vmem:[%s3 + $0xc] sm:$0xf]
  %v134 = vld [vmem:[%s4] sm:$0x1]
  %v135 = vld [vmem:[%s5] sm:$0x1]
  %v136 = vld [vmem:[%s6] sm:$0x1]
  %v137 = vmax.f32 %v101, 0.0
  %v138 = vmax.f32 %v104, 0.0
  %v139 = vmax.f32 %v109, 0.0
  %v140 = vmax.f32 %v112, 0.0
  %v141 = vmax.f32 %v117, 0.0
  %v142 = vmax.f32 %v120, 0.0
  %v143 = vmax.f32 %v125, 0.0
  %v144 = vpack.c.bf16 %v138, %v137
  %v145 = vpack.c.bf16 %v140, %v139
  %v146 = vpack.c.bf16 %v142, %v141
  %v147 = vpack.c.bf16 %v143, %v143
  %v149 = vlaneseq
  %v150 = vshrl.u32 %v149, 7
  %v151 = vsub.s32 0, %v150
  %v152 = vrot.slane %v134, %v151
  %v158 = vunpack.c.l.b16 %v130
  %v159 = vunpack.c.l.b16 %v131
  %v160 = vunpack.c.l.b16 %v132
  %v161 = vunpack.c.l.b16 %v133
  %v162 = vpack.c.b16 %v159, %v158
  %v163 = vpack.c.b16 %v161, %v160
  %vm166 = vcmask 261120
  %v168 = vsel %vm166, %v144, 0
  %v171 = vsel %vm166, %v145, 0
  %v174 = vsel %vm166, %v146, 0
  %v177 = vsel %vm166, %v147, 0
  %179 = vmatprep.subr.bf16.mxu0 0
  %180 = vmatpush1.bf16.msra.mxu0 %v162
  %181 = vmatprep.subr.bf16.mxu0 0
  %182 = vmatpush1.bf16.msra.mxu0 %v163
  %183 = vmatprep.subr.bf16.mxu0 0
  %184 = vmatpush1.bf16.msra.mxu0 0
  %185 = vmatprep.subr.bf16.mxu0 0
  %186 = vmatpush1.bf16.msra.mxu0 0
  %187 = vmatprep.subr.bf16.mxu0 0
  %188 = vmatpush1.bf16.msra.mxu0 0
  %189 = vmatprep.subr.bf16.mxu0 0
  %190 = vmatpush1.bf16.msra.mxu0 0
  %191 = vmatprep.subr.bf16.mxu0 0
  %192 = vmatpush1.bf16.msra.mxu0 0
  %193 = vmatprep.subr.bf16.mxu0 0
  %194 = vmatpush1.bf16.msra.mxu0 0
  %195 = vmatprep.subr.bf16.mxu0 0
  %196 = vmatpush1.bf16.msra.mxu0 0
  %197 = vmatprep.subr.bf16.mxu0 0
  %198 = vmatpush1.bf16.msra.mxu0 0
  %199 = vmatprep.subr.bf16.mxu0 0
  %200 = vmatpush1.bf16.msra.mxu0 0
  %201 = vmatprep.subr.bf16.mxu0 0
  %202 = vmatpush1.bf16.msra.mxu0 0
  %203 = vmatprep.subr.bf16.mxu0 0
  %204 = vmatpush1.bf16.msra.mxu0 0
  %205 = vmatprep.subr.bf16.mxu0 0
  %206 = vmatpush1.bf16.msra.mxu0 0
  %207 = vmatprep.subr.bf16.mxu0 0
  %208 = vmatpush1.bf16.msra.mxu0 0
  %209 = vmatprep.subr.bf16.mxu0 0
  %210 = vmatpush1.bf16.msra.mxu0 0
  %211 = vmatprep.mubr.bf16.mxu0 0
  %212 = vmatmul.mubr.bf16.gmra.mrb[0].mxu0 %v168
  %v213 = vpop.f32.mrb[0].mxu0
  %v214 = vadd.f32 %v152, %v213
  %v215 = vpop.f32.mrb[0].mxu0
  %v216 = vpop.f32.mrb[0].mxu0
  %v217 = vadd.f32 %v152, %v216
  %v218 = vpop.f32.mrb[0].mxu0
  %219 = vmatprep.mubr.bf16.mxu0 0
  %220 = vmatmul.mubr.bf16.gmra.mrb[0].mxu0 %v171
  %v221 = vpop.f32.mrb[0].mxu0
  %v222 = vadd.f32 %v152, %v221
  %v223 = vpop.f32.mrb[0].mxu0
  %v224 = vpop.f32.mrb[0].mxu0
  %v225 = vadd.f32 %v152, %v224
  %v226 = vpop.f32.mrb[0].mxu0
  %227 = vmatprep.mubr.bf16.mxu0 0
  %228 = vmatmul.mubr.bf16.gmra.mrb[0].mxu0 %v174
  %v229 = vpop.f32.mrb[0].mxu0
  %v230 = vadd.f32 %v152, %v229
  %v231 = vpop.f32.mrb[0].mxu0
  %v232 = vpop.f32.mrb[0].mxu0
  %v233 = vadd.f32 %v152, %v232
  %v234 = vpop.f32.mrb[0].mxu0
  %235 = vmatprep.mubr.bf16.mxu0 0
  %236 = vmatmul.mubr.bf16.gmra.mrb[0].mxu0 %v177
  %v237 = vpop.f32.mrb[0].mxu0
  %v238 = vadd.f32 %v152, %v237
  %v239 = vpop.f32.mrb[0].mxu0
  %v240 = vpop.f32.mrb[0].mxu0
  %v241 = vpop.f32.mrb[0].mxu0
  %242 = vdwg.mxu0
  %v243 = vmax.f32 %v214, 0.0
  %v244 = vmax.f32 %v217, 0.0
  %v245 = vmax.f32 %v222, 0.0
  %v246 = vmax.f32 %v225, 0.0
  %v247 = vmax.f32 %v230, 0.0
  %v248 = vmax.f32 %v233, 0.0
  %v249 = vmax.f32 %v238, 0.0
  %v250 = vsel %vm166, %v243, 0.0
  %251 = vadd.xlane.f32.xlu0 %v250
  %v252 = vpop.xlane.xlu0 %251
  %v253 = vsel %vm166, %v244, 0.0
  %254 = vadd.xlane.f32.xlu0 %v253
  %v255 = vpop.xlane.xlu0 %254
  %v256 = vsel %vm166, %v245, 0.0
  %257 = vadd.xlane.f32.xlu0 %v256
  %v258 = vpop.xlane.xlu0 %257
  %v259 = vsel %vm166, %v246, 0.0
  %260 = vadd.xlane.f32.xlu0 %v259
  %v261 = vpop.xlane.xlu0 %260
  %v262 = vsel %vm166, %v247, 0.0
  %263 = vadd.xlane.f32.xlu0 %v262
  %v264 = vpop.xlane.xlu0 %263
  %v265 = vsel %vm166, %v248, 0.0
  %266 = vadd.xlane.f32.xlu0 %v265
  %v267 = vpop.xlane.xlu0 %266
  %v268 = vsel %vm166, %v249, 0.0
  %269 = vadd.xlane.f32.xlu0 %v268
  %v270 = vpop.xlane.xlu0 %269
  %v271 = vrcp.pop 32.0
  %v272 = vmul.f32 %v252, %v271
  %v273 = vmul.f32 %v255, %v271
  %v274 = vmul.f32 %v258, %v271
  %v275 = vmul.f32 %v261, %v271
  %v276 = vmul.f32 %v264, %v271
  %v277 = vmul.f32 %v267, %v271
  %v278 = vmul.f32 %v270, %v271
  %v279 = vsub.f32 %v243, %v272
  %v280 = vsub.f32 %v244, %v273
  %v281 = vsub.f32 %v245, %v274
  %v282 = vsub.f32 %v246, %v275
  %v283 = vsub.f32 %v247, %v276
  %v284 = vsub.f32 %v248, %v277
  %v285 = vsub.f32 %v249, %v278
  %v286 = vmul.f32 %v279, %v279
  %v287 = vmul.f32 %v280, %v280
  %v288 = vmul.f32 %v281, %v281
  %v289 = vmul.f32 %v282, %v282
  %v290 = vmul.f32 %v283, %v283
  %v291 = vmul.f32 %v284, %v284
  %v292 = vmul.f32 %v285, %v285
  %v293 = vsel %vm166, %v286, 0.0
  %294 = vadd.xlane.f32.xlu0 %v293
  %v295 = vpop.xlane.xlu0 %294
  %v296 = vsel %vm166, %v287, 0.0
  %297 = vadd.xlane.f32.xlu0 %v296
  %v298 = vpop.xlane.xlu0 %297
  %v299 = vsel %vm166, %v288, 0.0
  %300 = vadd.xlane.f32.xlu0 %v299
  %v301 = vpop.xlane.xlu0 %300
  %v302 = vsel %vm166, %v289, 0.0
  %303 = vadd.xlane.f32.xlu0 %v302
  %v304 = vpop.xlane.xlu0 %303
  %v305 = vsel %vm166, %v290, 0.0
  %306 = vadd.xlane.f32.xlu0 %v305
  %v307 = vpop.xlane.xlu0 %306
  %v308 = vsel %vm166, %v291, 0.0
  %309 = vadd.xlane.f32.xlu0 %v308
  %v310 = vpop.xlane.xlu0 %309
  %v311 = vsel %vm166, %v292, 0.0
  %312 = vadd.xlane.f32.xlu0 %v311
  %v313 = vpop.xlane.xlu0 %312
  %v314 = vmul.f32 %v295, %v271
  %v315 = vmul.f32 %v298, %v271
  %v316 = vmul.f32 %v301, %v271
  %v317 = vmul.f32 %v304, %v271
  %v318 = vmul.f32 %v307, %v271
  %v319 = vmul.f32 %v310, %v271
  %v320 = vmul.f32 %v313, %v271
  %v321 = vadd.f32 %v314, 1e-05
  %v322 = vadd.f32 %v315, 1e-05
  %v323 = vadd.f32 %v316, 1e-05
  %v324 = vadd.f32 %v317, 1e-05
  %v325 = vadd.f32 %v318, 1e-05
  %v326 = vadd.f32 %v319, 1e-05
  %v327 = vadd.f32 %v320, 1e-05
  %v328 = vrsqrt.pop %v321
  %v329 = vrsqrt.pop %v322
  %v330 = vrsqrt.pop %v323
  %v331 = vrsqrt.pop %v324
  %v332 = vrsqrt.pop %v325
  %v333 = vrsqrt.pop %v326
  %v334 = vrsqrt.pop %v327
  %v335 = vmul.f32 %v279, %v328
  %v336 = vmul.f32 %v280, %v329
  %v337 = vmul.f32 %v281, %v330
  %v338 = vmul.f32 %v282, %v331
  %v339 = vmul.f32 %v283, %v332
  %v340 = vmul.f32 %v284, %v333
  %v341 = vmul.f32 %v285, %v334
  %v343 = vlaneseq
  %v344 = vshrl.u32 %v343, 7
  %v345 = vsub.s32 0, %v344
  %v346 = vrot.slane %v135, %v345
  %v348 = vmul.f32 %v335, %v346
  %v349 = vmul.f32 %v336, %v346
  %v350 = vmul.f32 %v337, %v346
  %v351 = vmul.f32 %v338, %v346
  %v352 = vmul.f32 %v339, %v346
  %v353 = vmul.f32 %v340, %v346
  %v354 = vmul.f32 %v341, %v346
  %v356 = vlaneseq
  %v357 = vshrl.u32 %v356, 7
  %v358 = vsub.s32 0, %v357
  %v359 = vrot.slane %v136, %v358
  %v361 = vadd.f32 %v348, %v359
  %v362 = vadd.f32 %v349, %v359
  %v363 = vadd.f32 %v350, %v359
  %v364 = vadd.f32 %v351, %v359
  %v365 = vadd.f32 %v352, %v359
  %v366 = vadd.f32 %v353, %v359
  %v367 = vadd.f32 %v354, %v359
  %368 = vst.msk [vmem:[%s7] sm:$0xff] %vm166, %v361
  %369 = vst.msk [vmem:[%s7 + $0x8] sm:$0xff] %vm166, %v362
  %370 = vst.msk [vmem:[%s7 + $0x10] sm:$0xff] %vm166, %v363
  %371 = vst.msk [vmem:[%s7 + $0x18] sm:$0xff] %vm166, %v364
  %372 = vst.msk [vmem:[%s7 + $0x20] sm:$0xff] %vm166, %v365
  %373 = vst.msk [vmem:[%s7 + $0x28] sm:$0xff] %vm166, %v366
  %374 = vst.msk [vmem:[%s7 + $0x30] sm:$0xff] %vm166, %v367
  // Predicated region
  $region30: #{encode_process_decode.8} parent=0 // pred_check
    _
  $region31: #{encode_process_decode.8} parent=0 // pred_check_branch
    %376 = sbr.rel (0) target = $region33
  $region32: #{encode_process_decode.8} parent=0 // pred_region
    _
  $region33: #{encode_process_decode.8} parent=0 // pred_fallthru
    _
  // Predicated region
  $region34: #{encode_process_decode.8} parent=0 // pred_check
    _
  $region35: #{encode_process_decode.8} parent=0 // pred_check_branch
    %378 = sbr.rel (0) target = $region37
  $region36: #{encode_process_decode.8} parent=0 // pred_region
    _
  $region37: #{encode_process_decode.8} parent=0 // pred_fallthru
    _

// kernel: encode_process_decode.9
$region0: #{encode_process_decode.9}
  #allocation0 [shape = 'u32[]', space=smem, size = 0x4, offset = 0x4, fixed_abs, tag = 'smem constant byte address 0x4 - core index']
  #allocation1 [shape = 'u32[144,128]{1,0:T(1,128)}', space=vmem, size = 0x12000, scoped, tag = 'internal scratch']
  %s0 = inlined_call_operand.vmem [shape: f32[56,32], index: 0, kind: input, shape index: {}]
  %s1 = inlined_call_operand.vmem [shape: f32[56,32], index: 1, kind: input, shape index: {}]
  %s2 = inlined_call_operand.vmem [shape: f32[56,32], index: 2, kind: input, shape index: {}]
  %s3 = inlined_call_operand.vmem [shape: bf16[32,32], index: 3, kind: input, shape index: {}]
  %s4 = inlined_call_operand.vmem [shape: bf16[32,32], index: 4, kind: input, shape index: {}]
  %s5 = inlined_call_operand.vmem [shape: bf16[32,32], index: 5, kind: input, shape index: {}]
  %s6 = inlined_call_operand.vmem [shape: f32[1,32], index: 6, kind: input, shape index: {}]
  %s7 = inlined_call_operand.vmem [shape: bf16[32,32], index: 7, kind: input, shape index: {}]
  %s8 = inlined_call_operand.vmem [shape: f32[1,32], index: 8, kind: input, shape index: {}]
  %s9 = inlined_call_operand.vmem [shape: f32[1,32], index: 9, kind: input, shape index: {}]
  %s10 = inlined_call_operand.vmem [shape: f32[1,32], index: 10, kind: input, shape index: {}]
  %s11 = inlined_call_operand.vmem [shape: f32[56,32], index: 11, kind: output, shape index: {0}]
  %s12 = inlined_call_operand.vmem [shape: f32[56,32], index: 12, kind: output, shape index: {1}]
  %13 = xla_tuple %s11, %s12
  %s14 = sld [smem:[#allocation0]]
  $region62: #{encode_process_decode.9} parent=0
    _
  %s16 = ssub.s32 1, %s14
  %s17 = scalar_select 0, %s16, %s14
  // Predicated region
  $region2: #{encode_process_decode.9} parent=0 // pred_check
    _
  $region3: #{encode_process_decode.9} parent=0 // pred_check_branch
    %19 = sbr.rel (0) target = $region5
  $region4: #{encode_process_decode.9} parent=0 // pred_region
    _
  $region5: #{encode_process_decode.9} parent=0 // pred_fallthru
    _
  // Predicated region
  $region6: #{encode_process_decode.9} parent=0 // pred_check
    _
  $region7: #{encode_process_decode.9} parent=0 // pred_check_branch
    %21 = sbr.rel (0) target = $region9
  $region8: #{encode_process_decode.9} parent=0 // pred_region
    _
  $region9: #{encode_process_decode.9} parent=0 // pred_fallthru
    _
  // Predicated region
  $region10: #{encode_process_decode.9} parent=0 // pred_check
    _
  $region11: #{encode_process_decode.9} parent=0 // pred_check_branch
    %23 = sbr.rel (0) target = $region13
  $region12: #{encode_process_decode.9} parent=0 // pred_region
    _
  $region13: #{encode_process_decode.9} parent=0 // pred_fallthru
    _
  // Predicated region
  $region14: #{encode_process_decode.9} parent=0 // pred_check
    _
  $region15: #{encode_process_decode.9} parent=0 // pred_check_branch
    %25 = sbr.rel (0) target = $region17
  $region16: #{encode_process_decode.9} parent=0 // pred_region
    _
  $region17: #{encode_process_decode.9} parent=0 // pred_fallthru
    _
  // Predicated region
  $region18: #{encode_process_decode.9} parent=0 // pred_check
    _
  $region19: #{encode_process_decode.9} parent=0 // pred_check_branch
    %27 = sbr.rel (0) target = $region21
  $region20: #{encode_process_decode.9} parent=0 // pred_region
    _
  $region21: #{encode_process_decode.9} parent=0 // pred_fallthru
    _
  // Predicated region
  $region22: #{encode_process_decode.9} parent=0 // pred_check
    _
  $region23: #{encode_process_decode.9} parent=0 // pred_check_branch
    %29 = sbr.rel (0) target = $region25
  $region24: #{encode_process_decode.9} parent=0 // pred_region
    _
  $region25: #{encode_process_decode.9} parent=0 // pred_fallthru
    _
  // Predicated region
  $region26: #{encode_process_decode.9} parent=0 // pred_check
    _
  $region27: #{encode_process_decode.9} parent=0 // pred_check_branch
    %31 = sbr.rel (0) target = $region29
  $region28: #{encode_process_decode.9} parent=0 // pred_region
    _
  $region29: #{encode_process_decode.9} parent=0 // pred_fallthru
    _
  // Predicated region
  $region30: #{encode_process_decode.9} parent=0 // pred_check
    _
  $region31: #{encode_process_decode.9} parent=0 // pred_check_branch
    %33 = sbr.rel (0) target = $region33
  $region32: #{encode_process_decode.9} parent=0 // pred_region
    _
  $region33: #{encode_process_decode.9} parent=0 // pred_fallthru
    _
  // Predicated region
  $region34: #{encode_process_decode.9} parent=0 // pred_check
    _
  $region35: #{encode_process_decode.9} parent=0 // pred_check_branch
    %35 = sbr.rel (0) target = $region37
  $region36: #{encode_process_decode.9} parent=0 // pred_region
    _
  $region37: #{encode_process_decode.9} parent=0 // pred_fallthru
    _
  // Predicated region
  $region38: #{encode_process_decode.9} parent=0 // pred_check
    _
  $region39: #{encode_process_decode.9} parent=0 // pred_check_branch
    %37 = sbr.rel (0) target = $region41
  $region40: #{encode_process_decode.9} parent=0 // pred_region
    _
  $region41: #{encode_process_decode.9} parent=0 // pred_fallthru
    _
  // Predicated region
  $region42: #{encode_process_decode.9} parent=0 // pred_check
    _
  $region43: #{encode_process_decode.9} parent=0 // pred_check_branch
    %39 = sbr.rel (0) target = $region45
  $region44: #{encode_process_decode.9} parent=0 // pred_region
    _
  $region45: #{encode_process_decode.9} parent=0 // pred_fallthru
    _
  %v41 = vld [vmem:[%s0] sm:$0xff]
  %v42 = vld [vmem:[%s0 + $0x8] sm:$0xff]
  %v43 = vld [vmem:[%s0 + $0x10] sm:$0xff]
  %v44 = vld [vmem:[%s0 + $0x18] sm:$0xff]
  %v45 = vld [vmem:[%s0 + $0x20] sm:$0xff]
  %v46 = vld [vmem:[%s0 + $0x28] sm:$0xff]
  %v47 = vld [vmem:[%s0 + $0x30] sm:$0xff]
  %v48 = vpack.c.bf16 %v42, %v41
  %v49 = vpack.c.bf16 %v44, %v43
  %v50 = vpack.c.bf16 %v46, %v45
  %v51 = vpack.c.bf16 %v47, %v47
  %v52 = vld [vmem:[%s1] sm:$0xff]
  %v53 = vld [vmem:[%s1 + $0x8] sm:$0xff]
  %v54 = vld [vmem:[%s1 + $0x10] sm:$0xff]
  %v55 = vld [vmem:[%s1 + $0x18] sm:$0xff]
  %v56 = vld [vmem:[%s1 + $0x20] sm:$0xff]
  %v57 = vld [vmem:[%s1 + $0x28] sm:$0xff]
  %v58 = vld [vmem:[%s1 + $0x30] sm:$0xff]
  %v59 = vpack.c.bf16 %v53, %v52
  %v60 = vpack.c.bf16 %v55, %v54
  %v61 = vpack.c.bf16 %v57, %v56
  %v62 = vpack.c.bf16 %v58, %v58
  %v63 = vld [vmem:[%s2] sm:$0xff]
  %v64 = vld [vmem:[%s2 + $0x8] sm:$0xff]
  %v65 = vld [vmem:[%s2 + $0x10] sm:$0xff]
  %v66 = vld [vmem:[%s2 + $0x18] sm:$0xff]
  %v67 = vld [vmem:[%s2 + $0x20] sm:$0xff]
  %v68 = vld [vmem:[%s2 + $0x28] sm:$0xff]
  %v69 = vld [vmem:[%s2 + $0x30] sm:$0xff]
  %v70 = vpack.c.bf16 %v64, %v63
  %v71 = vpack.c.bf16 %v66, %v65
  %v72 = vpack.c.bf16 %v68, %v67
  %v73 = vpack.c.bf16 %v69, %v69
  %v74 = vld [vmem:[%s3] sm:$0xf]
  %v75 = vld [vmem:[%s3 + $0x4] sm:$0xf]
  %v76 = vld [vmem:[%s3 + $0x8] sm:$0xf]
  %v77 = vld [vmem:[%s3 + $0xc] sm:$0xf]
  %v78 = vld [vmem:[%s4] sm:$0xf]
  %v79 = vld [vmem:[%s4 + $0x4] sm:$0xf]
  %v80 = vld [vmem:[%s4 + $0x8] sm:$0xf]
  %v81 = vld [vmem:[%s4 + $0xc] sm:$0xf]
  %v82 = vld [vmem:[%s5] sm:$0xf]
  %v83 = vld [vmem:[%s5 + $0x4] sm:$0xf]
  %v84 = vld [vmem:[%s5 + $0x8] sm:$0xf]
  %v85 = vld [vmem:[%s5 + $0xc] sm:$0xf]
  %v86 = vld [vmem:[%s6] sm:$0x1]
  %v87 = vld [vmem:[%s7] sm:$0xf]
  %v88 = vld [vmem:[%s7 + $0x4] sm:$0xf]
  %v89 = vld [vmem:[%s7 + $0x8] sm:$0xf]
  %v90 = vld [vmem:[%s7 + $0xc] sm:$0xf]
  %v91 = vld [vmem:[%s8] sm:$0x1]
  %v92 = vld [vmem:[%s9] sm:$0x1]
  %v93 = vld [vmem:[%s10] sm:$0x1]
  %v95 = vlaneseq
  %v96 = vshrl.u32 %v95, 7
  %v97 = vsub.s32 0, %v96
  %v98 = vrot.slane %v86, %v97
  %v104 = vunpack.c.l.b16 %v82
  %v105 = vunpack.c.l.b16 %v83
  %v106 = vunpack.c.l.b16 %v84
  %v107 = vunpack.c.l.b16 %v85
  %v108 = vpack.c.b16 %v105, %v104
  %v109 = vpack.c.b16 %v107, %v106
  %vm112 = vcmask 261120
  %v114 = vsel %vm112, %v70, 0
  %v117 = vsel %vm112, %v71, 0
  %v120 = vsel %vm112, %v72, 0
  %v123 = vsel %vm112, %v73, 0
  %125 = vmatprep.subr.bf16.mxu0 0
  %126 = vmatpush1.bf16.msra.mxu0 %v108
  %127 = vmatprep.subr.bf16.mxu0 0
  %128 = vmatpush1.bf16.msra.mxu0 %v109
  %129 = vmatprep.subr.bf16.mxu0 0
  %130 = vmatpush1.bf16.msra.mxu0 0
  %131 = vmatprep.subr.bf16.mxu0 0
  %132 = vmatpush1.bf16.msra.mxu0 0
  %133 = vmatprep.subr.bf16.mxu0 0
  %134 = vmatpush1.bf16.msra.mxu0 0
  %135 = vmatprep.subr.bf16.mxu0 0
  %136 = vmatpush1.bf16.msra.mxu0 0
  %137 = vmatprep.subr.bf16.mxu0 0
  %138 = vmatpush1.bf16.msra.mxu0 0
  %139 = vmatprep.subr.bf16.mxu0 0
  %140 = vmatpush1.bf16.msra.mxu0 0
  %141 = vmatprep.subr.bf16.mxu0 0
  %142 = vmatpush1.bf16.msra.mxu0 0
  %143 = vmatprep.subr.bf16.mxu0 0
  %144 = vmatpush1.bf16.msra.mxu0 0
  %145 = vmatprep.subr.bf16.mxu0 0
  %146 = vmatpush1.bf16.msra.mxu0 0
  %147 = vmatprep.subr.bf16.mxu0 0
  %148 = vmatpush1.bf16.msra.mxu0 0
  %149 = vmatprep.subr.bf16.mxu0 0
  %150 = vmatpush1.bf16.msra.mxu0 0
  %151 = vmatprep.subr.bf16.mxu0 0
  %152 = vmatpush1.bf16.msra.mxu0 0
  %153 = vmatprep.subr.bf16.mxu0 0
  %154 = vmatpush1.bf16.msra.mxu0 0
  %155 = vmatprep.subr.bf16.mxu0 0
  %156 = vmatpush1.bf16.msra.mxu0 0
  %157 = vmatprep.mubr.bf16.mxu0 0
  %158 = vmatmul.mubr.bf16.gmra.mrb[0].mxu0 %v114
  %v159 = vpop.f32.mrb[0].mxu0
  %v160 = vadd.f32 %v98, %v159
  %v161 = vpop.f32.mrb[0].mxu0
  %v162 = vpop.f32.mrb[0].mxu0
  %v163 = vadd.f32 %v98, %v162
  %v164 = vpop.f32.mrb[0].mxu0
  %165 = vmatprep.mubr.bf16.mxu0 0
  %166 = vmatmul.mubr.bf16.gmra.mrb[0].mxu0 %v117
  %v167 = vpop.f32.mrb[0].mxu0
  %v168 = vadd.f32 %v98, %v167
  %v169 = vpop.f32.mrb[0].mxu0
  %v170 = vpop.f32.mrb[0].mxu0
  %v171 = vadd.f32 %v98, %v170
  %v172 = vpop.f32.mrb[0].mxu0
  %173 = vmatprep.mubr.bf16.mxu0 0
  %174 = vmatmul.mubr.bf16.gmra.mrb[0].mxu0 %v120
  %v175 = vpop.f32.mrb[0].mxu0
  %v176 = vadd.f32 %v98, %v175
  %v177 = vpop.f32.mrb[0].mxu0
  %v178 = vpop.f32.mrb[0].mxu0
  %v179 = vadd.f32 %v98, %v178
  %v180 = vpop.f32.mrb[0].mxu0
  %181 = vmatprep.mubr.bf16.mxu0 0
  %182 = vmatmul.mubr.bf16.gmra.mrb[0].mxu0 %v123
  %v183 = vpop.f32.mrb[0].mxu0
  %v184 = vadd.f32 %v98, %v183
  %v185 = vpop.f32.mrb[0].mxu0
  %v186 = vpop.f32.mrb[0].mxu0
  %v187 = vpop.f32.mrb[0].mxu0
  %188 = vdwg.mxu0
  %v193 = vunpack.c.l.b16 %v78
  %v194 = vunpack.c.l.b16 %v79
  %v195 = vunpack.c.l.b16 %v80
  %v196 = vunpack.c.l.b16 %v81
  %v197 = vpack.c.b16 %v194, %v193
  %v198 = vpack.c.b16 %v196, %v195
  %v202 = vsel %vm112, %v59, 0
  %v205 = vsel %vm112, %v60, 0
  %v208 = vsel %vm112, %v61, 0
  %v211 = vsel %vm112, %v62, 0
  %213 = vmatprep.subr.bf16.mxu0 0
  %214 = vmatpush1.bf16.msra.mxu0 %v197
  %215 = vmatprep.subr.bf16.mxu0 0
  %216 = vmatpush1.bf16.msra.mxu0 %v198
  %217 = vmatprep.subr.bf16.mxu0 0
  %218 = vmatpush1.bf16.msra.mxu0 0
  %219 = vmatprep.subr.bf16.mxu0 0
  %220 = vmatpush1.bf16.msra.mxu0 0
  %221 = vmatprep.subr.bf16.mxu0 0
  %222 = vmatpush1.bf16.msra.mxu0 0
  %223 = vmatprep.subr.bf16.mxu0 0
  %224 = vmatpush1.bf16.msra.mxu0 0
  %225 = vmatprep.subr.bf16.mxu0 0
  %226 = vmatpush1.bf16.msra.mxu0 0
  %227 = vmatprep.subr.bf16.mxu0 0
  %228 = vmatpush1.bf16.msra.mxu0 0
  %229 = vmatprep.subr.bf16.mxu0 0
  %230 = vmatpush1.bf16.msra.mxu0 0
  %231 = vmatprep.subr.bf16.mxu0 0
  %232 = vmatpush1.bf16.msra.mxu0 0
  %233 = vmatprep.subr.bf16.mxu0 0
  %234 = vmatpush1.bf16.msra.mxu0 0
  %235 = vmatprep.subr.bf16.mxu0 0
  %236 = vmatpush1.bf16.msra.mxu0 0
  %237 = vmatprep.subr.bf16.mxu0 0
  %238 = vmatpush1.bf16.msra.mxu0 0
  %239 = vmatprep.subr.bf16.mxu0 0
  %240 = vmatpush1.bf16.msra.mxu0 0
  %241 = vmatprep.subr.bf16.mxu0 0
  %242 = vmatpush1.bf16.msra.mxu0 0
  %243 = vmatprep.subr.bf16.mxu0 0
  %244 = vmatpush1.bf16.msra.mxu0 0
  %245 = vmatprep.mubr.bf16.mxu0 0
  %246 = vmatmul.mubr.bf16.gmra.mrb[0].mxu0 %v202
  %v247 = vpop.f32.mrb[0].mxu0
  %v248 = vadd.f32 0.0, %v247
  %v249 = vpop.f32.mrb[0].mxu0
  %v250 = vpop.f32.mrb[0].mxu0
  %v251 = vadd.f32 0.0, %v250
  %v252 = vpop.f32.mrb[0].mxu0
  %253 = vmatprep.mubr.bf16.mxu0 0
  %254 = vmatmul.mubr.bf16.gmra.mrb[0].mxu0 %v205
  %v255 = vpop.f32.mrb[0].mxu0
  %v256 = vadd.f32 0.0, %v255
  %v257 = vpop.f32.mrb[0].mxu0
  %v258 = vpop.f32.mrb[0].mxu0
  %v259 = vadd.f32 0.0, %v258
  %v260 = vpop.f32.mrb[0].mxu0
  %261 = vmatprep.mubr.bf16.mxu0 0
  %262 = vmatmul.mubr.bf16.gmra.mrb[0].mxu0 %v208
  %v263 = vpop.f32.mrb[0].mxu0
  %v264 = vadd.f32 0.0, %v263
  %v265 = vpop.f32.mrb[0].mxu0
  %v266 = vpop.f32.mrb[0].mxu0
  %v267 = vadd.f32 0.0, %v266
  %v268 = vpop.f32.mrb[0].mxu0
  %269 = vmatprep.mubr.bf16.mxu0 0
  %270 = vmatmul.mubr.bf16.gmra.mrb[0].mxu0 %v211
  %v271 = vpop.f32.mrb[0].mxu0
  %v272 = vadd.f32 0.0, %v271
  %v273 = vpop.f32.mrb[0].mxu0
  %v274 = vpop.f32.mrb[0].mxu0
  %v275 = vpop.f32.mrb[0].mxu0
  %276 = vdwg.mxu0
  %v281 = vunpack.c.l.b16 %v74
  %v282 = vunpack.c.l.b16 %v75
  %v283 = vunpack.c.l.b16 %v76
  %v284 = vunpack.c.l.b16 %v77
  %v285 = vpack.c.b16 %v282, %v281
  %v286 = vpack.c.b16 %v284, %v283
  %v290 = vsel %vm112, %v48, 0
  %v293 = vsel %vm112, %v49, 0
  %v296 = vsel %vm112, %v50, 0
  %v299 = vsel %vm112, %v51, 0
  %301 = vmatprep.subr.bf16.mxu0 0
  %302 = vmatpush1.bf16.msra.mxu0 %v285
  %303 = vmatprep.subr.bf16.mxu0 0
  %304 = vmatpush1.bf16.msra.mxu0 %v286
  %305 = vmatprep.subr.bf16.mxu0 0
  %306 = vmatpush1.bf16.msra.mxu0 0
  %307 = vmatprep.subr.bf16.mxu0 0
  %308 = vmatpush1.bf16.msra.mxu0 0
  %309 = vmatprep.subr.bf16.mxu0 0
  %310 = vmatpush1.bf16.msra.mxu0 0
  %311 = vmatprep.subr.bf16.mxu0 0
  %312 = vmatpush1.bf16.msra.mxu0 0
  %313 = vmatprep.subr.bf16.mxu0 0
  %314 = vmatpush1.bf16.msra.mxu0 0
  %315 = vmatprep.subr.bf16.mxu0 0
  %316 = vmatpush1.bf16.msra.mxu0 0
  %317 = vmatprep.subr.bf16.mxu0 0
  %318 = vmatpush1.bf16.msra.mxu0 0
  %319 = vmatprep.subr.bf16.mxu0 0
  %320 = vmatpush1.bf16.msra.mxu0 0
  %321 = vmatprep.subr.bf16.mxu0 0
  %322 = vmatpush1.bf16.msra.mxu0 0
  %323 = vmatprep.subr.bf16.mxu0 0
  %324 = vmatpush1.bf16.msra.mxu0 0
  %325 = vmatprep.subr.bf16.mxu0 0
  %326 = vmatpush1.bf16.msra.mxu0 0
  %327 = vmatprep.subr.bf16.mxu0 0
  %328 = vmatpush1.bf16.msra.mxu0 0
  %329 = vmatprep.subr.bf16.mxu0 0
  %330 = vmatpush1.bf16.msra.mxu0 0
  %331 = vmatprep.subr.bf16.mxu0 0
  %332 = vmatpush1.bf16.msra.mxu0 0
  %333 = vmatprep.mubr.bf16.mxu0 0
  %334 = vmatmul.mubr.bf16.gmra.mrb[0].mxu0 %v290
  %v335 = vpop.f32.mrb[0].mxu0
  %v336 = vadd.f32 %v248, %v335
  %v337 = vpop.f32.mrb[0].mxu0
  %v338 = vpop.f32.mrb[0].mxu0
  %v339 = vadd.f32 %v251, %v338
  %v340 = vpop.f32.mrb[0].mxu0
  %341 = vmatprep.mubr.bf16.mxu0 0
  %342 = vmatmul.mubr.bf16.gmra.mrb[0].mxu0 %v293
  %v343 = vpop.f32.mrb[0].mxu0
  %v344 = vadd.f32 %v256, %v343
  %v345 = vpop.f32.mrb[0].mxu0
  %v346 = vpop.f32.mrb[0].mxu0
  %v347 = vadd.f32 %v259, %v346
  %v348 = vpop.f32.mrb[0].mxu0
  %349 = vmatprep.mubr.bf16.mxu0 0
  %350 = vmatmul.mubr.bf16.gmra.mrb[0].mxu0 %v296
  %v351 = vpop.f32.mrb[0].mxu0
  %v352 = vadd.f32 %v264, %v351
  %v353 = vpop.f32.mrb[0].mxu0
  %v354 = vpop.f32.mrb[0].mxu0
  %v355 = vadd.f32 %v267, %v354
  %v356 = vpop.f32.mrb[0].mxu0
  %357 = vmatprep.mubr.bf16.mxu0 0
  %358 = vmatmul.mubr.bf16.gmra.mrb[0].mxu0 %v299
  %v359 = vpop.f32.mrb[0].mxu0
  %v360 = vadd.f32 %v272, %v359
  %v361 = vpop.f32.mrb[0].mxu0
  %v362 = vpop.f32.mrb[0].mxu0
  %v363 = vpop.f32.mrb[0].mxu0
  %364 = vdwg.mxu0
  %v365 = vadd.f32 %v336, %v160
  %v366 = vadd.f32 %v339, %v163
  %v367 = vadd.f32 %v344, %v168
  %v368 = vadd.f32 %v347, %v171
  %v369 = vadd.f32 %v352, %v176
  %v370 = vadd.f32 %v355, %v179
  %v371 = vadd.f32 %v360, %v184
  %v372 = vmax.f32 %v365, 0.0
  %v373 = vmax.f32 %v366, 0.0
  %v374 = vmax.f32 %v367, 0.0
  %v375 = vmax.f32 %v368, 0.0
  %v376 = vmax.f32 %v369, 0.0
  %v377 = vmax.f32 %v370, 0.0
  %v378 = vmax.f32 %v371, 0.0
  %v379 = vpack.c.bf16 %v373, %v372
  %v380 = vpack.c.bf16 %v375, %v374
  %v381 = vpack.c.bf16 %v377, %v376
  %v382 = vpack.c.bf16 %v378, %v378
  %v384 = vlaneseq
  %v385 = vshrl.u32 %v384, 7
  %v386 = vsub.s32 0, %v385
  %v387 = vrot.slane %v91, %v386
  %v393 = vunpack.c.l.b16 %v87
  %v394 = vunpack.c.l.b16 %v88
  %v395 = vunpack.c.l.b16 %v89
  %v396 = vunpack.c.l.b16 %v90
  %v397 = vpack.c.b16 %v394, %v393
  %v398 = vpack.c.b16 %v396, %v395
  %v402 = vsel %vm112, %v379, 0
  %v405 = vsel %vm112, %v380, 0
  %v408 = vsel %vm112, %v381, 0
  %v411 = vsel %vm112, %v382, 0
  %413 = vmatprep.subr.bf16.mxu0 0
  %414 = vmatpush1.bf16.msra.mxu0 %v397
  %415 = vmatprep.subr.bf16.mxu0 0
  %416 = vmatpush1.bf16.msra.mxu0 %v398
  %417 = vmatprep.subr.bf16.mxu0 0
  %418 = vmatpush1.bf16.msra.mxu0 0
  %419 = vmatprep.subr.bf16.mxu0 0
  %420 = vmatpush1.bf16.msra.mxu0 0
  %421 = vmatprep.subr.bf16.mxu0 0
  %422 = vmatpush1.bf16.msra.mxu0 0
  %423 = vmatprep.subr.bf16.mxu0 0
  %424 = vmatpush1.bf16.msra.mxu0 0
  %425 = vmatprep.subr.bf16.mxu0 0
  %426 = vmatpush1.bf16.msra.mxu0 0
  %427 = vmatprep.subr.bf16.mxu0 0
  %428 = vmatpush1.bf16.msra.mxu0 0
  %429 = vmatprep.subr.bf16.mxu0 0
  %430 = vmatpush1.bf16.msra.mxu0 0
  %431 = vmatprep.subr.bf16.mxu0 0
  %432 = vmatpush1.bf16.msra.mxu0 0
  %433 = vmatprep.subr.bf16.mxu0 0
  %434 = vmatpush1.bf16.msra.mxu0 0
  %435 = vmatprep.subr.bf16.mxu0 0
  %436 = vmatpush1.bf16.msra.mxu0 0
  %437 = vmatprep.subr.bf16.mxu0 0
  %438 = vmatpush1.bf16.msra.mxu0 0
  %439 = vmatprep.subr.bf16.mxu0 0
  %440 = vmatpush1.bf16.msra.mxu0 0
  %441 = vmatprep.subr.bf16.mxu0 0
  %442 = vmatpush1.bf16.msra.mxu0 0
  %443 = vmatprep.subr.bf16.mxu0 0
  %444 = vmatpush1.bf16.msra.mxu0 0
  %445 = vmatprep.mubr.bf16.mxu0 0
  %446 = vmatmul.mubr.bf16.gmra.mrb[0].mxu0 %v402
  %v447 = vpop.f32.mrb[0].mxu0
  %v448 = vadd.f32 %v387, %v447
  %v449 = vpop.f32.mrb[0].mxu0
  %v450 = vpop.f32.mrb[0].mxu0
  %v451 = vadd.f32 %v387, %v450
  %v452 = vpop.f32.mrb[0].mxu0
  %453 = vmatprep.mubr.bf16.mxu0 0
  %454 = vmatmul.mubr.bf16.gmra.mrb[0].mxu0 %v405
  %v455 = vpop.f32.mrb[0].mxu0
  %v456 = vadd.f32 %v387, %v455
  %v457 = vpop.f32.mrb[0].mxu0
  %v458 = vpop.f32.mrb[0].mxu0
  %v459 = vadd.f32 %v387, %v458
  %v460 = vpop.f32.mrb[0].mxu0
  %461 = vmatprep.mubr.bf16.mxu0 0
  %462 = vmatmul.mubr.bf16.gmra.mrb[0].mxu0 %v408
  %v463 = vpop.f32.mrb[0].mxu0
  %v464 = vadd.f32 %v387, %v463
  %v465 = vpop.f32.mrb[0].mxu0
  %v466 = vpop.f32.mrb[0].mxu0
  %v467 = vadd.f32 %v387, %v466
  %v468 = vpop.f32.mrb[0].mxu0
  %469 = vmatprep.mubr.bf16.mxu0 0
  %470 = vmatmul.mubr.bf16.gmra.mrb[0].mxu0 %v411
  %v471 = vpop.f32.mrb[0].mxu0
  %v472 = vadd.f32 %v387, %v471
  %v473 = vpop.f32.mrb[0].mxu0
  %v474 = vpop.f32.mrb[0].mxu0
  %v475 = vpop.f32.mrb[0].mxu0
  %476 = vdwg.mxu0
  %v477 = vmax.f32 %v448, 0.0
  %v478 = vmax.f32 %v451, 0.0
  %v479 = vmax.f32 %v456, 0.0
  %v480 = vmax.f32 %v459, 0.0
  %v481 = vmax.f32 %v464, 0.0
  %v482 = vmax.f32 %v467, 0.0
  %v483 = vmax.f32 %v472, 0.0
  %v484 = vsel %vm112, %v477, 0.0
  %485 = vadd.xlane.f32.xlu0 %v484
  %v486 = vpop.xlane.xlu0 %485
  %v487 = vsel %vm112, %v478, 0.0
  %488 = vadd.xlane.f32.xlu0 %v487
  %v489 = vpop.xlane.xlu0 %488
  %v490 = vsel %vm112, %v479, 0.0
  %491 = vadd.xlane.f32.xlu0 %v490
  %v492 = vpop.xlane.xlu0 %491
  %v493 = vsel %vm112, %v480, 0.0
  %494 = vadd.xlane.f32.xlu0 %v493
  %v495 = vpop.xlane.xlu0 %494
  %v496 = vsel %vm112, %v481, 0.0
  %497 = vadd.xlane.f32.xlu0 %v496
  %v498 = vpop.xlane.xlu0 %497
  %v499 = vsel %vm112, %v482, 0.0
  %500 = vadd.xlane.f32.xlu0 %v499
  %v501 = vpop.xlane.xlu0 %500
  %v502 = vsel %vm112, %v483, 0.0
  %503 = vadd.xlane.f32.xlu0 %v502
  %v504 = vpop.xlane.xlu0 %503
  %v505 = vrcp.pop 32.0
  %v506 = vmul.f32 %v486, %v505
  %v507 = vmul.f32 %v489, %v505
  %v508 = vmul.f32 %v492, %v505
  %v509 = vmul.f32 %v495, %v505
  %v510 = vmul.f32 %v498, %v505
  %v511 = vmul.f32 %v501, %v505
  %v512 = vmul.f32 %v504, %v505
  %v513 = vsub.f32 %v477, %v506
  %v514 = vsub.f32 %v478, %v507
  %v515 = vsub.f32 %v479, %v508
  %v516 = vsub.f32 %v480, %v509
  %v517 = vsub.f32 %v481, %v510
  %v518 = vsub.f32 %v482, %v511
  %v519 = vsub.f32 %v483, %v512
  %v520 = vmul.f32 %v513, %v513
  %v521 = vmul.f32 %v514, %v514
  %v522 = vmul.f32 %v515, %v515
  %v523 = vmul.f32 %v516, %v516
  %v524 = vmul.f32 %v517, %v517
  %v525 = vmul.f32 %v518, %v518
  %v526 = vmul.f32 %v519, %v519
  %v527 = vsel %vm112, %v520, 0.0
  %528 = vadd.xlane.f32.xlu0 %v527
  %v529 = vpop.xlane.xlu0 %528
  %v530 = vsel %vm112, %v521, 0.0
  %531 = vadd.xlane.f32.xlu0 %v530
  %v532 = vpop.xlane.xlu0 %531
  %v533 = vsel %vm112, %v522, 0.0
  %534 = vadd.xlane.f32.xlu0 %v533
  %v535 = vpop.xlane.xlu0 %534
  %v536 = vsel %vm112, %v523, 0.0
  %537 = vadd.xlane.f32.xlu0 %v536
  %v538 = vpop.xlane.xlu0 %537
  %v539 = vsel %vm112, %v524, 0.0
  %540 = vadd.xlane.f32.xlu0 %v539
  %v541 = vpop.xlane.xlu0 %540
  %v542 = vsel %vm112, %v525, 0.0
  %543 = vadd.xlane.f32.xlu0 %v542
  %v544 = vpop.xlane.xlu0 %543
  %v545 = vsel %vm112, %v526, 0.0
  %546 = vadd.xlane.f32.xlu0 %v545
  %v547 = vpop.xlane.xlu0 %546
  %v548 = vmul.f32 %v529, %v505
  %v549 = vmul.f32 %v532, %v505
  %v550 = vmul.f32 %v535, %v505
  %v551 = vmul.f32 %v538, %v505
  %v552 = vmul.f32 %v541, %v505
  %v553 = vmul.f32 %v544, %v505
  %v554 = vmul.f32 %v547, %v505
  %v555 = vadd.f32 %v548, 1e-05
  %v556 = vadd.f32 %v549, 1e-05
  %v557 = vadd.f32 %v550, 1e-05
  %v558 = vadd.f32 %v551, 1e-05
  %v559 = vadd.f32 %v552, 1e-05
  %v560 = vadd.f32 %v553, 1e-05
  %v561 = vadd.f32 %v554, 1e-05
  %v562 = vrsqrt.pop %v555
  %v563 = vrsqrt.pop %v556
  %v564 = vrsqrt.pop %v557
  %v565 = vrsqrt.pop %v558
  %v566 = vrsqrt.pop %v559
  %v567 = vrsqrt.pop %v560
  %v568 = vrsqrt.pop %v561
  %v569 = vmul.f32 %v513, %v562
  %v570 = vmul.f32 %v514, %v563
  %v571 = vmul.f32 %v515, %v564
  %v572 = vmul.f32 %v516, %v565
  %v573 = vmul.f32 %v517, %v566
  %v574 = vmul.f32 %v518, %v567
  %v575 = vmul.f32 %v519, %v568
  %v577 = vlaneseq
  %v578 = vshrl.u32 %v577, 7
  %v579 = vsub.s32 0, %v578
  %v580 = vrot.slane %v92, %v579
  %v582 = vmul.f32 %v569, %v580
  %v583 = vmul.f32 %v570, %v580
  %v584 = vmul.f32 %v571, %v580
  %v585 = vmul.f32 %v572, %v580
  %v586 = vmul.f32 %v573, %v580
  %v587 = vmul.f32 %v574, %v580
  %v588 = vmul.f32 %v575, %v580
  %v590 = vlaneseq
  %v591 = vshrl.u32 %v590, 7
  %v592 = vsub.s32 0, %v591
  %v593 = vrot.slane %v93, %v592
  %v595 = vadd.f32 %v582, %v593
  %v596 = vadd.f32 %v583, %v593
  %v597 = vadd.f32 %v584, %v593
  %v598 = vadd.f32 %v585, %v593
  %v599 = vadd.f32 %v586, %v593
  %v600 = vadd.f32 %v587, %v593
  %v601 = vadd.f32 %v588, %v593
  %602 = vst.msk [vmem:[%s11] sm:$0xff] %vm112, %v595
  %603 = vst.msk [vmem:[%s11 + $0x8] sm:$0xff] %vm112, %v596
  %604 = vst.msk [vmem:[%s11 + $0x10] sm:$0xff] %vm112, %v597
  %605 = vst.msk [vmem:[%s11 + $0x18] sm:$0xff] %vm112, %v598
  %606 = vst.msk [vmem:[%s11 + $0x20] sm:$0xff] %vm112, %v599
  %607 = vst.msk [vmem:[%s11 + $0x28] sm:$0xff] %vm112, %v600
  %608 = vst.msk [vmem:[%s11 + $0x30] sm:$0xff] %vm112, %v601
  %609 = vmatprep.subr.bf16.mxu0 0
  %610 = vmatpush1.bf16.msra.mxu0 %v197
  %611 = vmatprep.subr.bf16.mxu0 0
  %612 = vmatpush1.bf16.msra.mxu0 %v198
  %613 = vmatprep.subr.bf16.mxu0 0
  %614 = vmatpush1.bf16.msra.mxu0 0
  %615 = vmatprep.subr.bf16.mxu0 0
  %616 = vmatpush1.bf16.msra.mxu0 0
  %617 = vmatprep.subr.bf16.mxu0 0
  %618 = vmatpush1.bf16.msra.mxu0 0
  %619 = vmatprep.subr.bf16.mxu0 0
  %620 = vmatpush1.bf16.msra.mxu0 0
  %621 = vmatprep.subr.bf16.mxu0 0
  %622 = vmatpush1.bf16.msra.mxu0 0
  %623 = vmatprep.subr.bf16.mxu0 0
  %624 = vmatpush1.bf16.msra.mxu0 0
  %625 = vmatprep.subr.bf16.mxu0 0
  %626 = vmatpush1.bf16.msra.mxu0 0
  %627 = vmatprep.subr.bf16.mxu0 0
  %628 = vmatpush1.bf16.msra.mxu0 0
  %629 = vmatprep.subr.bf16.mxu0 0
  %630 = vmatpush1.bf16.msra.mxu0 0
  %631 = vmatprep.subr.bf16.mxu0 0
  %632 = vmatpush1.bf16.msra.mxu0 0
  %633 = vmatprep.subr.bf16.mxu0 0
  %634 = vmatpush1.bf16.msra.mxu0 0
  %635 = vmatprep.subr.bf16.mxu0 0
  %636 = vmatpush1.bf16.msra.mxu0 0
  %637 = vmatprep.subr.bf16.mxu0 0
  %638 = vmatpush1.bf16.msra.mxu0 0
  %639 = vmatprep.subr.bf16.mxu0 0
  %640 = vmatpush1.bf16.msra.mxu0 0
  %641 = vmatprep.mubr.bf16.mxu0 0
  %642 = vmatmul.mubr.bf16.gmra.mrb[0].mxu0 %v290
  %v643 = vpop.f32.mrb[0].mxu0
  %v644 = vadd.f32 0.0, %v643
  %v645 = vpop.f32.mrb[0].mxu0
  %v646 = vpop.f32.mrb[0].mxu0
  %v647 = vadd.f32 0.0, %v646
  %v648 = vpop.f32.mrb[0].mxu0
  %649 = vmatprep.mubr.bf16.mxu0 0
  %650 = vmatmul.mubr.bf16.gmra.mrb[0].mxu0 %v293
  %v651 = vpop.f32.mrb[0].mxu0
  %v652 = vadd.f32 0.0, %v651
  %v653 = vpop.f32.mrb[0].mxu0
  %v654 = vpop.f32.mrb[0].mxu0
  %v655 = vadd.f32 0.0, %v654
  %v656 = vpop.f32.mrb[0].mxu0
  %657 = vmatprep.mubr.bf16.mxu0 0
  %658 = vmatmul.mubr.bf16.gmra.mrb[0].mxu0 %v296
  %v659 = vpop.f32.mrb[0].mxu0
  %v660 = vadd.f32 0.0, %v659
  %v661 = vpop.f32.mrb[0].mxu0
  %v662 = vpop.f32.mrb[0].mxu0
  %v663 = vadd.f32 0.0, %v662
  %v664 = vpop.f32.mrb[0].mxu0
  %665 = vmatprep.mubr.bf16.mxu0 0
  %666 = vmatmul.mubr.bf16.gmra.mrb[0].mxu0 %v299
  %v667 = vpop.f32.mrb[0].mxu0
  %v668 = vadd.f32 0.0, %v667
  %v669 = vpop.f32.mrb[0].mxu0
  %v670 = vpop.f32.mrb[0].mxu0
  %v671 = vpop.f32.mrb[0].mxu0
  %672 = vdwg.mxu0
  %673 = vmatprep.subr.bf16.mxu0 0
  %674 = vmatpush1.bf16.msra.mxu0 %v285
  %675 = vmatprep.subr.bf16.mxu0 0
  %676 = vmatpush1.bf16.msra.mxu0 %v286
  %677 = vmatprep.subr.bf16.mxu0 0
  %678 = vmatpush1.bf16.msra.mxu0 0
  %679 = vmatprep.subr.bf16.mxu0 0
  %680 = vmatpush1.bf16.msra.mxu0 0
  %681 = vmatprep.subr.bf16.mxu0 0
  %682 = vmatpush1.bf16.msra.mxu0 0
  %683 = vmatprep.subr.bf16.mxu0 0
  %684 = vmatpush1.bf16.msra.mxu0 0
  %685 = vmatprep.subr.bf16.mxu0 0
  %686 = vmatpush1.bf16.msra.mxu0 0
  %687 = vmatprep.subr.bf16.mxu0 0
  %688 = vmatpush1.bf16.msra.mxu0 0
  %689 = vmatprep.subr.bf16.mxu0 0
  %690 = vmatpush1.bf16.msra.mxu0 0
  %691 = vmatprep.subr.bf16.mxu0 0
  %692 = vmatpush1.bf16.msra.mxu0 0
  %693 = vmatprep.subr.bf16.mxu0 0
  %694 = vmatpush1.bf16.msra.mxu0 0
  %695 = vmatprep.subr.bf16.mxu0 0
  %696 = vmatpush1.bf16.msra.mxu0 0
  %697 = vmatprep.subr.bf16.mxu0 0
  %698 = vmatpush1.bf16.msra.mxu0 0
  %699 = vmatprep.subr.bf16.mxu0 0
  %700 = vmatpush1.bf16.msra.mxu0 0
  %701 = vmatprep.subr.bf16.mxu0 0
  %702 = vmatpush1.bf16.msra.mxu0 0
  %703 = vmatprep.subr.bf16.mxu0 0
  %704 = vmatpush1.bf16.msra.mxu0 0
  %705 = vmatprep.mubr.bf16.mxu0 0
  %706 = vmatmul.mubr.bf16.gmra.mrb[0].mxu0 %v202
  %v707 = vpop.f32.mrb[0].mxu0
  %v708 = vadd.f32 %v644, %v707
  %v709 = vpop.f32.mrb[0].mxu0
  %v710 = vpop.f32.mrb[0].mxu0
  %v711 = vadd.f32 %v647, %v710
  %v712 = vpop.f32.mrb[0].mxu0
  %713 = vmatprep.mubr.bf16.mxu0 0
  %714 = vmatmul.mubr.bf16.gmra.mrb[0].mxu0 %v205
  %v715 = vpop.f32.mrb[0].mxu0
  %v716 = vadd.f32 %v652, %v715
  %v717 = vpop.f32.mrb[0].mxu0
  %v718 = vpop.f32.mrb[0].mxu0
  %v719 = vadd.f32 %v655, %v718
  %v720 = vpop.f32.mrb[0].mxu0
  %721 = vmatprep.mubr.bf16.mxu0 0
  %722 = vmatmul.mubr.bf16.gmra.mrb[0].mxu0 %v208
  %v723 = vpop.f32.mrb[0].mxu0
  %v724 = vadd.f32 %v660, %v723
  %v725 = vpop.f32.mrb[0].mxu0
  %v726 = vpop.f32.mrb[0].mxu0
  %v727 = vadd.f32 %v663, %v726
  %v728 = vpop.f32.mrb[0].mxu0
  %729 = vmatprep.mubr.bf16.mxu0 0
  %730 = vmatmul.mubr.bf16.gmra.mrb[0].mxu0 %v211
  %v731 = vpop.f32.mrb[0].mxu0
  %v732 = vadd.f32 %v668, %v731
  %v733 = vpop.f32.mrb[0].mxu0
  %v734 = vpop.f32.mrb[0].mxu0
  %v735 = vpop.f32.mrb[0].mxu0
  %736 = vdwg.mxu0
  %v737 = vadd.f32 %v708, %v160
  %v738 = vadd.f32 %v711, %v163
  %v739 = vadd.f32 %v716, %v168
  %v740 = vadd.f32 %v719, %v171
  %v741 = vadd.f32 %v724, %v176
  %v742 = vadd.f32 %v727, %v179
  %v743 = vadd.f32 %v732, %v184
  %v744 = vmax.f32 %v737, 0.0
  %v745 = vmax.f32 %v738, 0.0
  %v746 = vmax.f32 %v739, 0.0
  %v747 = vmax.f32 %v740, 0.0
  %v748 = vmax.f32 %v741, 0.0
  %v749 = vmax.f32 %v742, 0.0
  %v750 = vmax.f32 %v743, 0.0
  %v751 = vpack.c.bf16 %v745, %v744
  %v752 = vpack.c.bf16 %v747, %v746
  %v753 = vpack.c.bf16 %v749, %v748
  %v754 = vpack.c.bf16 %v750, %v750
  %v756 = vsel %vm112, %v751, 0
  %v759 = vsel %vm112, %v752, 0
  %v762 = vsel %vm112, %v753, 0
  %v765 = vsel %vm112, %v754, 0
  %767 = vmatprep.subr.bf16.mxu0 0
  %768 = vmatpush1.bf16.msra.mxu0 %v397
  %769 = vmatprep.subr.bf16.mxu0 0
  %770 = vmatpush1.bf16.msra.mxu0 %v398
  %771 = vmatprep.subr.bf16.mxu0 0
  %772 = vmatpush1.bf16.msra.mxu0 0
  %773 = vmatprep.subr.bf16.mxu0 0
  %774 = vmatpush1.bf16.msra.mxu0 0
  %775 = vmatprep.subr.bf16.mxu0 0
  %776 = vmatpush1.bf16.msra.mxu0 0
  %777 = vmatprep.subr.bf16.mxu0 0
  %778 = vmatpush1.bf16.msra.mxu0 0
  %779 = vmatprep.subr.bf16.mxu0 0
  %780 = vmatpush1.bf16.msra.mxu0 0
  %781 = vmatprep.subr.bf16.mxu0 0
  %782 = vmatpush1.bf16.msra.mxu0 0
  %783 = vmatprep.subr.bf16.mxu0 0
  %784 = vmatpush1.bf16.msra.mxu0 0
  %785 = vmatprep.subr.bf16.mxu0 0
  %786 = vmatpush1.bf16.msra.mxu0 0
  %787 = vmatprep.subr.bf16.mxu0 0
  %788 = vmatpush1.bf16.msra.mxu0 0
  %789 = vmatprep.subr.bf16.mxu0 0
  %790 = vmatpush1.bf16.msra.mxu0 0
  %791 = vmatprep.subr.bf16.mxu0 0
  %792 = vmatpush1.bf16.msra.mxu0 0
  %793 = vmatprep.subr.bf16.mxu0 0
  %794 = vmatpush1.bf16.msra.mxu0 0
  %795 = vmatprep.subr.bf16.mxu0 0
  %796 = vmatpush1.bf16.msra.mxu0 0
  %797 = vmatprep.subr.bf16.mxu0 0
  %798 = vmatpush1.bf16.msra.mxu0 0
  %799 = vmatprep.mubr.bf16.mxu0 0
  %800 = vmatmul.mubr.bf16.gmra.mrb[0].mxu0 %v756
  %v801 = vpop.f32.mrb[0].mxu0
  %v802 = vadd.f32 %v387, %v801
  %v803 = vpop.f32.mrb[0].mxu0
  %v804 = vpop.f32.mrb[0].mxu0
  %v805 = vadd.f32 %v387, %v804
  %v806 = vpop.f32.mrb[0].mxu0
  %807 = vmatprep.mubr.bf16.mxu0 0
  %808 = vmatmul.mubr.bf16.gmra.mrb[0].mxu0 %v759
  %v809 = vpop.f32.mrb[0].mxu0
  %v810 = vadd.f32 %v387, %v809
  %v811 = vpop.f32.mrb[0].mxu0
  %v812 = vpop.f32.mrb[0].mxu0
  %v813 = vadd.f32 %v387, %v812
  %v814 = vpop.f32.mrb[0].mxu0
  %815 = vmatprep.mubr.bf16.mxu0 0
  %816 = vmatmul.mubr.bf16.gmra.mrb[0].mxu0 %v762
  %v817 = vpop.f32.mrb[0].mxu0
  %v818 = vadd.f32 %v387, %v817
  %v819 = vpop.f32.mrb[0].mxu0
  %v820 = vpop.f32.mrb[0].mxu0
  %v821 = vadd.f32 %v387, %v820
  %v822 = vpop.f32.mrb[0].mxu0
  %823 = vmatprep.mubr.bf16.mxu0 0
  %824 = vmatmul.mubr.bf16.gmra.mrb[0].mxu0 %v765
  %v825 = vpop.f32.mrb[0].mxu0
  %v826 = vadd.f32 %v387, %v825
  %v827 = vpop.f32.mrb[0].mxu0
  %v828 = vpop.f32.mrb[0].mxu0
  %v829 = vpop.f32.mrb[0].mxu0
  %830 = vdwg.mxu0
  %v831 = vmax.f32 %v802, 0.0
  %v832 = vmax.f32 %v805, 0.0
  %v833 = vmax.f32 %v810, 0.0
  %v834 = vmax.f32 %v813, 0.0
  %v835 = vmax.f32 %v818, 0.0
  %v836 = vmax.f32 %v821, 0.0
  %v837 = vmax.f32 %v826, 0.0
  %v838 = vsel %vm112, %v831, 0.0
  %839 = vadd.xlane.f32.xlu0 %v838
  %v840 = vpop.xlane.xlu0 %839
  %v841 = vsel %vm112, %v832, 0.0
  %842 = vadd.xlane.f32.xlu0 %v841
  %v843 = vpop.xlane.xlu0 %842
  %v844 = vsel %vm112, %v833, 0.0
  %845 = vadd.xlane.f32.xlu0 %v844
  %v846 = vpop.xlane.xlu0 %845
  %v847 = vsel %vm112, %v834, 0.0
  %848 = vadd.xlane.f32.xlu0 %v847
  %v849 = vpop.xlane.xlu0 %848
  %v850 = vsel %vm112, %v835, 0.0
  %851 = vadd.xlane.f32.xlu0 %v850
  %v852 = vpop.xlane.xlu0 %851
  %v853 = vsel %vm112, %v836, 0.0
  %854 = vadd.xlane.f32.xlu0 %v853
  %v855 = vpop.xlane.xlu0 %854
  %v856 = vsel %vm112, %v837, 0.0
  %857 = vadd.xlane.f32.xlu0 %v856
  %v858 = vpop.xlane.xlu0 %857
  %v859 = vmul.f32 %v840, %v505
  %v860 = vmul.f32 %v843, %v505
  %v861 = vmul.f32 %v846, %v505
  %v862 = vmul.f32 %v849, %v505
  %v863 = vmul.f32 %v852, %v505
  %v864 = vmul.f32 %v855, %v505
  %v865 = vmul.f32 %v858, %v505
  %v866 = vsub.f32 %v831, %v859
  %v867 = vsub.f32 %v832, %v860
  %v868 = vsub.f32 %v833, %v861
  %v869 = vsub.f32 %v834, %v862
  %v870 = vsub.f32 %v835, %v863
  %v871 = vsub.f32 %v836, %v864
  %v872 = vsub.f32 %v837, %v865
  %v873 = vmul.f32 %v866, %v866
  %v874 = vmul.f32 %v867, %v867
  %v875 = vmul.f32 %v868, %v868
  %v876 = vmul.f32 %v869, %v869
  %v877 = vmul.f32 %v870, %v870
  %v878 = vmul.f32 %v871, %v871
  %v879 = vmul.f32 %v872, %v872
  %v880 = vsel %vm112, %v873, 0.0
  %881 = vadd.xlane.f32.xlu0 %v880
  %v882 = vpop.xlane.xlu0 %881
  %v883 = vsel %vm112, %v874, 0.0
  %884 = vadd.xlane.f32.xlu0 %v883
  %v885 = vpop.xlane.xlu0 %884
  %v886 = vsel %vm112, %v875, 0.0
  %887 = vadd.xlane.f32.xlu0 %v886
  %v888 = vpop.xlane.xlu0 %887
  %v889 = vsel %vm112, %v876, 0.0
  %890 = vadd.xlane.f32.xlu0 %v889
  %v891 = vpop.xlane.xlu0 %890
  %v892 = vsel %vm112, %v877, 0.0
  %893 = vadd.xlane.f32.xlu0 %v892
  %v894 = vpop.xlane.xlu0 %893
  %v895 = vsel %vm112, %v878, 0.0
  %896 = vadd.xlane.f32.xlu0 %v895
  %v897 = vpop.xlane.xlu0 %896
  %v898 = vsel %vm112, %v879, 0.0
  %899 = vadd.xlane.f32.xlu0 %v898
  %v900 = vpop.xlane.xlu0 %899
  %v901 = vmul.f32 %v882, %v505
  %v902 = vmul.f32 %v885, %v505
  %v903 = vmul.f32 %v888, %v505
  %v904 = vmul.f32 %v891, %v505
  %v905 = vmul.f32 %v894, %v505
  %v906 = vmul.f32 %v897, %v505
  %v907 = vmul.f32 %v900, %v505
  %v908 = vadd.f32 %v901, 1e-05
  %v909 = vadd.f32 %v902, 1e-05
  %v910 = vadd.f32 %v903, 1e-05
  %v911 = vadd.f32 %v904, 1e-05
  %v912 = vadd.f32 %v905, 1e-05
  %v913 = vadd.f32 %v906, 1e-05
  %v914 = vadd.f32 %v907, 1e-05
  %v915 = vrsqrt.pop %v908
  %v916 = vrsqrt.pop %v909
  %v917 = vrsqrt.pop %v910
  %v918 = vrsqrt.pop %v911
  %v919 = vrsqrt.pop %v912
  %v920 = vrsqrt.pop %v913
  %v921 = vrsqrt.pop %v914
  %v922 = vmul.f32 %v866, %v915
  %v923 = vmul.f32 %v867, %v916
  %v924 = vmul.f32 %v868, %v917
  %v925 = vmul.f32 %v869, %v918
  %v926 = vmul.f32 %v870, %v919
  %v927 = vmul.f32 %v871, %v920
  %v928 = vmul.f32 %v872, %v921
  %v929 = vmul.f32 %v922, %v580
  %v930 = vmul.f32 %v923, %v580
  %v931 = vmul.f32 %v924, %v580
  %v932 = vmul.f32 %v925, %v580
  %v933 = vmul.f32 %v926, %v580
  %v934 = vmul.f32 %v927, %v580
  %v935 = vmul.f32 %v928, %v580
  %v936 = vadd.f32 %v929, %v593
  %v937 = vadd.f32 %v930, %v593
  %v938 = vadd.f32 %v931, %v593
  %v939 = vadd.f32 %v932, %v593
  %v940 = vadd.f32 %v933, %v593
  %v941 = vadd.f32 %v934, %v593
  %v942 = vadd.f32 %v935, %v593
  %v943 = vadd.f32 %v936, %v63
  %v944 = vadd.f32 %v937, %v64
  %v945 = vadd.f32 %v938, %v65
  %v946 = vadd.f32 %v939, %v66
  %v947 = vadd.f32 %v940, %v67
  %v948 = vadd.f32 %v941, %v68
  %v949 = vadd.f32 %v942, %v69
  %950 = vst.msk [vmem:[%s12] sm:$0xff] %vm112, %v943
  %951 = vst.msk [vmem:[%s12 + $0x8] sm:$0xff] %vm112, %v944
  %952 = vst.msk [vmem:[%s12 + $0x10] sm:$0xff] %vm112, %v945
  %953 = vst.msk [vmem:[%s12 + $0x18] sm:$0xff] %vm112, %v946
  %954 = vst.msk [vmem:[%s12 + $0x20] sm:$0xff] %vm112, %v947
  %955 = vst.msk [vmem:[%s12 + $0x28] sm:$0xff] %vm112, %v948
  %956 = vst.msk [vmem:[%s12 + $0x30] sm:$0xff] %vm112, %v949
  // Predicated region
  $region46: #{encode_process_decode.9} parent=0 // pred_check
    _
  $region47: #{encode_process_decode.9} parent=0 // pred_check_branch
    %958 = sbr.rel (0) target = $region49
  $region48: #{encode_process_decode.9} parent=0 // pred_region
    _
  $region49: #{encode_process_decode.9} parent=0 // pred_fallthru
    _
  // Predicated region
  $region50: #{encode_process_decode.9} parent=0 // pred_check
    _
  $region51: #{encode_process_decode.9} parent=0 // pred_check_branch
    %960 = sbr.rel (0) target = $region53
  $region52: #{encode_process_decode.9} parent=0 // pred_region
    _
  $region53: #{encode_process_decode.9} parent=0 // pred_fallthru
    _
  // Predicated region
  $region54: #{encode_process_decode.9} parent=0 // pred_check
    _
  $region55: #{encode_process_decode.9} parent=0 // pred_check_branch
    %962 = sbr.rel (0) target = $region57
  $region56: #{encode_process_decode.9} parent=0 // pred_region
    _
  $region57: #{encode_process_decode.9} parent=0 // pred_fallthru
    _
  // Predicated region
  $region58: #{encode_process_decode.9} parent=0 // pred_check
    _
  $region59: #{encode_process_decode.9} parent=0 // pred_check_branch
    %964 = sbr.rel (0) target = $region61
  $region60: #{encode_process_decode.9} parent=0 // pred_region
    _
  $region61: #{encode_process_decode.9} parent=0 // pred_fallthru
    _

// kernel: encode_process_decode.10
$region0: #{encode_process_decode.10}
  #allocation0 [shape = 'u32[]', space=smem, size = 0x4, offset = 0x4, fixed_abs, tag = 'smem constant byte address 0x4 - core index']
  #allocation1 [shape = 'u32[144,128]{1,0:T(1,128)}', space=vmem, size = 0x12000, scoped, tag = 'internal scratch']
  %s0 = inlined_call_operand.vmem [shape: f32[24,32], index: 0, kind: input, shape index: {}]
  %s1 = inlined_call_operand.vmem [shape: f32[24,32], index: 1, kind: input, shape index: {}]
  %s2 = inlined_call_operand.vmem [shape: bf16[32,32], index: 2, kind: input, shape index: {}]
  %s3 = inlined_call_operand.vmem [shape: bf16[32,32], index: 3, kind: input, shape index: {}]
  %s4 = inlined_call_operand.vmem [shape: f32[1,32], index: 4, kind: input, shape index: {}]
  %s5 = inlined_call_operand.vmem [shape: bf16[32,32], index: 5, kind: input, shape index: {}]
  %s6 = inlined_call_operand.vmem [shape: f32[1,32], index: 6, kind: input, shape index: {}]
  %s7 = inlined_call_operand.vmem [shape: f32[1,32], index: 7, kind: input, shape index: {}]
  %s8 = inlined_call_operand.vmem [shape: f32[1,32], index: 8, kind: input, shape index: {}]
  %s9 = inlined_call_operand.vmem [shape: f32[24,32], index: 9, kind: output, shape index: {}]
  %s10 = sld [smem:[#allocation0]]
  $region46: #{encode_process_decode.10} parent=0
    _
  %s12 = ssub.s32 1, %s10
  %s13 = scalar_select 0, %s12, %s10
  // Predicated region
  $region2: #{encode_process_decode.10} parent=0 // pred_check
    _
  $region3: #{encode_process_decode.10} parent=0 // pred_check_branch
    %15 = sbr.rel (0) target = $region5
  $region4: #{encode_process_decode.10} parent=0 // pred_region
    _
  $region5: #{encode_process_decode.10} parent=0 // pred_fallthru
    _
  // Predicated region
  $region6: #{encode_process_decode.10} parent=0 // pred_check
    _
  $region7: #{encode_process_decode.10} parent=0 // pred_check_branch
    %17 = sbr.rel (0) target = $region9
  $region8: #{encode_process_decode.10} parent=0 // pred_region
    _
  $region9: #{encode_process_decode.10} parent=0 // pred_fallthru
    _
  // Predicated region
  $region10: #{encode_process_decode.10} parent=0 // pred_check
    _
  $region11: #{encode_process_decode.10} parent=0 // pred_check_branch
    %19 = sbr.rel (0) target = $region13
  $region12: #{encode_process_decode.10} parent=0 // pred_region
    _
  $region13: #{encode_process_decode.10} parent=0 // pred_fallthru
    _
  // Predicated region
  $region14: #{encode_process_decode.10} parent=0 // pred_check
    _
  $region15: #{encode_process_decode.10} parent=0 // pred_check_branch
    %21 = sbr.rel (0) target = $region17
  $region16: #{encode_process_decode.10} parent=0 // pred_region
    _
  $region17: #{encode_process_decode.10} parent=0 // pred_fallthru
    _
  // Predicated region
  $region18: #{encode_process_decode.10} parent=0 // pred_check
    _
  $region19: #{encode_process_decode.10} parent=0 // pred_check_branch
    %23 = sbr.rel (0) target = $region21
  $region20: #{encode_process_decode.10} parent=0 // pred_region
    _
  $region21: #{encode_process_decode.10} parent=0 // pred_fallthru
    _
  // Predicated region
  $region22: #{encode_process_decode.10} parent=0 // pred_check
    _
  $region23: #{encode_process_decode.10} parent=0 // pred_check_branch
    %25 = sbr.rel (0) target = $region25
  $region24: #{encode_process_decode.10} parent=0 // pred_region
    _
  $region25: #{encode_process_decode.10} parent=0 // pred_fallthru
    _
  // Predicated region
  $region26: #{encode_process_decode.10} parent=0 // pred_check
    _
  $region27: #{encode_process_decode.10} parent=0 // pred_check_branch
    %27 = sbr.rel (0) target = $region29
  $region28: #{encode_process_decode.10} parent=0 // pred_region
    _
  $region29: #{encode_process_decode.10} parent=0 // pred_fallthru
    _
  // Predicated region
  $region30: #{encode_process_decode.10} parent=0 // pred_check
    _
  $region31: #{encode_process_decode.10} parent=0 // pred_check_branch
    %29 = sbr.rel (0) target = $region33
  $region32: #{encode_process_decode.10} parent=0 // pred_region
    _
  $region33: #{encode_process_decode.10} parent=0 // pred_fallthru
    _
  // Predicated region
  $region34: #{encode_process_decode.10} parent=0 // pred_check
    _
  $region35: #{encode_process_decode.10} parent=0 // pred_check_branch
    %31 = sbr.rel (0) target = $region37
  $region36: #{encode_process_decode.10} parent=0 // pred_region
    _
  $region37: #{encode_process_decode.10} parent=0 // pred_fallthru
    _
  %v33 = vld [vmem:[%s0] sm:$0xff]
  %v34 = vld [vmem:[%s0 + $0x8] sm:$0xff]
  %v35 = vld [vmem:[%s0 + $0x10] sm:$0xff]
  %v36 = vpack.c.bf16 %v34, %v33
  %v37 = vpack.c.bf16 %v35, %v35
  %v38 = vld [vmem:[%s1] sm:$0xff]
  %v39 = vld [vmem:[%s1 + $0x8] sm:$0xff]
  %v40 = vld [vmem:[%s1 + $0x10] sm:$0xff]
  %v41 = vpack.c.bf16 %v39, %v38
  %v42 = vpack.c.bf16 %v40, %v40
  %v43 = vld [vmem:[%s2] sm:$0xf]
  %v44 = vld [vmem:[%s2 + $0x4] sm:$0xf]
  %v45 = vld [vmem:[%s2 + $0x8] sm:$0xf]
  %v46 = vld [vmem:[%s2 + $0xc] sm:$0xf]
  %v47 = vld [vmem:[%s3] sm:$0xf]
  %v48 = vld [vmem:[%s3 + $0x4] sm:$0xf]
  %v49 = vld [vmem:[%s3 + $0x8] sm:$0xf]
  %v50 = vld [vmem:[%s3 + $0xc] sm:$0xf]
  %v55 = vunpack.c.l.b16 %v47
  %v56 = vunpack.c.l.b16 %v48
  %v57 = vunpack.c.l.b16 %v49
  %v58 = vunpack.c.l.b16 %v50
  %v59 = vpack.c.b16 %v56, %v55
  %v60 = vpack.c.b16 %v58, %v57
  %vm63 = vcmask 261120
  %v65 = vsel %vm63, %v41, 0
  %v68 = vsel %vm63, %v42, 0
  %70 = vmatprep.subr.bf16.mxu0 0
  %71 = vmatpush1.bf16.msra.mxu0 %v59
  %72 = vmatprep.subr.bf16.mxu0 0
  %73 = vmatpush1.bf16.msra.mxu0 %v60
  %74 = vmatprep.subr.bf16.mxu0 0
  %75 = vmatpush1.bf16.msra.mxu0 0
  %76 = vmatprep.subr.bf16.mxu0 0
  %77 = vmatpush1.bf16.msra.mxu0 0
  %78 = vmatprep.subr.bf16.mxu0 0
  %79 = vmatpush1.bf16.msra.mxu0 0
  %80 = vmatprep.subr.bf16.mxu0 0
  %81 = vmatpush1.bf16.msra.mxu0 0
  %82 = vmatprep.subr.bf16.mxu0 0
  %83 = vmatpush1.bf16.msra.mxu0 0
  %84 = vmatprep.subr.bf16.mxu0 0
  %85 = vmatpush1.bf16.msra.mxu0 0
  %86 = vmatprep.subr.bf16.mxu0 0
  %87 = vmatpush1.bf16.msra.mxu0 0
  %88 = vmatprep.subr.bf16.mxu0 0
  %89 = vmatpush1.bf16.msra.mxu0 0
  %90 = vmatprep.subr.bf16.mxu0 0
  %91 = vmatpush1.bf16.msra.mxu0 0
  %92 = vmatprep.subr.bf16.mxu0 0
  %93 = vmatpush1.bf16.msra.mxu0 0
  %94 = vmatprep.subr.bf16.mxu0 0
  %95 = vmatpush1.bf16.msra.mxu0 0
  %96 = vmatprep.subr.bf16.mxu0 0
  %97 = vmatpush1.bf16.msra.mxu0 0
  %98 = vmatprep.subr.bf16.mxu0 0
  %99 = vmatpush1.bf16.msra.mxu0 0
  %100 = vmatprep.subr.bf16.mxu0 0
  %101 = vmatpush1.bf16.msra.mxu0 0
  %102 = vmatprep.mubr.bf16.mxu0 0
  %103 = vmatmul.mubr.bf16.gmra.mrb[0].mxu0 %v65
  %v104 = vpop.f32.mrb[0].mxu0
  %v105 = vadd.f32 0.0, %v104
  %v106 = vpop.f32.mrb[0].mxu0
  %v107 = vpop.f32.mrb[0].mxu0
  %v108 = vadd.f32 0.0, %v107
  %v109 = vpop.f32.mrb[0].mxu0
  %110 = vmatprep.mubr.bf16.mxu0 0
  %111 = vmatmul.mubr.bf16.gmra.mrb[0].mxu0 %v68
  %v112 = vpop.f32.mrb[0].mxu0
  %v113 = vadd.f32 0.0, %v112
  %v114 = vpop.f32.mrb[0].mxu0
  %v115 = vpop.f32.mrb[0].mxu0
  %v116 = vpop.f32.mrb[0].mxu0
  %117 = vdwg.mxu0
  %v122 = vunpack.c.l.b16 %v43
  %v123 = vunpack.c.l.b16 %v44
  %v124 = vunpack.c.l.b16 %v45
  %v125 = vunpack.c.l.b16 %v46
  %v126 = vpack.c.b16 %v123, %v122
  %v127 = vpack.c.b16 %v125, %v124
  %v131 = vsel %vm63, %v36, 0
  %v134 = vsel %vm63, %v37, 0
  %136 = vmatprep.subr.bf16.mxu0 0
  %137 = vmatpush1.bf16.msra.mxu0 %v126
  %138 = vmatprep.subr.bf16.mxu0 0
  %139 = vmatpush1.bf16.msra.mxu0 %v127
  %140 = vmatprep.subr.bf16.mxu0 0
  %141 = vmatpush1.bf16.msra.mxu0 0
  %142 = vmatprep.subr.bf16.mxu0 0
  %143 = vmatpush1.bf16.msra.mxu0 0
  %144 = vmatprep.subr.bf16.mxu0 0
  %145 = vmatpush1.bf16.msra.mxu0 0
  %146 = vmatprep.subr.bf16.mxu0 0
  %147 = vmatpush1.bf16.msra.mxu0 0
  %148 = vmatprep.subr.bf16.mxu0 0
  %149 = vmatpush1.bf16.msra.mxu0 0
  %150 = vmatprep.subr.bf16.mxu0 0
  %151 = vmatpush1.bf16.msra.mxu0 0
  %152 = vmatprep.subr.bf16.mxu0 0
  %153 = vmatpush1.bf16.msra.mxu0 0
  %154 = vmatprep.subr.bf16.mxu0 0
  %155 = vmatpush1.bf16.msra.mxu0 0
  %156 = vmatprep.subr.bf16.mxu0 0
  %157 = vmatpush1.bf16.msra.mxu0 0
  %158 = vmatprep.subr.bf16.mxu0 0
  %159 = vmatpush1.bf16.msra.mxu0 0
  %160 = vmatprep.subr.bf16.mxu0 0
  %161 = vmatpush1.bf16.msra.mxu0 0
  %162 = vmatprep.subr.bf16.mxu0 0
  %163 = vmatpush1.bf16.msra.mxu0 0
  %164 = vmatprep.subr.bf16.mxu0 0
  %165 = vmatpush1.bf16.msra.mxu0 0
  %166 = vmatprep.subr.bf16.mxu0 0
  %167 = vmatpush1.bf16.msra.mxu0 0
  %168 = vmatprep.mubr.bf16.mxu0 0
  %169 = vmatmul.mubr.bf16.gmra.mrb[0].mxu0 %v131
  %v170 = vpop.f32.mrb[0].mxu0
  %v171 = vadd.f32 %v105, %v170
  %v172 = vpop.f32.mrb[0].mxu0
  %v173 = vpop.f32.mrb[0].mxu0
  %v174 = vadd.f32 %v108, %v173
  %v175 = vpop.f32.mrb[0].mxu0
  %176 = vmatprep.mubr.bf16.mxu0 0
  %177 = vmatmul.mubr.bf16.gmra.mrb[0].mxu0 %v134
  %v178 = vpop.f32.mrb[0].mxu0
  %v179 = vadd.f32 %v113, %v178
  %v180 = vpop.f32.mrb[0].mxu0
  %v181 = vpop.f32.mrb[0].mxu0
  %v182 = vpop.f32.mrb[0].mxu0
  %183 = vdwg.mxu0
  %v184 = vld [vmem:[%s4] sm:$0x1]
  %v186 = vlaneseq
  %v187 = vshrl.u32 %v186, 7
  %v188 = vsub.s32 0, %v187
  %v189 = vrot.slane %v184, %v188
  %v191 = vadd.f32 %v171, %v189
  %v192 = vadd.f32 %v174, %v189
  %v193 = vadd.f32 %v179, %v189
  %v194 = vld [vmem:[%s5] sm:$0xf]
  %v195 = vld [vmem:[%s5 + $0x4] sm:$0xf]
  %v196 = vld [vmem:[%s5 + $0x8] sm:$0xf]
  %v197 = vld [vmem:[%s5 + $0xc] sm:$0xf]
  %v198 = vld [vmem:[%s6] sm:$0x1]
  %v199 = vld [vmem:[%s7] sm:$0x1]
  %v200 = vld [vmem:[%s8] sm:$0x1]
  %v201 = vmax.f32 %v191, 0.0
  %v202 = vmax.f32 %v192, 0.0
  %v203 = vmax.f32 %v193, 0.0
  %v204 = vpack.c.bf16 %v202, %v201
  %v205 = vpack.c.bf16 %v203, %v203
  %v207 = vlaneseq
  %v208 = vshrl.u32 %v207, 7
  %v209 = vsub.s32 0, %v208
  %v210 = vrot.slane %v198, %v209
  %v216 = vunpack.c.l.b16 %v194
  %v217 = vunpack.c.l.b16 %v195
  %v218 = vunpack.c.l.b16 %v196
  %v219 = vunpack.c.l.b16 %v197
  %v220 = vpack.c.b16 %v217, %v216
  %v221 = vpack.c.b16 %v219, %v218
  %v225 = vsel %vm63, %v204, 0
  %v228 = vsel %vm63, %v205, 0
  %230 = vmatprep.subr.bf16.mxu0 0
  %231 = vmatpush1.bf16.msra.mxu0 %v220
  %232 = vmatprep.subr.bf16.mxu0 0
  %233 = vmatpush1.bf16.msra.mxu0 %v221
  %234 = vmatprep.subr.bf16.mxu0 0
  %235 = vmatpush1.bf16.msra.mxu0 0
  %236 = vmatprep.subr.bf16.mxu0 0
  %237 = vmatpush1.bf16.msra.mxu0 0
  %238 = vmatprep.subr.bf16.mxu0 0
  %239 = vmatpush1.bf16.msra.mxu0 0
  %240 = vmatprep.subr.bf16.mxu0 0
  %241 = vmatpush1.bf16.msra.mxu0 0
  %242 = vmatprep.subr.bf16.mxu0 0
  %243 = vmatpush1.bf16.msra.mxu0 0
  %244 = vmatprep.subr.bf16.mxu0 0
  %245 = vmatpush1.bf16.msra.mxu0 0
  %246 = vmatprep.subr.bf16.mxu0 0
  %247 = vmatpush1.bf16.msra.mxu0 0
  %248 = vmatprep.subr.bf16.mxu0 0
  %249 = vmatpush1.bf16.msra.mxu0 0
  %250 = vmatprep.subr.bf16.mxu0 0
  %251 = vmatpush1.bf16.msra.mxu0 0
  %252 = vmatprep.subr.bf16.mxu0 0
  %253 = vmatpush1.bf16.msra.mxu0 0
  %254 = vmatprep.subr.bf16.mxu0 0
  %255 = vmatpush1.bf16.msra.mxu0 0
  %256 = vmatprep.subr.bf16.mxu0 0
  %257 = vmatpush1.bf16.msra.mxu0 0
  %258 = vmatprep.subr.bf16.mxu0 0
  %259 = vmatpush1.bf16.msra.mxu0 0
  %260 = vmatprep.subr.bf16.mxu0 0
  %261 = vmatpush1.bf16.msra.mxu0 0
  %262 = vmatprep.mubr.bf16.mxu0 0
  %263 = vmatmul.mubr.bf16.gmra.mrb[0].mxu0 %v225
  %v264 = vpop.f32.mrb[0].mxu0
  %v265 = vadd.f32 %v210, %v264
  %v266 = vpop.f32.mrb[0].mxu0
  %v267 = vpop.f32.mrb[0].mxu0
  %v268 = vadd.f32 %v210, %v267
  %v269 = vpop.f32.mrb[0].mxu0
  %270 = vmatprep.mubr.bf16.mxu0 0
  %271 = vmatmul.mubr.bf16.gmra.mrb[0].mxu0 %v228
  %v272 = vpop.f32.mrb[0].mxu0
  %v273 = vadd.f32 %v210, %v272
  %v274 = vpop.f32.mrb[0].mxu0
  %v275 = vpop.f32.mrb[0].mxu0
  %v276 = vpop.f32.mrb[0].mxu0
  %277 = vdwg.mxu0
  %v278 = vmax.f32 %v265, 0.0
  %v279 = vmax.f32 %v268, 0.0
  %v280 = vmax.f32 %v273, 0.0
  %v281 = vsel %vm63, %v278, 0.0
  %282 = vadd.xlane.f32.xlu0 %v281
  %v283 = vpop.xlane.xlu0 %282
  %v284 = vsel %vm63, %v279, 0.0
  %285 = vadd.xlane.f32.xlu0 %v284
  %v286 = vpop.xlane.xlu0 %285
  %v287 = vsel %vm63, %v280, 0.0
  %288 = vadd.xlane.f32.xlu0 %v287
  %v289 = vpop.xlane.xlu0 %288
  %v290 = vrcp.pop 32.0
  %v291 = vmul.f32 %v283, %v290
  %v292 = vmul.f32 %v286, %v290
  %v293 = vmul.f32 %v289, %v290
  %v294 = vsub.f32 %v278, %v291
  %v295 = vsub.f32 %v279, %v292
  %v296 = vsub.f32 %v280, %v293
  %v297 = vmul.f32 %v294, %v294
  %v298 = vmul.f32 %v295, %v295
  %v299 = vmul.f32 %v296, %v296
  %v300 = vsel %vm63, %v297, 0.0
  %301 = vadd.xlane.f32.xlu0 %v300
  %v302 = vpop.xlane.xlu0 %301
  %v303 = vsel %vm63, %v298, 0.0
  %304 = vadd.xlane.f32.xlu0 %v303
  %v305 = vpop.xlane.xlu0 %304
  %v306 = vsel %vm63, %v299, 0.0
  %307 = vadd.xlane.f32.xlu0 %v306
  %v308 = vpop.xlane.xlu0 %307
  %v309 = vmul.f32 %v302, %v290
  %v310 = vmul.f32 %v305, %v290
  %v311 = vmul.f32 %v308, %v290
  %v312 = vadd.f32 %v309, 1e-05
  %v313 = vadd.f32 %v310, 1e-05
  %v314 = vadd.f32 %v311, 1e-05
  %v315 = vrsqrt.pop %v312
  %v316 = vrsqrt.pop %v313
  %v317 = vrsqrt.pop %v314
  %v318 = vmul.f32 %v294, %v315
  %v319 = vmul.f32 %v295, %v316
  %v320 = vmul.f32 %v296, %v317
  %v322 = vlaneseq
  %v323 = vshrl.u32 %v322, 7
  %v324 = vsub.s32 0, %v323
  %v325 = vrot.slane %v199, %v324
  %v327 = vmul.f32 %v318, %v325
  %v328 = vmul.f32 %v319, %v325
  %v329 = vmul.f32 %v320, %v325
  %v331 = vlaneseq
  %v332 = vshrl.u32 %v331, 7
  %v333 = vsub.s32 0, %v332
  %v334 = vrot.slane %v200, %v333
  %v336 = vadd.f32 %v327, %v334
  %v337 = vadd.f32 %v328, %v334
  %v338 = vadd.f32 %v329, %v334
  %v339 = vadd.f32 %v336, %v38
  %v340 = vadd.f32 %v337, %v39
  %v341 = vadd.f32 %v338, %v40
  %342 = vst.msk [vmem:[%s9] sm:$0xff] %vm63, %v339
  %343 = vst.msk [vmem:[%s9 + $0x8] sm:$0xff] %vm63, %v340
  %344 = vst.msk [vmem:[%s9 + $0x10] sm:$0xff] %vm63, %v341
  // Predicated region
  $region38: #{encode_process_decode.10} parent=0 // pred_check
    _
  $region39: #{encode_process_decode.10} parent=0 // pred_check_branch
    %346 = sbr.rel (0) target = $region41
  $region40: #{encode_process_decode.10} parent=0 // pred_region
    _
  $region41: #{encode_process_decode.10} parent=0 // pred_fallthru
    _
  // Predicated region
  $region42: #{encode_process_decode.10} parent=0 // pred_check
    _
  $region43: #{encode_process_decode.10} parent=0 // pred_check_branch
    %348 = sbr.rel (0) target = $region45
  $region44: #{encode_process_decode.10} parent=0 // pred_region
    _
  $region45: #{encode_process_decode.10} parent=0 // pred_fallthru
    _

// kernel: encode_process_decode.13
$region0: #{encode_process_decode.13}
  #allocation0 [shape = 'u32[]', space=smem, size = 0x4, offset = 0x4, fixed_abs, tag = 'smem constant byte address 0x4 - core index']
  #allocation1 [shape = 'u32[144,128]{1,0:T(1,128)}', space=vmem, size = 0x12000, scoped, tag = 'internal scratch']
  %s0 = inlined_call_operand.vmem [shape: f32[24,32], index: 0, kind: input, shape index: {}]
  %s1 = inlined_call_operand.vmem [shape: bf16[32,32], index: 1, kind: input, shape index: {}]
  %s2 = inlined_call_operand.vmem [shape: f32[1,32], index: 2, kind: input, shape index: {}]
  %s3 = inlined_call_operand.vmem [shape: bf16[32,128], index: 3, kind: input, shape index: {}]
  %s4 = inlined_call_operand.vmem [shape: f32[1,128], index: 4, kind: input, shape index: {}]
  %s5 = inlined_call_operand.vmem [shape: f32[24,128], index: 5, kind: output, shape index: {}]
  %s6 = sld [smem:[#allocation0]]
  $region30: #{encode_process_decode.13} parent=0
    _
  %s8 = ssub.s32 1, %s6
  %s9 = scalar_select 0, %s8, %s6
  // Predicated region
  $region2: #{encode_process_decode.13} parent=0 // pred_check
    _
  $region3: #{encode_process_decode.13} parent=0 // pred_check_branch
    %11 = sbr.rel (0) target = $region5
  $region4: #{encode_process_decode.13} parent=0 // pred_region
    _
  $region5: #{encode_process_decode.13} parent=0 // pred_fallthru
    _
  // Predicated region
  $region6: #{encode_process_decode.13} parent=0 // pred_check
    _
  $region7: #{encode_process_decode.13} parent=0 // pred_check_branch
    %13 = sbr.rel (0) target = $region9
  $region8: #{encode_process_decode.13} parent=0 // pred_region
    _
  $region9: #{encode_process_decode.13} parent=0 // pred_fallthru
    _
  // Predicated region
  $region10: #{encode_process_decode.13} parent=0 // pred_check
    _
  $region11: #{encode_process_decode.13} parent=0 // pred_check_branch
    %15 = sbr.rel (0) target = $region13
  $region12: #{encode_process_decode.13} parent=0 // pred_region
    _
  $region13: #{encode_process_decode.13} parent=0 // pred_fallthru
    _
  // Predicated region
  $region14: #{encode_process_decode.13} parent=0 // pred_check
    _
  $region15: #{encode_process_decode.13} parent=0 // pred_check_branch
    %17 = sbr.rel (0) target = $region17
  $region16: #{encode_process_decode.13} parent=0 // pred_region
    _
  $region17: #{encode_process_decode.13} parent=0 // pred_fallthru
    _
  // Predicated region
  $region18: #{encode_process_decode.13} parent=0 // pred_check
    _
  $region19: #{encode_process_decode.13} parent=0 // pred_check_branch
    %19 = sbr.rel (0) target = $region21
  $region20: #{encode_process_decode.13} parent=0 // pred_region
    _
  $region21: #{encode_process_decode.13} parent=0 // pred_fallthru
    _
  %v21 = vld [vmem:[%s0] sm:$0xff]
  %v22 = vld [vmem:[%s0 + $0x8] sm:$0xff]
  %v23 = vld [vmem:[%s0 + $0x10] sm:$0xff]
  %v24 = vpack.c.bf16 %v22, %v21
  %v25 = vpack.c.bf16 %v23, %v23
  %v26 = vld [vmem:[%s1] sm:$0xf]
  %v27 = vld [vmem:[%s1 + $0x4] sm:$0xf]
  %v28 = vld [vmem:[%s1 + $0x8] sm:$0xf]
  %v29 = vld [vmem:[%s1 + $0xc] sm:$0xf]
  %v30 = vld [vmem:[%s2] sm:$0x1]
  %v32 = vlaneseq
  %v33 = vshrl.u32 %v32, 7
  %v34 = vsub.s32 0, %v33
  %v35 = vrot.slane %v30, %v34
  %v41 = vunpack.c.l.b16 %v26
  %v42 = vunpack.c.l.b16 %v27
  %v43 = vunpack.c.l.b16 %v28
  %v44 = vunpack.c.l.b16 %v29
  %v45 = vpack.c.b16 %v42, %v41
  %v46 = vpack.c.b16 %v44, %v43
  %vm49 = vcmask 261120
  %v51 = vsel %vm49, %v24, 0
  %v54 = vsel %vm49, %v25, 0
  %56 = vmatprep.subr.bf16.mxu0 0
  %57 = vmatpush1.bf16.msra.mxu0 %v45
  %58 = vmatprep.subr.bf16.mxu0 0
  %59 = vmatpush1.bf16.msra.mxu0 %v46
  %60 = vmatprep.subr.bf16.mxu0 0
  %61 = vmatpush1.bf16.msra.mxu0 0
  %62 = vmatprep.subr.bf16.mxu0 0
  %63 = vmatpush1.bf16.msra.mxu0 0
  %64 = vmatprep.subr.bf16.mxu0 0
  %65 = vmatpush1.bf16.msra.mxu0 0
  %66 = vmatprep.subr.bf16.mxu0 0
  %67 = vmatpush1.bf16.msra.mxu0 0
  %68 = vmatprep.subr.bf16.mxu0 0
  %69 = vmatpush1.bf16.msra.mxu0 0
  %70 = vmatprep.subr.bf16.mxu0 0
  %71 = vmatpush1.bf16.msra.mxu0 0
  %72 = vmatprep.subr.bf16.mxu0 0
  %73 = vmatpush1.bf16.msra.mxu0 0
  %74 = vmatprep.subr.bf16.mxu0 0
  %75 = vmatpush1.bf16.msra.mxu0 0
  %76 = vmatprep.subr.bf16.mxu0 0
  %77 = vmatpush1.bf16.msra.mxu0 0
  %78 = vmatprep.subr.bf16.mxu0 0
  %79 = vmatpush1.bf16.msra.mxu0 0
  %80 = vmatprep.subr.bf16.mxu0 0
  %81 = vmatpush1.bf16.msra.mxu0 0
  %82 = vmatprep.subr.bf16.mxu0 0
  %83 = vmatpush1.bf16.msra.mxu0 0
  %84 = vmatprep.subr.bf16.mxu0 0
  %85 = vmatpush1.bf16.msra.mxu0 0
  %86 = vmatprep.subr.bf16.mxu0 0
  %87 = vmatpush1.bf16.msra.mxu0 0
  %88 = vmatprep.mubr.bf16.mxu0 0
  %89 = vmatmul.mubr.bf16.gmra.mrb[0].mxu0 %v51
  %v90 = vpop.f32.mrb[0].mxu0
  %v91 = vadd.f32 %v35, %v90
  %v92 = vpop.f32.mrb[0].mxu0
  %v93 = vpop.f32.mrb[0].mxu0
  %v94 = vadd.f32 %v35, %v93
  %v95 = vpop.f32.mrb[0].mxu0
  %96 = vmatprep.mubr.bf16.mxu0 0
  %97 = vmatmul.mubr.bf16.gmra.mrb[0].mxu0 %v54
  %v98 = vpop.f32.mrb[0].mxu0
  %v99 = vadd.f32 %v35, %v98
  %v100 = vpop.f32.mrb[0].mxu0
  %v101 = vpop.f32.mrb[0].mxu0
  %v102 = vpop.f32.mrb[0].mxu0
  %103 = vdwg.mxu0
  %v104 = vmax.f32 %v91, 0.0
  %v105 = vmax.f32 %v94, 0.0
  %v106 = vmax.f32 %v99, 0.0
  %v107 = vpack.c.bf16 %v105, %v104
  %v108 = vpack.c.bf16 %v106, %v106
  %v109 = vld [vmem:[%s3] sm:$0xf]
  %v110 = vld [vmem:[%s3 + $0x4] sm:$0xf]
  %v111 = vld [vmem:[%s3 + $0x8] sm:$0xf]
  %v112 = vld [vmem:[%s3 + $0xc] sm:$0xf]
  %v113 = vld [vmem:[%s4] sm:$0x1]
  %v115 = vlaneseq
  %v116 = vshrl.u32 %v115, 7
  %v117 = vsub.s32 0, %v116
  %v118 = vrot.slane %v113, %v117
  %v124 = vunpack.c.l.b16 %v109
  %v125 = vunpack.c.l.b16 %v110
  %v126 = vunpack.c.l.b16 %v111
  %v127 = vunpack.c.l.b16 %v112
  %v128 = vpack.c.b16 %v125, %v124
  %v129 = vpack.c.b16 %v127, %v126
  %v133 = vsel %vm49, %v107, 0
  %v136 = vsel %vm49, %v108, 0
  %138 = vmatprep.subr.bf16.mxu0 0
  %139 = vmatpush1.bf16.msra.mxu0 %v128
  %140 = vmatprep.subr.bf16.mxu0 0
  %141 = vmatpush1.bf16.msra.mxu0 %v129
  %142 = vmatprep.subr.bf16.mxu0 0
  %143 = vmatpush1.bf16.msra.mxu0 0
  %144 = vmatprep.subr.bf16.mxu0 0
  %145 = vmatpush1.bf16.msra.mxu0 0
  %146 = vmatprep.subr.bf16.mxu0 0
  %147 = vmatpush1.bf16.msra.mxu0 0
  %148 = vmatprep.subr.bf16.mxu0 0
  %149 = vmatpush1.bf16.msra.mxu0 0
  %150 = vmatprep.subr.bf16.mxu0 0
  %151 = vmatpush1.bf16.msra.mxu0 0
  %152 = vmatprep.subr.bf16.mxu0 0
  %153 = vmatpush1.bf16.msra.mxu0 0
  %154 = vmatprep.subr.bf16.mxu0 0
  %155 = vmatpush1.bf16.msra.mxu0 0
  %156 = vmatprep.subr.bf16.mxu0 0
  %157 = vmatpush1.bf16.msra.mxu0 0
  %158 = vmatprep.subr.bf16.mxu0 0
  %159 = vmatpush1.bf16.msra.mxu0 0
  %160 = vmatprep.subr.bf16.mxu0 0
  %161 = vmatpush1.bf16.msra.mxu0 0
  %162 = vmatprep.subr.bf16.mxu0 0
  %163 = vmatpush1.bf16.msra.mxu0 0
  %164 = vmatprep.subr.bf16.mxu0 0
  %165 = vmatpush1.bf16.msra.mxu0 0
  %166 = vmatprep.subr.bf16.mxu0 0
  %167 = vmatpush1.bf16.msra.mxu0 0
  %168 = vmatprep.subr.bf16.mxu0 0
  %169 = vmatpush1.bf16.msra.mxu0 0
  %170 = vmatprep.mubr.bf16.mxu0 0
  %171 = vmatmul.mubr.bf16.gmra.mrb[0].mxu0 %v133
  %v172 = vpop.f32.mrb[0].mxu0
  %v173 = vadd.f32 %v118, %v172
  %v174 = vpop.f32.mrb[0].mxu0
  %v175 = vpop.f32.mrb[0].mxu0
  %v176 = vadd.f32 %v118, %v175
  %v177 = vpop.f32.mrb[0].mxu0
  %178 = vmatprep.mubr.bf16.mxu0 0
  %179 = vmatmul.mubr.bf16.gmra.mrb[0].mxu0 %v136
  %v180 = vpop.f32.mrb[0].mxu0
  %v181 = vadd.f32 %v118, %v180
  %v182 = vpop.f32.mrb[0].mxu0
  %v183 = vpop.f32.mrb[0].mxu0
  %v184 = vpop.f32.mrb[0].mxu0
  %185 = vdwg.mxu0
  %186 = vst [vmem:[%s5] sm:$0xff] %v173
  %187 = vst [vmem:[%s5 + $0x8] sm:$0xff] %v176
  %188 = vst [vmem:[%s5 + $0x10] sm:$0xff] %v181
  // Predicated region
  $region22: #{encode_process_decode.13} parent=0 // pred_check
    _
  $region23: #{encode_process_decode.13} parent=0 // pred_check_branch
    %190 = sbr.rel (0) target = $region25
  $region24: #{encode_process_decode.13} parent=0 // pred_region
    _
  $region25: #{encode_process_decode.13} parent=0 // pred_fallthru
    _
  // Predicated region
  $region26: #{encode_process_decode.13} parent=0 // pred_check
    _
  $region27: #{encode_process_decode.13} parent=0 // pred_check_branch
    %192 = sbr.rel (0) target = $region29
  $region28: #{encode_process_decode.13} parent=0 // pred_region
    _
  $region29: #{encode_process_decode.13} parent=0 // pred_fallthru
    _

// kernel: encode_process_decode.11
$region0: #{encode_process_decode.11}
  #allocation0 [shape = 'u32[]', space=smem, size = 0x4, offset = 0x4, fixed_abs, tag = 'smem constant byte address 0x4 - core index']
  #allocation1 [shape = 'u32[144,128]{1,0:T(1,128)}', space=vmem, size = 0x12000, scoped, tag = 'internal scratch']
  %s0 = inlined_call_operand.vmem [shape: f32[56,32], index: 0, kind: input, shape index: {}]
  %s1 = inlined_call_operand.vmem [shape: f32[56,32], index: 1, kind: input, shape index: {}]
  %s2 = inlined_call_operand.vmem [shape: f32[56,32], index: 2, kind: input, shape index: {}]
  %s3 = inlined_call_operand.vmem [shape: bf16[32,32], index: 3, kind: input, shape index: {}]
  %s4 = inlined_call_operand.vmem [shape: bf16[32,32], index: 4, kind: input, shape index: {}]
  %s5 = inlined_call_operand.vmem [shape: bf16[32,32], index: 5, kind: input, shape index: {}]
  %s6 = inlined_call_operand.vmem [shape: f32[1,32], index: 6, kind: input, shape index: {}]
  %s7 = inlined_call_operand.vmem [shape: bf16[32,32], index: 7, kind: input, shape index: {}]
  %s8 = inlined_call_operand.vmem [shape: f32[1,32], index: 8, kind: input, shape index: {}]
  %s9 = inlined_call_operand.vmem [shape: f32[1,32], index: 9, kind: input, shape index: {}]
  %s10 = inlined_call_operand.vmem [shape: f32[1,32], index: 10, kind: input, shape index: {}]
  %s11 = inlined_call_operand.vmem [shape: f32[56,32], index: 11, kind: output, shape index: {0}]
  %s12 = inlined_call_operand.hbm [shape: f32[56,32], index: 12, kind: output, shape index: {1}]
  %13 = xla_tuple %s11, %s12
  %s14 = sld [smem:[#allocation0]]
  $region62: #{encode_process_decode.11} parent=0
    _
  %s16 = ssub.s32 1, %s14
  %s17 = scalar_select 0, %s16, %s14
  $region1: #{encode_process_decode.11} parent=0
    #allocation2 [shape = 'u8[28672]{0}', space=vmem, size = 0x7000, scoped, tag = 'output window, operand 1, single buffered']
    #allocation3 [shape = 's32[1]{0}', space=sflag, size = 0x4, scoped, tag = 'scoped memory for encode_process_decode.11']
    %18 = vsyncpa [#allocation3], 0
    // Predicated region
    $region2: #{encode_process_decode.11} parent=1 // pred_check
      _
    $region3: #{encode_process_decode.11} parent=1 // pred_check_branch
      %20 = sbr.rel (0) target = $region5
    $region4: #{encode_process_decode.11} parent=1 // pred_region
      _
    $region5: #{encode_process_decode.11} parent=1 // pred_fallthru
      _
    // Predicated region
    $region6: #{encode_process_decode.11} parent=1 // pred_check
      _
    $region7: #{encode_process_decode.11} parent=1 // pred_check_branch
      %22 = sbr.rel (0) target = $region9
    $region8: #{encode_process_decode.11} parent=1 // pred_region
      _
    $region9: #{encode_process_decode.11} parent=1 // pred_fallthru
      _
    // Predicated region
    $region10: #{encode_process_decode.11} parent=1 // pred_check
      _
    $region11: #{encode_process_decode.11} parent=1 // pred_check_branch
      %24 = sbr.rel (0) target = $region13
    $region12: #{encode_process_decode.11} parent=1 // pred_region
      _
    $region13: #{encode_process_decode.11} parent=1 // pred_fallthru
      _
    // Predicated region
    $region14: #{encode_process_decode.11} parent=1 // pred_check
      _
    $region15: #{encode_process_decode.11} parent=1 // pred_check_branch
      %26 = sbr.rel (0) target = $region17
    $region16: #{encode_process_decode.11} parent=1 // pred_region
      _
    $region17: #{encode_process_decode.11} parent=1 // pred_fallthru
      _
    // Predicated region
    $region18: #{encode_process_decode.11} parent=1 // pred_check
      _
    $region19: #{encode_process_decode.11} parent=1 // pred_check_branch
      %28 = sbr.rel (0) target = $region21
    $region20: #{encode_process_decode.11} parent=1 // pred_region
      _
    $region21: #{encode_process_decode.11} parent=1 // pred_fallthru
      _
    // Predicated region
    $region22: #{encode_process_decode.11} parent=1 // pred_check
      _
    $region23: #{encode_process_decode.11} parent=1 // pred_check_branch
      %30 = sbr.rel (0) target = $region25
    $region24: #{encode_process_decode.11} parent=1 // pred_region
      _
    $region25: #{encode_process_decode.11} parent=1 // pred_fallthru
      _
    // Predicated region
    $region26: #{encode_process_decode.11} parent=1 // pred_check
      _
    $region27: #{encode_process_decode.11} parent=1 // pred_check_branch
      %32 = sbr.rel (0) target = $region29
    $region28: #{encode_process_decode.11} parent=1 // pred_region
      _
    $region29: #{encode_process_decode.11} parent=1 // pred_fallthru
      _
    // Predicated region
    $region30: #{encode_process_decode.11} parent=1 // pred_check
      _
    $region31: #{encode_process_decode.11} parent=1 // pred_check_branch
      %34 = sbr.rel (0) target = $region33
    $region32: #{encode_process_decode.11} parent=1 // pred_region
      _
    $region33: #{encode_process_decode.11} parent=1 // pred_fallthru
      _
    // Predicated region
    $region34: #{encode_process_decode.11} parent=1 // pred_check
      _
    $region35: #{encode_process_decode.11} parent=1 // pred_check_branch
      %36 = sbr.rel (0) target = $region37
    $region36: #{encode_process_decode.11} parent=1 // pred_region
      _
    $region37: #{encode_process_decode.11} parent=1 // pred_fallthru
      _
    // Predicated region
    $region38: #{encode_process_decode.11} parent=1 // pred_check
      _
    $region39: #{encode_process_decode.11} parent=1 // pred_check_branch
      %38 = sbr.rel (0) target = $region41
    $region40: #{encode_process_decode.11} parent=1 // pred_region
      _
    $region41: #{encode_process_decode.11} parent=1 // pred_fallthru
      _
    // Predicated region
    $region42: #{encode_process_decode.11} parent=1 // pred_check
      _
    $region43: #{encode_process_decode.11} parent=1 // pred_check_branch
      %40 = sbr.rel (0) target = $region45
    $region44: #{encode_process_decode.11} parent=1 // pred_region
      _
    $region45: #{encode_process_decode.11} parent=1 // pred_fallthru
      _
    %v42 = vld [vmem:[%s0] sm:$0xff]
    %v43 = vld [vmem:[%s0 + $0x8] sm:$0xff]
    %v44 = vld [vmem:[%s0 + $0x10] sm:$0xff]
    %v45 = vld [vmem:[%s0 + $0x18] sm:$0xff]
    %v46 = vld [vmem:[%s0 + $0x20] sm:$0xff]
    %v47 = vld [vmem:[%s0 + $0x28] sm:$0xff]
    %v48 = vld [vmem:[%s0 + $0x30] sm:$0xff]
    %v49 = vpack.c.bf16 %v43, %v42
    %v50 = vpack.c.bf16 %v45, %v44
    %v51 = vpack.c.bf16 %v47, %v46
    %v52 = vpack.c.bf16 %v48, %v48
    %v53 = vld [vmem:[%s1] sm:$0xff]
    %v54 = vld [vmem:[%s1 + $0x8] sm:$0xff]
    %v55 = vld [vmem:[%s1 + $0x10] sm:$0xff]
    %v56 = vld [vmem:[%s1 + $0x18] sm:$0xff]
    %v57 = vld [vmem:[%s1 + $0x20] sm:$0xff]
    %v58 = vld [vmem:[%s1 + $0x28] sm:$0xff]
    %v59 = vld [vmem:[%s1 + $0x30] sm:$0xff]
    %v60 = vpack.c.bf16 %v54, %v53
    %v61 = vpack.c.bf16 %v56, %v55
    %v62 = vpack.c.bf16 %v58, %v57
    %v63 = vpack.c.bf16 %v59, %v59
    %v64 = vld [vmem:[%s2] sm:$0xff]
    %v65 = vld [vmem:[%s2 + $0x8] sm:$0xff]
    %v66 = vld [vmem:[%s2 + $0x10] sm:$0xff]
    %v67 = vld [vmem:[%s2 + $0x18] sm:$0xff]
    %v68 = vld [vmem:[%s2 + $0x20] sm:$0xff]
    %v69 = vld [vmem:[%s2 + $0x28] sm:$0xff]
    %v70 = vld [vmem:[%s2 + $0x30] sm:$0xff]
    %v71 = vpack.c.bf16 %v65, %v64
    %v72 = vpack.c.bf16 %v67, %v66
    %v73 = vpack.c.bf16 %v69, %v68
    %v74 = vpack.c.bf16 %v70, %v70
    %v75 = vld [vmem:[%s3] sm:$0xf]
    %v76 = vld [vmem:[%s3 + $0x4] sm:$0xf]
    %v77 = vld [vmem:[%s3 + $0x8] sm:$0xf]
    %v78 = vld [vmem:[%s3 + $0xc] sm:$0xf]
    %v79 = vld [vmem:[%s4] sm:$0xf]
    %v80 = vld [vmem:[%s4 + $0x4] sm:$0xf]
    %v81 = vld [vmem:[%s4 + $0x8] sm:$0xf]
    %v82 = vld [vmem:[%s4 + $0xc] sm:$0xf]
    %v83 = vld [vmem:[%s5] sm:$0xf]
    %v84 = vld [vmem:[%s5 + $0x4] sm:$0xf]
    %v85 = vld [vmem:[%s5 + $0x8] sm:$0xf]
    %v86 = vld [vmem:[%s5 + $0xc] sm:$0xf]
    %v87 = vld [vmem:[%s6] sm:$0x1]
    %v88 = vld [vmem:[%s7] sm:$0xf]
    %v89 = vld [vmem:[%s7 + $0x4] sm:$0xf]
    %v90 = vld [vmem:[%s7 + $0x8] sm:$0xf]
    %v91 = vld [vmem:[%s7 + $0xc] sm:$0xf]
    %v92 = vld [vmem:[%s8] sm:$0x1]
    %v93 = vld [vmem:[%s9] sm:$0x1]
    %v94 = vld [vmem:[%s10] sm:$0x1]
    %v96 = vlaneseq
    %v97 = vshrl.u32 %v96, 7
    %v98 = vsub.s32 0, %v97
    %v99 = vrot.slane %v87, %v98
    %v105 = vunpack.c.l.b16 %v83
    %v106 = vunpack.c.l.b16 %v84
    %v107 = vunpack.c.l.b16 %v85
    %v108 = vunpack.c.l.b16 %v86
    %v109 = vpack.c.b16 %v106, %v105
    %v110 = vpack.c.b16 %v108, %v107
    %vm113 = vcmask 261120
    %v115 = vsel %vm113, %v71, 0
    %v118 = vsel %vm113, %v72, 0
    %v121 = vsel %vm113, %v73, 0
    %v124 = vsel %vm113, %v74, 0
    %126 = vmatprep.subr.bf16.mxu0 0
    %127 = vmatpush1.bf16.msra.mxu0 %v109
    %128 = vmatprep.subr.bf16.mxu0 0
    %129 = vmatpush1.bf16.msra.mxu0 %v110
    %130 = vmatprep.subr.bf16.mxu0 0
    %131 = vmatpush1.bf16.msra.mxu0 0
    %132 = vmatprep.subr.bf16.mxu0 0
    %133 = vmatpush1.bf16.msra.mxu0 0
    %134 = vmatprep.subr.bf16.mxu0 0
    %135 = vmatpush1.bf16.msra.mxu0 0
    %136 = vmatprep.subr.bf16.mxu0 0
    %137 = vmatpush1.bf16.msra.mxu0 0
    %138 = vmatprep.subr.bf16.mxu0 0
    %139 = vmatpush1.bf16.msra.mxu0 0
    %140 = vmatprep.subr.bf16.mxu0 0
    %141 = vmatpush1.bf16.msra.mxu0 0
    %142 = vmatprep.subr.bf16.mxu0 0
    %143 = vmatpush1.bf16.msra.mxu0 0
    %144 = vmatprep.subr.bf16.mxu0 0
    %145 = vmatpush1.bf16.msra.mxu0 0
    %146 = vmatprep.subr.bf16.mxu0 0
    %147 = vmatpush1.bf16.msra.mxu0 0
    %148 = vmatprep.subr.bf16.mxu0 0
    %149 = vmatpush1.bf16.msra.mxu0 0
    %150 = vmatprep.subr.bf16.mxu0 0
    %151 = vmatpush1.bf16.msra.mxu0 0
    %152 = vmatprep.subr.bf16.mxu0 0
    %153 = vmatpush1.bf16.msra.mxu0 0
    %154 = vmatprep.subr.bf16.mxu0 0
    %155 = vmatpush1.bf16.msra.mxu0 0
    %156 = vmatprep.subr.bf16.mxu0 0
    %157 = vmatpush1.bf16.msra.mxu0 0
    %158 = vmatprep.mubr.bf16.mxu0 0
    %159 = vmatmul.mubr.bf16.gmra.mrb[0].mxu0 %v115
    %v160 = vpop.f32.mrb[0].mxu0
    %v161 = vadd.f32 %v99, %v160
    %v162 = vpop.f32.mrb[0].mxu0
    %v163 = vpop.f32.mrb[0].mxu0
    %v164 = vadd.f32 %v99, %v163
    %v165 = vpop.f32.mrb[0].mxu0
    %166 = vmatprep.mubr.bf16.mxu0 0
    %167 = vmatmul.mubr.bf16.gmra.mrb[0].mxu0 %v118
    %v168 = vpop.f32.mrb[0].mxu0
    %v169 = vadd.f32 %v99, %v168
    %v170 = vpop.f32.mrb[0].mxu0
    %v171 = vpop.f32.mrb[0].mxu0
    %v172 = vadd.f32 %v99, %v171
    %v173 = vpop.f32.mrb[0].mxu0
    %174 = vmatprep.mubr.bf16.mxu0 0
    %175 = vmatmul.mubr.bf16.gmra.mrb[0].mxu0 %v121
    %v176 = vpop.f32.mrb[0].mxu0
    %v177 = vadd.f32 %v99, %v176
    %v178 = vpop.f32.mrb[0].mxu0
    %v179 = vpop.f32.mrb[0].mxu0
    %v180 = vadd.f32 %v99, %v179
    %v181 = vpop.f32.mrb[0].mxu0
    %182 = vmatprep.mubr.bf16.mxu0 0
    %183 = vmatmul.mubr.bf16.gmra.mrb[0].mxu0 %v124
    %v184 = vpop.f32.mrb[0].mxu0
    %v185 = vadd.f32 %v99, %v184
    %v186 = vpop.f32.mrb[0].mxu0
    %v187 = vpop.f32.mrb[0].mxu0
    %v188 = vpop.f32.mrb[0].mxu0
    %189 = vdwg.mxu0
    %v194 = vunpack.c.l.b16 %v79
    %v195 = vunpack.c.l.b16 %v80
    %v196 = vunpack.c.l.b16 %v81
    %v197 = vunpack.c.l.b16 %v82
    %v198 = vpack.c.b16 %v195, %v194
    %v199 = vpack.c.b16 %v197, %v196
    %v203 = vsel %vm113, %v60, 0
    %v206 = vsel %vm113, %v61, 0
    %v209 = vsel %vm113, %v62, 0
    %v212 = vsel %vm113, %v63, 0
    %214 = vmatprep.subr.bf16.mxu0 0
    %215 = vmatpush1.bf16.msra.mxu0 %v198
    %216 = vmatprep.subr.bf16.mxu0 0
    %217 = vmatpush1.bf16.msra.mxu0 %v199
    %218 = vmatprep.subr.bf16.mxu0 0
    %219 = vmatpush1.bf16.msra.mxu0 0
    %220 = vmatprep.subr.bf16.mxu0 0
    %221 = vmatpush1.bf16.msra.mxu0 0
    %222 = vmatprep.subr.bf16.mxu0 0
    %223 = vmatpush1.bf16.msra.mxu0 0
    %224 = vmatprep.subr.bf16.mxu0 0
    %225 = vmatpush1.bf16.msra.mxu0 0
    %226 = vmatprep.subr.bf16.mxu0 0
    %227 = vmatpush1.bf16.msra.mxu0 0
    %228 = vmatprep.subr.bf16.mxu0 0
    %229 = vmatpush1.bf16.msra.mxu0 0
    %230 = vmatprep.subr.bf16.mxu0 0
    %231 = vmatpush1.bf16.msra.mxu0 0
    %232 = vmatprep.subr.bf16.mxu0 0
    %233 = vmatpush1.bf16.msra.mxu0 0
    %234 = vmatprep.subr.bf16.mxu0 0
    %235 = vmatpush1.bf16.msra.mxu0 0
    %236 = vmatprep.subr.bf16.mxu0 0
    %237 = vmatpush1.bf16.msra.mxu0 0
    %238 = vmatprep.subr.bf16.mxu0 0
    %239 = vmatpush1.bf16.msra.mxu0 0
    %240 = vmatprep.subr.bf16.mxu0 0
    %241 = vmatpush1.bf16.msra.mxu0 0
    %242 = vmatprep.subr.bf16.mxu0 0
    %243 = vmatpush1.bf16.msra.mxu0 0
    %244 = vmatprep.subr.bf16.mxu0 0
    %245 = vmatpush1.bf16.msra.mxu0 0
    %246 = vmatprep.mubr.bf16.mxu0 0
    %247 = vmatmul.mubr.bf16.gmra.mrb[0].mxu0 %v203
    %v248 = vpop.f32.mrb[0].mxu0
    %v249 = vadd.f32 0.0, %v248
    %v250 = vpop.f32.mrb[0].mxu0
    %v251 = vpop.f32.mrb[0].mxu0
    %v252 = vadd.f32 0.0, %v251
    %v253 = vpop.f32.mrb[0].mxu0
    %254 = vmatprep.mubr.bf16.mxu0 0
    %255 = vmatmul.mubr.bf16.gmra.mrb[0].mxu0 %v206
    %v256 = vpop.f32.mrb[0].mxu0
    %v257 = vadd.f32 0.0, %v256
    %v258 = vpop.f32.mrb[0].mxu0
    %v259 = vpop.f32.mrb[0].mxu0
    %v260 = vadd.f32 0.0, %v259
    %v261 = vpop.f32.mrb[0].mxu0
    %262 = vmatprep.mubr.bf16.mxu0 0
    %263 = vmatmul.mubr.bf16.gmra.mrb[0].mxu0 %v209
    %v264 = vpop.f32.mrb[0].mxu0
    %v265 = vadd.f32 0.0, %v264
    %v266 = vpop.f32.mrb[0].mxu0
    %v267 = vpop.f32.mrb[0].mxu0
    %v268 = vadd.f32 0.0, %v267
    %v269 = vpop.f32.mrb[0].mxu0
    %270 = vmatprep.mubr.bf16.mxu0 0
    %271 = vmatmul.mubr.bf16.gmra.mrb[0].mxu0 %v212
    %v272 = vpop.f32.mrb[0].mxu0
    %v273 = vadd.f32 0.0, %v272
    %v274 = vpop.f32.mrb[0].mxu0
    %v275 = vpop.f32.mrb[0].mxu0
    %v276 = vpop.f32.mrb[0].mxu0
    %277 = vdwg.mxu0
    %v282 = vunpack.c.l.b16 %v75
    %v283 = vunpack.c.l.b16 %v76
    %v284 = vunpack.c.l.b16 %v77
    %v285 = vunpack.c.l.b16 %v78
    %v286 = vpack.c.b16 %v283, %v282
    %v287 = vpack.c.b16 %v285, %v284
    %v291 = vsel %vm113, %v49, 0
    %v294 = vsel %vm113, %v50, 0
    %v297 = vsel %vm113, %v51, 0
    %v300 = vsel %vm113, %v52, 0
    %302 = vmatprep.subr.bf16.mxu0 0
    %303 = vmatpush1.bf16.msra.mxu0 %v286
    %304 = vmatprep.subr.bf16.mxu0 0
    %305 = vmatpush1.bf16.msra.mxu0 %v287
    %306 = vmatprep.subr.bf16.mxu0 0
    %307 = vmatpush1.bf16.msra.mxu0 0
    %308 = vmatprep.subr.bf16.mxu0 0
    %309 = vmatpush1.bf16.msra.mxu0 0
    %310 = vmatprep.subr.bf16.mxu0 0
    %311 = vmatpush1.bf16.msra.mxu0 0
    %312 = vmatprep.subr.bf16.mxu0 0
    %313 = vmatpush1.bf16.msra.mxu0 0
    %314 = vmatprep.subr.bf16.mxu0 0
    %315 = vmatpush1.bf16.msra.mxu0 0
    %316 = vmatprep.subr.bf16.mxu0 0
    %317 = vmatpush1.bf16.msra.mxu0 0
    %318 = vmatprep.subr.bf16.mxu0 0
    %319 = vmatpush1.bf16.msra.mxu0 0
    %320 = vmatprep.subr.bf16.mxu0 0
    %321 = vmatpush1.bf16.msra.mxu0 0
    %322 = vmatprep.subr.bf16.mxu0 0
    %323 = vmatpush1.bf16.msra.mxu0 0
    %324 = vmatprep.subr.bf16.mxu0 0
    %325 = vmatpush1.bf16.msra.mxu0 0
    %326 = vmatprep.subr.bf16.mxu0 0
    %327 = vmatpush1.bf16.msra.mxu0 0
    %328 = vmatprep.subr.bf16.mxu0 0
    %329 = vmatpush1.bf16.msra.mxu0 0
    %330 = vmatprep.subr.bf16.mxu0 0
    %331 = vmatpush1.bf16.msra.mxu0 0
    %332 = vmatprep.subr.bf16.mxu0 0
    %333 = vmatpush1.bf16.msra.mxu0 0
    %334 = vmatprep.mubr.bf16.mxu0 0
    %335 = vmatmul.mubr.bf16.gmra.mrb[0].mxu0 %v291
    %v336 = vpop.f32.mrb[0].mxu0
    %v337 = vadd.f32 %v249, %v336
    %v338 = vpop.f32.mrb[0].mxu0
    %v339 = vpop.f32.mrb[0].mxu0
    %v340 = vadd.f32 %v252, %v339
    %v341 = vpop.f32.mrb[0].mxu0
    %342 = vmatprep.mubr.bf16.mxu0 0
    %343 = vmatmul.mubr.bf16.gmra.mrb[0].mxu0 %v294
    %v344 = vpop.f32.mrb[0].mxu0
    %v345 = vadd.f32 %v257, %v344
    %v346 = vpop.f32.mrb[0].mxu0
    %v347 = vpop.f32.mrb[0].mxu0
    %v348 = vadd.f32 %v260, %v347
    %v349 = vpop.f32.mrb[0].mxu0
    %350 = vmatprep.mubr.bf16.mxu0 0
    %351 = vmatmul.mubr.bf16.gmra.mrb[0].mxu0 %v297
    %v352 = vpop.f32.mrb[0].mxu0
    %v353 = vadd.f32 %v265, %v352
    %v354 = vpop.f32.mrb[0].mxu0
    %v355 = vpop.f32.mrb[0].mxu0
    %v356 = vadd.f32 %v268, %v355
    %v357 = vpop.f32.mrb[0].mxu0
    %358 = vmatprep.mubr.bf16.mxu0 0
    %359 = vmatmul.mubr.bf16.gmra.mrb[0].mxu0 %v300
    %v360 = vpop.f32.mrb[0].mxu0
    %v361 = vadd.f32 %v273, %v360
    %v362 = vpop.f32.mrb[0].mxu0
    %v363 = vpop.f32.mrb[0].mxu0
    %v364 = vpop.f32.mrb[0].mxu0
    %365 = vdwg.mxu0
    %v366 = vadd.f32 %v337, %v161
    %v367 = vadd.f32 %v340, %v164
    %v368 = vadd.f32 %v345, %v169
    %v369 = vadd.f32 %v348, %v172
    %v370 = vadd.f32 %v353, %v177
    %v371 = vadd.f32 %v356, %v180
    %v372 = vadd.f32 %v361, %v185
    %v373 = vmax.f32 %v366, 0.0
    %v374 = vmax.f32 %v367, 0.0
    %v375 = vmax.f32 %v368, 0.0
    %v376 = vmax.f32 %v369, 0.0
    %v377 = vmax.f32 %v370, 0.0
    %v378 = vmax.f32 %v371, 0.0
    %v379 = vmax.f32 %v372, 0.0
    %v380 = vpack.c.bf16 %v374, %v373
    %v381 = vpack.c.bf16 %v376, %v375
    %v382 = vpack.c.bf16 %v378, %v377
    %v383 = vpack.c.bf16 %v379, %v379
    %v385 = vlaneseq
    %v386 = vshrl.u32 %v385, 7
    %v387 = vsub.s32 0, %v386
    %v388 = vrot.slane %v92, %v387
    %v394 = vunpack.c.l.b16 %v88
    %v395 = vunpack.c.l.b16 %v89
    %v396 = vunpack.c.l.b16 %v90
    %v397 = vunpack.c.l.b16 %v91
    %v398 = vpack.c.b16 %v395, %v394
    %v399 = vpack.c.b16 %v397, %v396
    %v403 = vsel %vm113, %v380, 0
    %v406 = vsel %vm113, %v381, 0
    %v409 = vsel %vm113, %v382, 0
    %v412 = vsel %vm113, %v383, 0
    %414 = vmatprep.subr.bf16.mxu0 0
    %415 = vmatpush1.bf16.msra.mxu0 %v398
    %416 = vmatprep.subr.bf16.mxu0 0
    %417 = vmatpush1.bf16.msra.mxu0 %v399
    %418 = vmatprep.subr.bf16.mxu0 0
    %419 = vmatpush1.bf16.msra.mxu0 0
    %420 = vmatprep.subr.bf16.mxu0 0
    %421 = vmatpush1.bf16.msra.mxu0 0
    %422 = vmatprep.subr.bf16.mxu0 0
    %423 = vmatpush1.bf16.msra.mxu0 0
    %424 = vmatprep.subr.bf16.mxu0 0
    %425 = vmatpush1.bf16.msra.mxu0 0
    %426 = vmatprep.subr.bf16.mxu0 0
    %427 = vmatpush1.bf16.msra.mxu0 0
    %428 = vmatprep.subr.bf16.mxu0 0
    %429 = vmatpush1.bf16.msra.mxu0 0
    %430 = vmatprep.subr.bf16.mxu0 0
    %431 = vmatpush1.bf16.msra.mxu0 0
    %432 = vmatprep.subr.bf16.mxu0 0
    %433 = vmatpush1.bf16.msra.mxu0 0
    %434 = vmatprep.subr.bf16.mxu0 0
    %435 = vmatpush1.bf16.msra.mxu0 0
    %436 = vmatprep.subr.bf16.mxu0 0
    %437 = vmatpush1.bf16.msra.mxu0 0
    %438 = vmatprep.subr.bf16.mxu0 0
    %439 = vmatpush1.bf16.msra.mxu0 0
    %440 = vmatprep.subr.bf16.mxu0 0
    %441 = vmatpush1.bf16.msra.mxu0 0
    %442 = vmatprep.subr.bf16.mxu0 0
    %443 = vmatpush1.bf16.msra.mxu0 0
    %444 = vmatprep.subr.bf16.mxu0 0
    %445 = vmatpush1.bf16.msra.mxu0 0
    %446 = vmatprep.mubr.bf16.mxu0 0
    %447 = vmatmul.mubr.bf16.gmra.mrb[0].mxu0 %v403
    %v448 = vpop.f32.mrb[0].mxu0
    %v449 = vadd.f32 %v388, %v448
    %v450 = vpop.f32.mrb[0].mxu0
    %v451 = vpop.f32.mrb[0].mxu0
    %v452 = vadd.f32 %v388, %v451
    %v453 = vpop.f32.mrb[0].mxu0
    %454 = vmatprep.mubr.bf16.mxu0 0
    %455 = vmatmul.mubr.bf16.gmra.mrb[0].mxu0 %v406
    %v456 = vpop.f32.mrb[0].mxu0
    %v457 = vadd.f32 %v388, %v456
    %v458 = vpop.f32.mrb[0].mxu0
    %v459 = vpop.f32.mrb[0].mxu0
    %v460 = vadd.f32 %v388, %v459
    %v461 = vpop.f32.mrb[0].mxu0
    %462 = vmatprep.mubr.bf16.mxu0 0
    %463 = vmatmul.mubr.bf16.gmra.mrb[0].mxu0 %v409
    %v464 = vpop.f32.mrb[0].mxu0
    %v465 = vadd.f32 %v388, %v464
    %v466 = vpop.f32.mrb[0].mxu0
    %v467 = vpop.f32.mrb[0].mxu0
    %v468 = vadd.f32 %v388, %v467
    %v469 = vpop.f32.mrb[0].mxu0
    %470 = vmatprep.mubr.bf16.mxu0 0
    %471 = vmatmul.mubr.bf16.gmra.mrb[0].mxu0 %v412
    %v472 = vpop.f32.mrb[0].mxu0
    %v473 = vadd.f32 %v388, %v472
    %v474 = vpop.f32.mrb[0].mxu0
    %v475 = vpop.f32.mrb[0].mxu0
    %v476 = vpop.f32.mrb[0].mxu0
    %477 = vdwg.mxu0
    %v478 = vmax.f32 %v449, 0.0
    %v479 = vmax.f32 %v452, 0.0
    %v480 = vmax.f32 %v457, 0.0
    %v481 = vmax.f32 %v460, 0.0
    %v482 = vmax.f32 %v465, 0.0
    %v483 = vmax.f32 %v468, 0.0
    %v484 = vmax.f32 %v473, 0.0
    %v485 = vsel %vm113, %v478, 0.0
    %486 = vadd.xlane.f32.xlu0 %v485
    %v487 = vpop.xlane.xlu0 %486
    %v488 = vsel %vm113, %v479, 0.0
    %489 = vadd.xlane.f32.xlu0 %v488
    %v490 = vpop.xlane.xlu0 %489
    %v491 = vsel %vm113, %v480, 0.0
    %492 = vadd.xlane.f32.xlu0 %v491
    %v493 = vpop.xlane.xlu0 %492
    %v494 = vsel %vm113, %v481, 0.0
    %495 = vadd.xlane.f32.xlu0 %v494
    %v496 = vpop.xlane.xlu0 %495
    %v497 = vsel %vm113, %v482, 0.0
    %498 = vadd.xlane.f32.xlu0 %v497
    %v499 = vpop.xlane.xlu0 %498
    %v500 = vsel %vm113, %v483, 0.0
    %501 = vadd.xlane.f32.xlu0 %v500
    %v502 = vpop.xlane.xlu0 %501
    %v503 = vsel %vm113, %v484, 0.0
    %504 = vadd.xlane.f32.xlu0 %v503
    %v505 = vpop.xlane.xlu0 %504
    %v506 = vrcp.pop 32.0
    %v507 = vmul.f32 %v487, %v506
    %v508 = vmul.f32 %v490, %v506
    %v509 = vmul.f32 %v493, %v506
    %v510 = vmul.f32 %v496, %v506
    %v511 = vmul.f32 %v499, %v506
    %v512 = vmul.f32 %v502, %v506
    %v513 = vmul.f32 %v505, %v506
    %v514 = vsub.f32 %v478, %v507
    %v515 = vsub.f32 %v479, %v508
    %v516 = vsub.f32 %v480, %v509
    %v517 = vsub.f32 %v481, %v510
    %v518 = vsub.f32 %v482, %v511
    %v519 = vsub.f32 %v483, %v512
    %v520 = vsub.f32 %v484, %v513
    %v521 = vmul.f32 %v514, %v514
    %v522 = vmul.f32 %v515, %v515
    %v523 = vmul.f32 %v516, %v516
    %v524 = vmul.f32 %v517, %v517
    %v525 = vmul.f32 %v518, %v518
    %v526 = vmul.f32 %v519, %v519
    %v527 = vmul.f32 %v520, %v520
    %v528 = vsel %vm113, %v521, 0.0
    %529 = vadd.xlane.f32.xlu0 %v528
    %v530 = vpop.xlane.xlu0 %529
    %v531 = vsel %vm113, %v522, 0.0
    %532 = vadd.xlane.f32.xlu0 %v531
    %v533 = vpop.xlane.xlu0 %532
    %v534 = vsel %vm113, %v523, 0.0
    %535 = vadd.xlane.f32.xlu0 %v534
    %v536 = vpop.xlane.xlu0 %535
    %v537 = vsel %vm113, %v524, 0.0
    %538 = vadd.xlane.f32.xlu0 %v537
    %v539 = vpop.xlane.xlu0 %538
    %v540 = vsel %vm113, %v525, 0.0
    %541 = vadd.xlane.f32.xlu0 %v540
    %v542 = vpop.xlane.xlu0 %541
    %v543 = vsel %vm113, %v526, 0.0
    %544 = vadd.xlane.f32.xlu0 %v543
    %v545 = vpop.xlane.xlu0 %544
    %v546 = vsel %vm113, %v527, 0.0
    %547 = vadd.xlane.f32.xlu0 %v546
    %v548 = vpop.xlane.xlu0 %547
    %v549 = vmul.f32 %v530, %v506
    %v550 = vmul.f32 %v533, %v506
    %v551 = vmul.f32 %v536, %v506
    %v552 = vmul.f32 %v539, %v506
    %v553 = vmul.f32 %v542, %v506
    %v554 = vmul.f32 %v545, %v506
    %v555 = vmul.f32 %v548, %v506
    %v556 = vadd.f32 %v549, 1e-05
    %v557 = vadd.f32 %v550, 1e-05
    %v558 = vadd.f32 %v551, 1e-05
    %v559 = vadd.f32 %v552, 1e-05
    %v560 = vadd.f32 %v553, 1e-05
    %v561 = vadd.f32 %v554, 1e-05
    %v562 = vadd.f32 %v555, 1e-05
    %v563 = vrsqrt.pop %v556
    %v564 = vrsqrt.pop %v557
    %v565 = vrsqrt.pop %v558
    %v566 = vrsqrt.pop %v559
    %v567 = vrsqrt.pop %v560
    %v568 = vrsqrt.pop %v561
    %v569 = vrsqrt.pop %v562
    %v570 = vmul.f32 %v514, %v563
    %v571 = vmul.f32 %v515, %v564
    %v572 = vmul.f32 %v516, %v565
    %v573 = vmul.f32 %v517, %v566
    %v574 = vmul.f32 %v518, %v567
    %v575 = vmul.f32 %v519, %v568
    %v576 = vmul.f32 %v520, %v569
    %v578 = vlaneseq
    %v579 = vshrl.u32 %v578, 7
    %v580 = vsub.s32 0, %v579
    %v581 = vrot.slane %v93, %v580
    %v583 = vmul.f32 %v570, %v581
    %v584 = vmul.f32 %v571, %v581
    %v585 = vmul.f32 %v572, %v581
    %v586 = vmul.f32 %v573, %v581
    %v587 = vmul.f32 %v574, %v581
    %v588 = vmul.f32 %v575, %v581
    %v589 = vmul.f32 %v576, %v581
    %v591 = vlaneseq
    %v592 = vshrl.u32 %v591, 7
    %v593 = vsub.s32 0, %v592
    %v594 = vrot.slane %v94, %v593
    %v596 = vadd.f32 %v583, %v594
    %v597 = vadd.f32 %v584, %v594
    %v598 = vadd.f32 %v585, %v594
    %v599 = vadd.f32 %v586, %v594
    %v600 = vadd.f32 %v587, %v594
    %v601 = vadd.f32 %v588, %v594
    %v602 = vadd.f32 %v589, %v594
    %603 = vst.msk [vmem:[%s11] sm:$0xff] %vm113, %v596
    %604 = vst.msk [vmem:[%s11 + $0x8] sm:$0xff] %vm113, %v597
    %605 = vst.msk [vmem:[%s11 + $0x10] sm:$0xff] %vm113, %v598
    %606 = vst.msk [vmem:[%s11 + $0x18] sm:$0xff] %vm113, %v599
    %607 = vst.msk [vmem:[%s11 + $0x20] sm:$0xff] %vm113, %v600
    %608 = vst.msk [vmem:[%s11 + $0x28] sm:$0xff] %vm113, %v601
    %609 = vst.msk [vmem:[%s11 + $0x30] sm:$0xff] %vm113, %v602
    %610 = vmatprep.subr.bf16.mxu0 0
    %611 = vmatpush1.bf16.msra.mxu0 %v198
    %612 = vmatprep.subr.bf16.mxu0 0
    %613 = vmatpush1.bf16.msra.mxu0 %v199
    %614 = vmatprep.subr.bf16.mxu0 0
    %615 = vmatpush1.bf16.msra.mxu0 0
    %616 = vmatprep.subr.bf16.mxu0 0
    %617 = vmatpush1.bf16.msra.mxu0 0
    %618 = vmatprep.subr.bf16.mxu0 0
    %619 = vmatpush1.bf16.msra.mxu0 0
    %620 = vmatprep.subr.bf16.mxu0 0
    %621 = vmatpush1.bf16.msra.mxu0 0
    %622 = vmatprep.subr.bf16.mxu0 0
    %623 = vmatpush1.bf16.msra.mxu0 0
    %624 = vmatprep.subr.bf16.mxu0 0
    %625 = vmatpush1.bf16.msra.mxu0 0
    %626 = vmatprep.subr.bf16.mxu0 0
    %627 = vmatpush1.bf16.msra.mxu0 0
    %628 = vmatprep.subr.bf16.mxu0 0
    %629 = vmatpush1.bf16.msra.mxu0 0
    %630 = vmatprep.subr.bf16.mxu0 0
    %631 = vmatpush1.bf16.msra.mxu0 0
    %632 = vmatprep.subr.bf16.mxu0 0
    %633 = vmatpush1.bf16.msra.mxu0 0
    %634 = vmatprep.subr.bf16.mxu0 0
    %635 = vmatpush1.bf16.msra.mxu0 0
    %636 = vmatprep.subr.bf16.mxu0 0
    %637 = vmatpush1.bf16.msra.mxu0 0
    %638 = vmatprep.subr.bf16.mxu0 0
    %639 = vmatpush1.bf16.msra.mxu0 0
    %640 = vmatprep.subr.bf16.mxu0 0
    %641 = vmatpush1.bf16.msra.mxu0 0
    %642 = vmatprep.mubr.bf16.mxu0 0
    %643 = vmatmul.mubr.bf16.gmra.mrb[0].mxu0 %v291
    %v644 = vpop.f32.mrb[0].mxu0
    %v645 = vadd.f32 0.0, %v644
    %v646 = vpop.f32.mrb[0].mxu0
    %v647 = vpop.f32.mrb[0].mxu0
    %v648 = vadd.f32 0.0, %v647
    %v649 = vpop.f32.mrb[0].mxu0
    %650 = vmatprep.mubr.bf16.mxu0 0
    %651 = vmatmul.mubr.bf16.gmra.mrb[0].mxu0 %v294
    %v652 = vpop.f32.mrb[0].mxu0
    %v653 = vadd.f32 0.0, %v652
    %v654 = vpop.f32.mrb[0].mxu0
    %v655 = vpop.f32.mrb[0].mxu0
    %v656 = vadd.f32 0.0, %v655
    %v657 = vpop.f32.mrb[0].mxu0
    %658 = vmatprep.mubr.bf16.mxu0 0
    %659 = vmatmul.mubr.bf16.gmra.mrb[0].mxu0 %v297
    %v660 = vpop.f32.mrb[0].mxu0
    %v661 = vadd.f32 0.0, %v660
    %v662 = vpop.f32.mrb[0].mxu0
    %v663 = vpop.f32.mrb[0].mxu0
    %v664 = vadd.f32 0.0, %v663
    %v665 = vpop.f32.mrb[0].mxu0
    %666 = vmatprep.mubr.bf16.mxu0 0
    %667 = vmatmul.mubr.bf16.gmra.mrb[0].mxu0 %v300
    %v668 = vpop.f32.mrb[0].mxu0
    %v669 = vadd.f32 0.0, %v668
    %v670 = vpop.f32.mrb[0].mxu0
    %v671 = vpop.f32.mrb[0].mxu0
    %v672 = vpop.f32.mrb[0].mxu0
    %673 = vdwg.mxu0
    %674 = vmatprep.subr.bf16.mxu0 0
    %675 = vmatpush1.bf16.msra.mxu0 %v286
    %676 = vmatprep.subr.bf16.mxu0 0
    %677 = vmatpush1.bf16.msra.mxu0 %v287
    %678 = vmatprep.subr.bf16.mxu0 0
    %679 = vmatpush1.bf16.msra.mxu0 0
    %680 = vmatprep.subr.bf16.mxu0 0
    %681 = vmatpush1.bf16.msra.mxu0 0
    %682 = vmatprep.subr.bf16.mxu0 0
    %683 = vmatpush1.bf16.msra.mxu0 0
    %684 = vmatprep.subr.bf16.mxu0 0
    %685 = vmatpush1.bf16.msra.mxu0 0
    %686 = vmatprep.subr.bf16.mxu0 0
    %687 = vmatpush1.bf16.msra.mxu0 0
    %688 = vmatprep.subr.bf16.mxu0 0
    %689 = vmatpush1.bf16.msra.mxu0 0
    %690 = vmatprep.subr.bf16.mxu0 0
    %691 = vmatpush1.bf16.msra.mxu0 0
    %692 = vmatprep.subr.bf16.mxu0 0
    %693 = vmatpush1.bf16.msra.mxu0 0
    %694 = vmatprep.subr.bf16.mxu0 0
    %695 = vmatpush1.bf16.msra.mxu0 0
    %696 = vmatprep.subr.bf16.mxu0 0
    %697 = vmatpush1.bf16.msra.mxu0 0
    %698 = vmatprep.subr.bf16.mxu0 0
    %699 = vmatpush1.bf16.msra.mxu0 0
    %700 = vmatprep.subr.bf16.mxu0 0
    %701 = vmatpush1.bf16.msra.mxu0 0
    %702 = vmatprep.subr.bf16.mxu0 0
    %703 = vmatpush1.bf16.msra.mxu0 0
    %704 = vmatprep.subr.bf16.mxu0 0
    %705 = vmatpush1.bf16.msra.mxu0 0
    %706 = vmatprep.mubr.bf16.mxu0 0
    %707 = vmatmul.mubr.bf16.gmra.mrb[0].mxu0 %v203
    %v708 = vpop.f32.mrb[0].mxu0
    %v709 = vadd.f32 %v645, %v708
    %v710 = vpop.f32.mrb[0].mxu0
    %v711 = vpop.f32.mrb[0].mxu0
    %v712 = vadd.f32 %v648, %v711
    %v713 = vpop.f32.mrb[0].mxu0
    %714 = vmatprep.mubr.bf16.mxu0 0
    %715 = vmatmul.mubr.bf16.gmra.mrb[0].mxu0 %v206
    %v716 = vpop.f32.mrb[0].mxu0
    %v717 = vadd.f32 %v653, %v716
    %v718 = vpop.f32.mrb[0].mxu0
    %v719 = vpop.f32.mrb[0].mxu0
    %v720 = vadd.f32 %v656, %v719
    %v721 = vpop.f32.mrb[0].mxu0
    %722 = vmatprep.mubr.bf16.mxu0 0
    %723 = vmatmul.mubr.bf16.gmra.mrb[0].mxu0 %v209
    %v724 = vpop.f32.mrb[0].mxu0
    %v725 = vadd.f32 %v661, %v724
    %v726 = vpop.f32.mrb[0].mxu0
    %v727 = vpop.f32.mrb[0].mxu0
    %v728 = vadd.f32 %v664, %v727
    %v729 = vpop.f32.mrb[0].mxu0
    %730 = vmatprep.mubr.bf16.mxu0 0
    %731 = vmatmul.mubr.bf16.gmra.mrb[0].mxu0 %v212
    %v732 = vpop.f32.mrb[0].mxu0
    %v733 = vadd.f32 %v669, %v732
    %v734 = vpop.f32.mrb[0].mxu0
    %v735 = vpop.f32.mrb[0].mxu0
    %v736 = vpop.f32.mrb[0].mxu0
    %737 = vdwg.mxu0
    %v738 = vadd.f32 %v709, %v161
    %v739 = vadd.f32 %v712, %v164
    %v740 = vadd.f32 %v717, %v169
    %v741 = vadd.f32 %v720, %v172
    %v742 = vadd.f32 %v725, %v177
    %v743 = vadd.f32 %v728, %v180
    %v744 = vadd.f32 %v733, %v185
    %v745 = vmax.f32 %v738, 0.0
    %v746 = vmax.f32 %v739, 0.0
    %v747 = vmax.f32 %v740, 0.0
    %v748 = vmax.f32 %v741, 0.0
    %v749 = vmax.f32 %v742, 0.0
    %v750 = vmax.f32 %v743, 0.0
    %v751 = vmax.f32 %v744, 0.0
    %v752 = vpack.c.bf16 %v746, %v745
    %v753 = vpack.c.bf16 %v748, %v747
    %v754 = vpack.c.bf16 %v750, %v749
    %v755 = vpack.c.bf16 %v751, %v751
    %v757 = vsel %vm113, %v752, 0
    %v760 = vsel %vm113, %v753, 0
    %v763 = vsel %vm113, %v754, 0
    %v766 = vsel %vm113, %v755, 0
    %768 = vmatprep.subr.bf16.mxu0 0
    %769 = vmatpush1.bf16.msra.mxu0 %v398
    %770 = vmatprep.subr.bf16.mxu0 0
    %771 = vmatpush1.bf16.msra.mxu0 %v399
    %772 = vmatprep.subr.bf16.mxu0 0
    %773 = vmatpush1.bf16.msra.mxu0 0
    %774 = vmatprep.subr.bf16.mxu0 0
    %775 = vmatpush1.bf16.msra.mxu0 0
    %776 = vmatprep.subr.bf16.mxu0 0
    %777 = vmatpush1.bf16.msra.mxu0 0
    %778 = vmatprep.subr.bf16.mxu0 0
    %779 = vmatpush1.bf16.msra.mxu0 0
    %780 = vmatprep.subr.bf16.mxu0 0
    %781 = vmatpush1.bf16.msra.mxu0 0
    %782 = vmatprep.subr.bf16.mxu0 0
    %783 = vmatpush1.bf16.msra.mxu0 0
    %784 = vmatprep.subr.bf16.mxu0 0
    %785 = vmatpush1.bf16.msra.mxu0 0
    %786 = vmatprep.subr.bf16.mxu0 0
    %787 = vmatpush1.bf16.msra.mxu0 0
    %788 = vmatprep.subr.bf16.mxu0 0
    %789 = vmatpush1.bf16.msra.mxu0 0
    %790 = vmatprep.subr.bf16.mxu0 0
    %791 = vmatpush1.bf16.msra.mxu0 0
    %792 = vmatprep.subr.bf16.mxu0 0
    %793 = vmatpush1.bf16.msra.mxu0 0
    %794 = vmatprep.subr.bf16.mxu0 0
    %795 = vmatpush1.bf16.msra.mxu0 0
    %796 = vmatprep.subr.bf16.mxu0 0
    %797 = vmatpush1.bf16.msra.mxu0 0
    %798 = vmatprep.subr.bf16.mxu0 0
    %799 = vmatpush1.bf16.msra.mxu0 0
    %800 = vmatprep.mubr.bf16.mxu0 0
    %801 = vmatmul.mubr.bf16.gmra.mrb[0].mxu0 %v757
    %v802 = vpop.f32.mrb[0].mxu0
    %v803 = vadd.f32 %v388, %v802
    %v804 = vpop.f32.mrb[0].mxu0
    %v805 = vpop.f32.mrb[0].mxu0
    %v806 = vadd.f32 %v388, %v805
    %v807 = vpop.f32.mrb[0].mxu0
    %808 = vmatprep.mubr.bf16.mxu0 0
    %809 = vmatmul.mubr.bf16.gmra.mrb[0].mxu0 %v760
    %v810 = vpop.f32.mrb[0].mxu0
    %v811 = vadd.f32 %v388, %v810
    %v812 = vpop.f32.mrb[0].mxu0
    %v813 = vpop.f32.mrb[0].mxu0
    %v814 = vadd.f32 %v388, %v813
    %v815 = vpop.f32.mrb[0].mxu0
    %816 = vmatprep.mubr.bf16.mxu0 0
    %817 = vmatmul.mubr.bf16.gmra.mrb[0].mxu0 %v763
    %v818 = vpop.f32.mrb[0].mxu0
    %v819 = vadd.f32 %v388, %v818
    %v820 = vpop.f32.mrb[0].mxu0
    %v821 = vpop.f32.mrb[0].mxu0
    %v822 = vadd.f32 %v388, %v821
    %v823 = vpop.f32.mrb[0].mxu0
    %824 = vmatprep.mubr.bf16.mxu0 0
    %825 = vmatmul.mubr.bf16.gmra.mrb[0].mxu0 %v766
    %v826 = vpop.f32.mrb[0].mxu0
    %v827 = vadd.f32 %v388, %v826
    %v828 = vpop.f32.mrb[0].mxu0
    %v829 = vpop.f32.mrb[0].mxu0
    %v830 = vpop.f32.mrb[0].mxu0
    %831 = vdwg.mxu0
    %v832 = vmax.f32 %v803, 0.0
    %v833 = vmax.f32 %v806, 0.0
    %v834 = vmax.f32 %v811, 0.0
    %v835 = vmax.f32 %v814, 0.0
    %v836 = vmax.f32 %v819, 0.0
    %v837 = vmax.f32 %v822, 0.0
    %v838 = vmax.f32 %v827, 0.0
    %v839 = vsel %vm113, %v832, 0.0
    %840 = vadd.xlane.f32.xlu0 %v839
    %v841 = vpop.xlane.xlu0 %840
    %v842 = vsel %vm113, %v833, 0.0
    %843 = vadd.xlane.f32.xlu0 %v842
    %v844 = vpop.xlane.xlu0 %843
    %v845 = vsel %vm113, %v834, 0.0
    %846 = vadd.xlane.f32.xlu0 %v845
    %v847 = vpop.xlane.xlu0 %846
    %v848 = vsel %vm113, %v835, 0.0
    %849 = vadd.xlane.f32.xlu0 %v848
    %v850 = vpop.xlane.xlu0 %849
    %v851 = vsel %vm113, %v836, 0.0
    %852 = vadd.xlane.f32.xlu0 %v851
    %v853 = vpop.xlane.xlu0 %852
    %v854 = vsel %vm113, %v837, 0.0
    %855 = vadd.xlane.f32.xlu0 %v854
    %v856 = vpop.xlane.xlu0 %855
    %v857 = vsel %vm113, %v838, 0.0
    %858 = vadd.xlane.f32.xlu0 %v857
    %v859 = vpop.xlane.xlu0 %858
    %v860 = vmul.f32 %v841, %v506
    %v861 = vmul.f32 %v844, %v506
    %v862 = vmul.f32 %v847, %v506
    %v863 = vmul.f32 %v850, %v506
    %v864 = vmul.f32 %v853, %v506
    %v865 = vmul.f32 %v856, %v506
    %v866 = vmul.f32 %v859, %v506
    %v867 = vsub.f32 %v832, %v860
    %v868 = vsub.f32 %v833, %v861
    %v869 = vsub.f32 %v834, %v862
    %v870 = vsub.f32 %v835, %v863
    %v871 = vsub.f32 %v836, %v864
    %v872 = vsub.f32 %v837, %v865
    %v873 = vsub.f32 %v838, %v866
    %v874 = vmul.f32 %v867, %v867
    %v875 = vmul.f32 %v868, %v868
    %v876 = vmul.f32 %v869, %v869
    %v877 = vmul.f32 %v870, %v870
    %v878 = vmul.f32 %v871, %v871
    %v879 = vmul.f32 %v872, %v872
    %v880 = vmul.f32 %v873, %v873
    %v881 = vsel %vm113, %v874, 0.0
    %882 = vadd.xlane.f32.xlu0 %v881
    %v883 = vpop.xlane.xlu0 %882
    %v884 = vsel %vm113, %v875, 0.0
    %885 = vadd.xlane.f32.xlu0 %v884
    %v886 = vpop.xlane.xlu0 %885
    %v887 = vsel %vm113, %v876, 0.0
    %888 = vadd.xlane.f32.xlu0 %v887
    %v889 = vpop.xlane.xlu0 %888
    %v890 = vsel %vm113, %v877, 0.0
    %891 = vadd.xlane.f32.xlu0 %v890
    %v892 = vpop.xlane.xlu0 %891
    %v893 = vsel %vm113, %v878, 0.0
    %894 = vadd.xlane.f32.xlu0 %v893
    %v895 = vpop.xlane.xlu0 %894
    %v896 = vsel %vm113, %v879, 0.0
    %897 = vadd.xlane.f32.xlu0 %v896
    %v898 = vpop.xlane.xlu0 %897
    %v899 = vsel %vm113, %v880, 0.0
    %900 = vadd.xlane.f32.xlu0 %v899
    %v901 = vpop.xlane.xlu0 %900
    %v902 = vmul.f32 %v883, %v506
    %v903 = vmul.f32 %v886, %v506
    %v904 = vmul.f32 %v889, %v506
    %v905 = vmul.f32 %v892, %v506
    %v906 = vmul.f32 %v895, %v506
    %v907 = vmul.f32 %v898, %v506
    %v908 = vmul.f32 %v901, %v506
    %v909 = vadd.f32 %v902, 1e-05
    %v910 = vadd.f32 %v903, 1e-05
    %v911 = vadd.f32 %v904, 1e-05
    %v912 = vadd.f32 %v905, 1e-05
    %v913 = vadd.f32 %v906, 1e-05
    %v914 = vadd.f32 %v907, 1e-05
    %v915 = vadd.f32 %v908, 1e-05
    %v916 = vrsqrt.pop %v909
    %v917 = vrsqrt.pop %v910
    %v918 = vrsqrt.pop %v911
    %v919 = vrsqrt.pop %v912
    %v920 = vrsqrt.pop %v913
    %v921 = vrsqrt.pop %v914
    %v922 = vrsqrt.pop %v915
    %v923 = vmul.f32 %v867, %v916
    %v924 = vmul.f32 %v868, %v917
    %v925 = vmul.f32 %v869, %v918
    %v926 = vmul.f32 %v870, %v919
    %v927 = vmul.f32 %v871, %v920
    %v928 = vmul.f32 %v872, %v921
    %v929 = vmul.f32 %v873, %v922
    %v930 = vmul.f32 %v923, %v581
    %v931 = vmul.f32 %v924, %v581
    %v932 = vmul.f32 %v925, %v581
    %v933 = vmul.f32 %v926, %v581
    %v934 = vmul.f32 %v927, %v581
    %v935 = vmul.f32 %v928, %v581
    %v936 = vmul.f32 %v929, %v581
    %v937 = vadd.f32 %v930, %v594
    %v938 = vadd.f32 %v931, %v594
    %v939 = vadd.f32 %v932, %v594
    %v940 = vadd.f32 %v933, %v594
    %v941 = vadd.f32 %v934, %v594
    %v942 = vadd.f32 %v935, %v594
    %v943 = vadd.f32 %v936, %v594
    %v944 = vadd.f32 %v937, %v64
    %v945 = vadd.f32 %v938, %v65
    %v946 = vadd.f32 %v939, %v66
    %v947 = vadd.f32 %v940, %v67
    %v948 = vadd.f32 %v941, %v68
    %v949 = vadd.f32 %v942, %v69
    %v950 = vadd.f32 %v943, %v70
    %951 = vst.msk [vmem:[#allocation2] sm:$0xff] %vm113, %v944
    %952 = vst.msk [vmem:[#allocation2 + $0x8] sm:$0xff] %vm113, %v945
    %953 = vst.msk [vmem:[#allocation2 + $0x10] sm:$0xff] %vm113, %v946
    %954 = vst.msk [vmem:[#allocation2 + $0x18] sm:$0xff] %vm113, %v947
    %955 = vst.msk [vmem:[#allocation2 + $0x20] sm:$0xff] %vm113, %v948
    %956 = vst.msk [vmem:[#allocation2 + $0x28] sm:$0xff] %vm113, %v949
    %957 = vst.msk [vmem:[#allocation2 + $0x30] sm:$0xff] %vm113, %v950
    // Predicated region
    $region46: #{encode_process_decode.11} parent=1 // pred_check
      _
    $region47: #{encode_process_decode.11} parent=1 // pred_check_branch
      %959 = sbr.rel (0) target = $region49
    $region48: #{encode_process_decode.11} parent=1 // pred_region
      _
    $region49: #{encode_process_decode.11} parent=1 // pred_fallthru
      _
    // Predicated region
    $region50: #{encode_process_decode.11} parent=1 // pred_check
      _
    $region51: #{encode_process_decode.11} parent=1 // pred_check_branch
      %961 = sbr.rel (0) target = $region53
    $region52: #{encode_process_decode.11} parent=1 // pred_region
      %s963 = ssub.s32 896, 896
      %964 = vsyncadd [#allocation3], %s963
      %s965 = sshll.u32 [#allocation2], 4
      %s966 = int_to_ptr.vmem [resolvable:$true] %s965
      %971 = dma.vmem_to_hbm [thread:$0]  %s966, 896, %s12, [#allocation3], 128, 128, 8
    $region53: #{encode_process_decode.11} parent=1 // pred_fallthru
      _
    // Predicated region
    $region54: #{encode_process_decode.11} parent=1 // pred_check
      _
    $region55: #{encode_process_decode.11} parent=1 // pred_check_branch
      %973 = sbr.rel (0) target = $region57
    $region56: #{encode_process_decode.11} parent=1 // pred_region
      _
    $region57: #{encode_process_decode.11} parent=1 // pred_fallthru
      _
    // Predicated region
    $region58: #{encode_process_decode.11} parent=1 // pred_check
      _
    $region59: #{encode_process_decode.11} parent=1 // pred_check_branch
      %975 = sbr.rel (0) target = $region61
    $region60: #{encode_process_decode.11} parent=1 // pred_region
      %976 = dma.done [#allocation3], 896
    $region61: #{encode_process_decode.11} parent=1 // pred_fallthru
      _
    %977 = vsyncpa [#allocation3], 1

</llo_original>
